<compile_context>
chip_gen: v7x
topology: tpu7x:2x2x1
jax: 0.10.0
libtpu: 0.0.40
codegen_flags: <defaults>
</compile_context>

<pallas_src>
from functools import partial

import numpy as np
import jax
import jax.numpy as jnp
from jax import lax
from jax.experimental import pallas as pl
from jax.experimental.pallas import tpu as pltpu

CHANNELS = (2, 16, 32, 64)
MXU_DTYPE = jnp.bfloat16   # MXU operand dtype (f32 accumulation)


# ----------------------------------------------------------------------------
# Fused kernel: one grid step == one image, everything VMEM-resident
# ----------------------------------------------------------------------------
def _ae_kernel(*refs, H0, enc_cfg, dec_cfg, hb, s0, dec_lane):
    """Whole AutoEncoder forward for ONE image.

    Activation layout everywhere: rows = physical y in [0, H0) (kept at full resolution through
    the encoder; after k pools only rows at stride 2^k are meaningful), lanes = (x, channel).
    refs = [x] + [Bm1,B0,Bp1,bias]*n_enc + [fc1_A, fc1_b, fc2_F, fc2_b] + [De,Do0,Do1,bias]*n_dec + [out]
    """
    n_enc, n_dec = len(enc_cfg), len(dec_cfg)
    it = iter(refs)
    x_ref = next(it)
    enc_p = [[next(it) for _ in range(4)] for _ in range(n_enc)]
    fc1_A, fc1_b = next(it), next(it)
    fc2_F, fc2_b = next(it), next(it)
    dec_p = [[next(it) for _ in range(4)] for _ in range(n_dec)]
    o_ref = next(it)

    # hoisted row-index iota: every boundary mask below is a (H0, 1) compare on this
    row = lax.broadcasted_iota(jnp.int32, (H0, 1), 0)

    def mm(a, w_ref):
        return jnp.dot(a.astype(MXU_DTYPE), w_ref[...], preferred_element_type=jnp.float32)

    # ---------------- Encoder: [conv 3x3 + ReLU + maxpool 2x2] blocks ----------------
    act = x_ref[...].astype(jnp.float32)
    for (s, cout), (bm1, b0, bp1, brow) in zip(enc_cfg, enc_p):
        # conv: y-taps via sublane rolls (+ (H,1) edge masks), x-taps/channels via banded matmuls
        x_dn = jnp.where(row >= s, pltpu.roll(act, s, axis=0), 0.0)              # logical y-1
        x_up = jnp.where(row < H0 - s, pltpu.roll(act, H0 - s, axis=0), 0.0)     # logical y+1
        y = jnp.maximum(mm(x_dn, bm1) + mm(act, b0) + mm(x_up, bp1) + brow[...], 0.0)
        # maxpool 2x2: pairwise max with rolled copies; the stride-2 selection is free
        # (x-downsample is folded into the next layer's weights, y via the stride bookkeeping)
        ym = jnp.maximum(y, pltpu.roll(y, H0 - s, axis=0))
        L = y.shape[1]
        act = jnp.maximum(ym, pltpu.roll(ym, L - cout, axis=1))

    # ---------------- Flatten + fc1 (PyTorch (C,H,W) order folded into fc1_A) ----------------
    feats = jnp.concatenate([act[yo * s0:yo * s0 + 1, :] for yo in range(hb)], axis=1)
    z = mm(feats, fc1_A) + fc1_b[...]                      # (1, latent), no activation

    # ---------------- fc2 + unflatten (order folded into fc2_F / fc2_b) ----------------
    g = mm(z, fc2_F) + fc2_b[...]                          # (1, hb*wb*ck), lanes ordered (y, x, c)
    zeros_blk = jnp.zeros((s0 - 1, dec_lane), jnp.float32)
    pieces = []
    for yo in range(hb):
        pieces.append(g[:, yo * dec_lane:(yo + 1) * dec_lane])
        pieces.append(zeros_blk)
    act = jnp.concatenate(pieces, axis=0)                  # (H0, dec_lane), valid rows at stride s0

    # ---------------- Decoder: [ConvTranspose 3x3 s2 p1 op1 + ReLU] blocks ----------------
    for s_in, (De, Do0, Do1, brow) in zip(dec_cfg, dec_p):
        s_out = s_in // 2
        d_next = jnp.where(row < H0 - s_in, pltpu.roll(act, H0 - s_in, axis=0), 0.0)  # logical v+1
        even = jnp.maximum(mm(act, De) + brow[...], 0.0)                      # output phase y%2==0
        odd = jnp.maximum(mm(act, Do0) + mm(d_next, Do1) + brow[...], 0.0)    # output phase y%2==1
        act = jnp.where((row % s_in) >= s_out, pltpu.roll(odd, s_out, axis=0), even)

    o_ref[...] = act.astype(o_ref.dtype)


# ----------------------------------------------------------------------------
# Parameters (PyTorch layouts) + one-time host-side packing to banded bf16 weights
# ----------------------------------------------------------------------------
def _conv_out_size(size, k, s, p):
    return tuple((d + 2 * p - k) // s + 1 for d in size)


def init_params(input_size, latent_dim, channels, key):
    """Parameters in PyTorch layouts (Conv2d: (cout,cin,3,3); Linear: (out,in);
    ConvTranspose2d: (cin,cout,3,3))."""
    n_enc = len(channels) - 1
    keys = jax.random.split(key, 4 * n_enc + 4)
    ki = 0

    def nrm(shape, scale=0.05):
        nonlocal ki
        k = keys[ki]; ki += 1
        return (scale * jax.random.normal(k, shape)).astype(jnp.float32)

    sizes = [tuple(input_size)]
    cur = tuple(input_size)
    enc = []
    for i in range(1, len(channels)):
        cin, cout = channels[i - 1], channels[i]
        enc.append((nrm((cout, cin, 3, 3)), nrm((cout,))))
        cur = _conv_out_size(cur, 3, 1, 1)   # conv keeps size
        cur = _conv_out_size(cur, 2, 2, 0)   # pool halves
        sizes.append(cur)

    flat = channels[-1] * cur[0] * cur[1]
    fc1_w, fc1_b = nrm((latent_dim, flat)), nrm((latent_dim,))
    fc2_w, fc2_b = nrm((flat, latent_dim)), nrm((flat,))

    rev_c, rev_s = list(reversed(channels)), list(reversed(sizes))
    dec = []
    cur = rev_s[0]
    for i in range(1, len(rev_s)):
        cin, cout = rev_c[i - 1], rev_c[i]
        expected = rev_s[i]
        no_op = tuple((d - 1) * 2 - 2 + 3 for d in cur)
        out_pad = tuple(e - o for e, o in zip(expected, no_op))
        # TODO(synk): generalize sub-pixel deconv packing to output_padding != 1 (never hit here).
        assert out_pad == (1, 1), "sub-pixel deconv packing assumes output_padding == 1"
        dec.append((nrm((cin, cout, 3, 3)), nrm((cout,))))
        cur = expected

    return {"enc": enc, "fc1_w": fc1_w, "fc1_b": fc1_b,
            "fc2_w": fc2_w, "fc2_b": fc2_b, "dec": dec, "sizes": sizes}


def _enc_band(w, wf, f, wout, dy):
    """Banded conv weight: rows = carried input lanes (xf, cin) (odd-xf rows zero when f=2,
    folding the previous pool's stride-2 x-downsample), cols = output lanes (xo, cout)."""
    w = np.asarray(w).astype(np.float32)           # (cout, cin, 3, 3)
    cout, cin = w.shape[0], w.shape[1]
    tap = w[:, :, dy + 1, :]                       # (cout, cin, 3)
    B = np.zeros((wf * cin, wout * cout), np.float32)
    for xf in range(0, wf, f):
        xl = xf // f
        for dx in (-1, 0, 1):
            xo = xl - dx
            if 0 <= xo < wout:
                B[xf * cin:(xf + 1) * cin, xo * cout:(xo + 1) * cout] = tap[:, :, dx + 1].T
    return B


def _dec_band(w, wi, a, dv):
    """Sub-pixel ConvTranspose weight for output y-phase `a`, input row offset `dv`:
    rows = input lanes (u, cin), cols = output lanes (2u+b, cout)."""
    w = np.asarray(w).astype(np.float32)           # (cin, cout, 3, 3)
    cin, cout = w.shape[0], w.shape[1]
    i = a + 1 - 2 * dv
    D = np.zeros((wi * cin, 2 * wi * cout), np.float32)
    if not 0 <= i <= 2:
        return D
    for u in range(wi):
        for b in (0, 1):
            oc = 2 * u + b
            for du in (0, 1):
                j = b + 1 - 2 * du
                t = u + du
                if 0 <= j <= 2 and t < wi:
                    D[t * cin:(t + 1) * cin, oc * cout:(oc + 1) * cout] = w[:, :, i, j]
    return D


def pack_params(params, channels, latent_dim):
    """One-time packing: banded bf16 weights (x-taps + pool-stride folding), f32 bias rows,
    fc weights with the PyTorch (C,H,W) flatten order and the last pool's x-downsample folded in."""
    sizes = params["sizes"]
    n_enc = len(channels) - 1
    to_w = lambda a: jnp.asarray(a, dtype=MXU_DTYPE)
    packed = []

    # encoder
    for k in range(n_enc):
        w, b = params["enc"][k]
        cout = channels[k + 1]
        wout = sizes[k][1]                                  # conv output x-grid
        wf, f = (sizes[0][1], 1) if k == 0 else (sizes[k - 1][1], 2)
        for dy in (-1, 0, 1):
            packed.append(to_w(_enc_band(w, wf, f, wout, dy)))
        brow = np.tile(np.asarray(b).astype(np.float32), wout).reshape(1, wout * cout)
        packed.append(jnp.asarray(brow))

    # fc1 (flatten order + last pool's x-downsample folded in)
    hb, wb = sizes[-1]
    ck = channels[-1]
    w_last = sizes[n_enc - 1][1]                            # last conv's output x-grid (= 2*wb)
    fc1_w = np.asarray(params["fc1_w"]).astype(np.float32)  # (latent, ck*hb*wb)
    A = np.zeros((hb * w_last * ck, latent_dim), np.float32)
    for yo in range(hb):
        for xf in range(0, w_last, 2):
            xo = xf // 2
            base = (yo * w_last + xf) * ck
            for c in range(ck):
                A[base + c, :] = fc1_w[:, c * hb * wb + yo * wb + xo]
    packed.append(to_w(A))
    packed.append(jnp.asarray(params["fc1_b"], jnp.float32).reshape(1, latent_dim))

    # fc2 (unflatten order folded in: output lanes ordered (y, x, c))
    fc2_w = np.asarray(params["fc2_w"]).astype(np.float32)  # (ck*hb*wb, latent)
    F2 = fc2_w.reshape(ck, hb, wb, latent_dim).transpose(1, 2, 0, 3)
    F2 = F2.reshape(hb * wb * ck, latent_dim).T
    packed.append(to_w(F2))
    b2 = np.asarray(params["fc2_b"]).astype(np.float32).reshape(ck, hb, wb)
    packed.append(jnp.asarray(b2.transpose(1, 2, 0).reshape(1, hb * wb * ck)))

    # decoder
    rev_c, rev_s = list(reversed(channels)), list(reversed(sizes))
    for j in range(n_enc):
        w, b = params["dec"][j]
        cout = rev_c[j + 1]
        wi = rev_s[j][1]
        packed.append(to_w(_dec_band(w, wi, 0, 0)))     # De  (phase a=0, dv=0)
        packed.append(to_w(_dec_band(w, wi, 1, 0)))     # Do0 (phase a=1, dv=0)
        packed.append(to_w(_dec_band(w, wi, 1, 1)))     # Do1 (phase a=1, dv=1)
        brow = np.tile(np.asarray(b).astype(np.float32), 2 * wi).reshape(1, 2 * wi * cout)
        packed.append(jnp.asarray(brow))

    return packed


# ----------------------------------------------------------------------------
# Forward wrapper: layout glue + ONE pallas_call with grid over the batch
# ----------------------------------------------------------------------------
@partial(jax.jit, static_argnames=("sizes", "channels"))
def autoencoder_forward(packed, x_nchw, *, sizes, channels):
    n, c0, h0, w0 = x_nchw.shape
    n_enc = len(channels) - 1
    hb, wb = sizes[-1]
    ck = channels[-1]
    enc_cfg = tuple((2 ** k, channels[k + 1]) for k in range(n_enc))         # (row stride, cout)
    dec_cfg = tuple(h0 // sizes[n_enc - j][0] for j in range(n_enc))         # input row stride

    kern = partial(_ae_kernel, H0=h0, enc_cfg=enc_cfg, dec_cfg=dec_cfg,
                   hb=hb, s0=h0 // hb, dec_lane=wb * ck)

    # rows = (n, y), lanes = (x, c): lane-dense activation layout
    x_flat = jnp.transpose(x_nchw, (0, 2, 3, 1)).reshape(n * h0, w0 * c0).astype(jnp.float32)

    in_specs = [pl.BlockSpec((h0, w0 * c0), lambda i: (i, 0))]
    in_specs += [pl.BlockSpec(p.shape, lambda i: (0, 0)) for p in packed]

    out = pl.pallas_call(
        kern,
        grid=(n,),
        out_shape=jax.ShapeDtypeStruct((n * h0, w0 * c0), jnp.float32),
        in_specs=in_specs,
        out_specs=pl.BlockSpec((h0, w0 * c0), lambda i: (i, 0)),
        compiler_params=pltpu.CompilerParams(dimension_semantics=("parallel",)),
    )(x_flat, *packed)

    # NCHW transpose kept in the wrapper (kernel output stays a dense (y, x*c) slab)
    return jnp.transpose(out.reshape(n, h0, w0, c0), (0, 3, 1, 2))


if __name__ == "__main__":
    key = jax.random.PRNGKey(0)
    k_x, k_p = jax.random.split(key)

    input_size = (16, 16)
    latent_dim = 32
    batch = 2

    n_levels = len(CHANNELS) - 1
    assert input_size[0] % (2 ** n_levels) == 0 and input_size[1] % (2 ** n_levels) == 0, \
        "input H/W must be divisible by 2^(num pooling stages)"

    x = jax.random.normal(k_x, (batch, CHANNELS[0], input_size[0], input_size[1]),
                          dtype=jnp.float32)
    params = init_params(input_size, latent_dim, CHANNELS, k_p)
    packed = pack_params(params, CHANNELS, latent_dim)

    sizes = tuple(params["sizes"])
    reconstructed = autoencoder_forward(packed, x, sizes=sizes, channels=CHANNELS)
    reconstructed = jax.block_until_ready(reconstructed)

    assert reconstructed.shape == x.shape, (
        f"Expected output shape {x.shape}, but got {reconstructed.shape}")
    assert reconstructed.dtype == jnp.float32
    print("KERNEL_OK")
</pallas_src>

<mosaic_0001>
module attributes {stable_mosaic.version = 11 : i64} {
  func.func @_ae_kernel(%arg0: i32, %arg1: memref<16x32xf32, #tpu.memory_space<vmem>>, %arg2: memref<32x256xbf16, #tpu.memory_space<vmem>>, %arg3: memref<32x256xbf16, #tpu.memory_space<vmem>>, %arg4: memref<32x256xbf16, #tpu.memory_space<vmem>>, %arg5: memref<1x256xf32, #tpu.memory_space<vmem>>, %arg6: memref<256x256xbf16, #tpu.memory_space<vmem>>, %arg7: memref<256x256xbf16, #tpu.memory_space<vmem>>, %arg8: memref<256x256xbf16, #tpu.memory_space<vmem>>, %arg9: memref<1x256xf32, #tpu.memory_space<vmem>>, %arg10: memref<256x256xbf16, #tpu.memory_space<vmem>>, %arg11: memref<256x256xbf16, #tpu.memory_space<vmem>>, %arg12: memref<256x256xbf16, #tpu.memory_space<vmem>>, %arg13: memref<1x256xf32, #tpu.memory_space<vmem>>, %arg14: memref<512x32xbf16, #tpu.memory_space<vmem>>, %arg15: memref<1x32xf32, #tpu.memory_space<vmem>>, %arg16: memref<32x256xbf16, #tpu.memory_space<vmem>>, %arg17: memref<1x256xf32, #tpu.memory_space<vmem>>, %arg18: memref<128x128xbf16, #tpu.memory_space<vmem>>, %arg19: memref<128x128xbf16, #tpu.memory_space<vmem>>, %arg20: memref<128x128xbf16, #tpu.memory_space<vmem>>, %arg21: memref<1x128xf32, #tpu.memory_space<vmem>>, %arg22: memref<128x128xbf16, #tpu.memory_space<vmem>>, %arg23: memref<128x128xbf16, #tpu.memory_space<vmem>>, %arg24: memref<128x128xbf16, #tpu.memory_space<vmem>>, %arg25: memref<1x128xf32, #tpu.memory_space<vmem>>, %arg26: memref<128x32xbf16, #tpu.memory_space<vmem>>, %arg27: memref<128x32xbf16, #tpu.memory_space<vmem>>, %arg28: memref<128x32xbf16, #tpu.memory_space<vmem>>, %arg29: memref<1x32xf32, #tpu.memory_space<vmem>>, %arg30: memref<16x32xf32, #tpu.memory_space<vmem>>) attributes {dimension_semantics = [#tpu.dimension_semantics<parallel>], iteration_bounds = array<i64: 2>, scalar_prefetch = 0 : i64, scratch_operands = 0 : i64, tpu.core_type = #tpu.core_type<tc>, window_params = [{transform_indices = @transform_0, window_bounds = array<i64: 16, 32>}, {pipeline_mode = #tpu.pipeline_mode<synchronous>, transform_indices = @transform_1, window_bounds = array<i64: 32, 256>}, {pipeline_mode = #tpu.pipeline_mode<synchronous>, transform_indices = @transform_2, window_bounds = array<i64: 32, 256>}, {pipeline_mode = #tpu.pipeline_mode<synchronous>, transform_indices = @transform_3, window_bounds = array<i64: 32, 256>}, {pipeline_mode = #tpu.pipeline_mode<synchronous>, transform_indices = @transform_4, window_bounds = array<i64: 1, 256>}, {pipeline_mode = #tpu.pipeline_mode<synchronous>, transform_indices = @transform_5, window_bounds = array<i64: 256, 256>}, {pipeline_mode = #tpu.pipeline_mode<synchronous>, transform_indices = @transform_6, window_bounds = array<i64: 256, 256>}, {pipeline_mode = #tpu.pipeline_mode<synchronous>, transform_indices = @transform_7, window_bounds = array<i64: 256, 256>}, {pipeline_mode = #tpu.pipeline_mode<synchronous>, transform_indices = @transform_8, window_bounds = array<i64: 1, 256>}, {pipeline_mode = #tpu.pipeline_mode<synchronous>, transform_indices = @transform_9, window_bounds = array<i64: 256, 256>}, {pipeline_mode = #tpu.pipeline_mode<synchronous>, transform_indices = @transform_10, window_bounds = array<i64: 256, 256>}, {pipeline_mode = #tpu.pipeline_mode<synchronous>, transform_indices = @transform_11, window_bounds = array<i64: 256, 256>}, {pipeline_mode = #tpu.pipeline_mode<synchronous>, transform_indices = @transform_12, window_bounds = array<i64: 1, 256>}, {pipeline_mode = #tpu.pipeline_mode<synchronous>, transform_indices = @transform_13, window_bounds = array<i64: 512, 32>}, {pipeline_mode = #tpu.pipeline_mode<synchronous>, transform_indices = @transform_14, window_bounds = array<i64: 1, 32>}, {pipeline_mode = #tpu.pipeline_mode<synchronous>, transform_indices = @transform_15, window_bounds = array<i64: 32, 256>}, {pipeline_mode = #tpu.pipeline_mode<synchronous>, transform_indices = @transform_16, window_bounds = array<i64: 1, 256>}, {pipeline_mode = #tpu.pipeline_mode<synchronous>, transform_indices = @transform_17, window_bounds = array<i64: 128, 128>}, {pipeline_mode = #tpu.pipeline_mode<synchronous>, transform_indices = @transform_18, window_bounds = array<i64: 128, 128>}, {pipeline_mode = #tpu.pipeline_mode<synchronous>, transform_indices = @transform_19, window_bounds = array<i64: 128, 128>}, {pipeline_mode = #tpu.pipeline_mode<synchronous>, transform_indices = @transform_20, window_bounds = array<i64: 1, 128>}, {pipeline_mode = #tpu.pipeline_mode<synchronous>, transform_indices = @transform_21, window_bounds = array<i64: 128, 128>}, {pipeline_mode = #tpu.pipeline_mode<synchronous>, transform_indices = @transform_22, window_bounds = array<i64: 128, 128>}, {pipeline_mode = #tpu.pipeline_mode<synchronous>, transform_indices = @transform_23, window_bounds = array<i64: 128, 128>}, {pipeline_mode = #tpu.pipeline_mode<synchronous>, transform_indices = @transform_24, window_bounds = array<i64: 1, 128>}, {pipeline_mode = #tpu.pipeline_mode<synchronous>, transform_indices = @transform_25, window_bounds = array<i64: 128, 32>}, {pipeline_mode = #tpu.pipeline_mode<synchronous>, transform_indices = @transform_26, window_bounds = array<i64: 128, 32>}, {pipeline_mode = #tpu.pipeline_mode<synchronous>, transform_indices = @transform_27, window_bounds = array<i64: 128, 32>}, {pipeline_mode = #tpu.pipeline_mode<synchronous>, transform_indices = @transform_28, window_bounds = array<i64: 1, 32>}, {transform_indices = @transform_29, window_bounds = array<i64: 16, 32>}]} {
    %0 = tpu.iota {dimensions = array<i32: 0>} : vector<16x1xi32>
    %c0 = arith.constant 0 : index
    %c0_0 = arith.constant 0 : index
    %1 = vector.load %arg1[%c0, %c0_0] : memref<16x32xf32, #tpu.memory_space<vmem>>, vector<16x32xf32>
    %c1_i32 = arith.constant 1 : i32
    %2 = vector.broadcast %c1_i32 : i32 to vector<16x1xi32>
    %3 = arith.cmpi sge, %0, %2 : vector<16x1xi32>
    %c1_i32_1 = arith.constant 1 : i32
    %4 = tpu.dynamic_rotate %1 by %c1_i32_1 dim 0 : vector<16x32xf32>, i32 -> vector<16x32xf32>
    %cst = arith.constant 0.000000e+00 : f32
    %5 = vector.shape_cast %3 : vector<16x1xi1> to vector<16x1xi1>
    %6 = vector.broadcast %5 : vector<16x1xi1> to vector<16x32xi1>
    %7 = vector.broadcast %cst : f32 to vector<16x32xf32>
    %8 = arith.select %6, %4, %7 : vector<16x32xi1>, vector<16x32xf32>
    %c15_i32 = arith.constant 15 : i32
    %9 = vector.broadcast %c15_i32 : i32 to vector<16x1xi32>
    %10 = arith.cmpi slt, %0, %9 : vector<16x1xi32>
    %c15_i32_2 = arith.constant 15 : i32
    %11 = tpu.dynamic_rotate %1 by %c15_i32_2 dim 0 : vector<16x32xf32>, i32 -> vector<16x32xf32>
    %cst_3 = arith.constant 0.000000e+00 : f32
    %12 = vector.shape_cast %10 : vector<16x1xi1> to vector<16x1xi1>
    %13 = vector.broadcast %12 : vector<16x1xi1> to vector<16x32xi1>
    %14 = vector.broadcast %cst_3 : f32 to vector<16x32xf32>
    %15 = arith.select %13, %11, %14 : vector<16x32xi1>, vector<16x32xf32>
    %16 = arith.truncf %8 : vector<16x32xf32> to vector<16x32xbf16>
    %c0_4 = arith.constant 0 : index
    %c0_5 = arith.constant 0 : index
    %17 = vector.load %arg2[%c0_4, %c0_5] : memref<32x256xbf16, #tpu.memory_space<vmem>>, vector<32x256xbf16>
    %cst_6 = arith.constant dense<0.000000e+00> : vector<16x256xf32>
    %18 = tpu.matmul %16, %17, %cst_6 {dimension_numbers = #tpu.dot_dimension_numbers<[1], [0], [0], [1], [0, 0, 1, 1], [], []>} : vector<16x32xbf16>, vector<32x256xbf16>, vector<16x256xf32> -> vector<16x256xf32>
    %19 = arith.truncf %1 : vector<16x32xf32> to vector<16x32xbf16>
    %c0_7 = arith.constant 0 : index
    %c0_8 = arith.constant 0 : index
    %20 = vector.load %arg3[%c0_7, %c0_8] : memref<32x256xbf16, #tpu.memory_space<vmem>>, vector<32x256xbf16>
    %cst_9 = arith.constant dense<0.000000e+00> : vector<16x256xf32>
    %21 = tpu.matmul %19, %20, %cst_9 {dimension_numbers = #tpu.dot_dimension_numbers<[1], [0], [0], [1], [0, 0, 1, 1], [], []>} : vector<16x32xbf16>, vector<32x256xbf16>, vector<16x256xf32> -> vector<16x256xf32>
    %22 = arith.addf %18, %21 : vector<16x256xf32>
    %23 = arith.truncf %15 : vector<16x32xf32> to vector<16x32xbf16>
    %c0_10 = arith.constant 0 : index
    %c0_11 = arith.constant 0 : index
    %24 = vector.load %arg4[%c0_10, %c0_11] : memref<32x256xbf16, #tpu.memory_space<vmem>>, vector<32x256xbf16>
    %cst_12 = arith.constant dense<0.000000e+00> : vector<16x256xf32>
    %25 = tpu.matmul %23, %24, %cst_12 {dimension_numbers = #tpu.dot_dimension_numbers<[1], [0], [0], [1], [0, 0, 1, 1], [], []>} : vector<16x32xbf16>, vector<32x256xbf16>, vector<16x256xf32> -> vector<16x256xf32>
    %26 = arith.addf %22, %25 : vector<16x256xf32>
    %c0_13 = arith.constant 0 : index
    %c0_14 = arith.constant 0 : index
    %27 = vector.load %arg5[%c0_13, %c0_14] : memref<1x256xf32, #tpu.memory_space<vmem>>, vector<1x256xf32>
    %28 = vector.broadcast %27 : vector<1x256xf32> to vector<16x256xf32>
    %29 = arith.addf %26, %28 : vector<16x256xf32>
    %cst_15 = arith.constant 0.000000e+00 : f32
    %30 = vector.broadcast %cst_15 : f32 to vector<16x256xf32>
    %31 = arith.maximumf %29, %30 : vector<16x256xf32>
    %c15_i32_16 = arith.constant 15 : i32
    %32 = tpu.dynamic_rotate %31 by %c15_i32_16 dim 0 : vector<16x256xf32>, i32 -> vector<16x256xf32>
    %33 = arith.maximumf %31, %32 : vector<16x256xf32>
    %c240_i32 = arith.constant 240 : i32
    %34 = tpu.dynamic_rotate %33 by %c240_i32 dim 1 : vector<16x256xf32>, i32 -> vector<16x256xf32>
    %35 = arith.maximumf %33, %34 : vector<16x256xf32>
    %c2_i32 = arith.constant 2 : i32
    %36 = vector.broadcast %c2_i32 : i32 to vector<16x1xi32>
    %37 = arith.cmpi sge, %0, %36 : vector<16x1xi32>
    %c2_i32_17 = arith.constant 2 : i32
    %38 = tpu.dynamic_rotate %35 by %c2_i32_17 dim 0 : vector<16x256xf32>, i32 -> vector<16x256xf32>
    %cst_18 = arith.constant 0.000000e+00 : f32
    %39 = vector.shape_cast %37 : vector<16x1xi1> to vector<16x1xi1>
    %40 = vector.broadcast %39 : vector<16x1xi1> to vector<16x256xi1>
    %41 = vector.broadcast %cst_18 : f32 to vector<16x256xf32>
    %42 = arith.select %40, %38, %41 : vector<16x256xi1>, vector<16x256xf32>
    %c14_i32 = arith.constant 14 : i32
    %43 = vector.broadcast %c14_i32 : i32 to vector<16x1xi32>
    %44 = arith.cmpi slt, %0, %43 : vector<16x1xi32>
    %c14_i32_19 = arith.constant 14 : i32
    %45 = tpu.dynamic_rotate %35 by %c14_i32_19 dim 0 : vector<16x256xf32>, i32 -> vector<16x256xf32>
    %cst_20 = arith.constant 0.000000e+00 : f32
    %46 = vector.shape_cast %44 : vector<16x1xi1> to vector<16x1xi1>
    %47 = vector.broadcast %46 : vector<16x1xi1> to vector<16x256xi1>
    %48 = vector.broadcast %cst_20 : f32 to vector<16x256xf32>
    %49 = arith.select %47, %45, %48 : vector<16x256xi1>, vector<16x256xf32>
    %50 = arith.truncf %42 : vector<16x256xf32> to vector<16x256xbf16>
    %c0_21 = arith.constant 0 : index
    %c0_22 = arith.constant 0 : index
    %51 = vector.load %arg6[%c0_21, %c0_22] : memref<256x256xbf16, #tpu.memory_space<vmem>>, vector<256x256xbf16>
    %cst_23 = arith.constant dense<0.000000e+00> : vector<16x256xf32>
    %52 = tpu.matmul %50, %51, %cst_23 {dimension_numbers = #tpu.dot_dimension_numbers<[1], [0], [0], [1], [0, 0, 1, 1], [], []>} : vector<16x256xbf16>, vector<256x256xbf16>, vector<16x256xf32> -> vector<16x256xf32>
    %53 = arith.truncf %35 : vector<16x256xf32> to vector<16x256xbf16>
    %c0_24 = arith.constant 0 : index
    %c0_25 = arith.constant 0 : index
    %54 = vector.load %arg7[%c0_24, %c0_25] : memref<256x256xbf16, #tpu.memory_space<vmem>>, vector<256x256xbf16>
    %cst_26 = arith.constant dense<0.000000e+00> : vector<16x256xf32>
    %55 = tpu.matmul %53, %54, %cst_26 {dimension_numbers = #tpu.dot_dimension_numbers<[1], [0], [0], [1], [0, 0, 1, 1], [], []>} : vector<16x256xbf16>, vector<256x256xbf16>, vector<16x256xf32> -> vector<16x256xf32>
    %56 = arith.addf %52, %55 : vector<16x256xf32>
    %57 = arith.truncf %49 : vector<16x256xf32> to vector<16x256xbf16>
    %c0_27 = arith.constant 0 : index
    %c0_28 = arith.constant 0 : index
    %58 = vector.load %arg8[%c0_27, %c0_28] : memref<256x256xbf16, #tpu.memory_space<vmem>>, vector<256x256xbf16>
    %cst_29 = arith.constant dense<0.000000e+00> : vector<16x256xf32>
    %59 = tpu.matmul %57, %58, %cst_29 {dimension_numbers = #tpu.dot_dimension_numbers<[1], [0], [0], [1], [0, 0, 1, 1], [], []>} : vector<16x256xbf16>, vector<256x256xbf16>, vector<16x256xf32> -> vector<16x256xf32>
    %60 = arith.addf %56, %59 : vector<16x256xf32>
    %c0_30 = arith.constant 0 : index
    %c0_31 = arith.constant 0 : index
    %61 = vector.load %arg9[%c0_30, %c0_31] : memref<1x256xf32, #tpu.memory_space<vmem>>, vector<1x256xf32>
    %62 = vector.broadcast %61 : vector<1x256xf32> to vector<16x256xf32>
    %63 = arith.addf %60, %62 : vector<16x256xf32>
    %cst_32 = arith.constant 0.000000e+00 : f32
    %64 = vector.broadcast %cst_32 : f32 to vector<16x256xf32>
    %65 = arith.maximumf %63, %64 : vector<16x256xf32>
    %c14_i32_33 = arith.constant 14 : i32
    %66 = tpu.dynamic_rotate %65 by %c14_i32_33 dim 0 : vector<16x256xf32>, i32 -> vector<16x256xf32>
    %67 = arith.maximumf %65, %66 : vector<16x256xf32>
    %c224_i32 = arith.constant 224 : i32
    %68 = tpu.dynamic_rotate %67 by %c224_i32 dim 1 : vector<16x256xf32>, i32 -> vector<16x256xf32>
    %69 = arith.maximumf %67, %68 : vector<16x256xf32>
    %c4_i32 = arith.constant 4 : i32
    %70 = vector.broadcast %c4_i32 : i32 to vector<16x1xi32>
    %71 = arith.cmpi sge, %0, %70 : vector<16x1xi32>
    %c4_i32_34 = arith.constant 4 : i32
    %72 = tpu.dynamic_rotate %69 by %c4_i32_34 dim 0 : vector<16x256xf32>, i32 -> vector<16x256xf32>
    %cst_35 = arith.constant 0.000000e+00 : f32
    %73 = vector.shape_cast %71 : vector<16x1xi1> to vector<16x1xi1>
    %74 = vector.broadcast %73 : vector<16x1xi1> to vector<16x256xi1>
    %75 = vector.broadcast %cst_35 : f32 to vector<16x256xf32>
    %76 = arith.select %74, %72, %75 : vector<16x256xi1>, vector<16x256xf32>
    %c12_i32 = arith.constant 12 : i32
    %77 = vector.broadcast %c12_i32 : i32 to vector<16x1xi32>
    %78 = arith.cmpi slt, %0, %77 : vector<16x1xi32>
    %c12_i32_36 = arith.constant 12 : i32
    %79 = tpu.dynamic_rotate %69 by %c12_i32_36 dim 0 : vector<16x256xf32>, i32 -> vector<16x256xf32>
    %cst_37 = arith.constant 0.000000e+00 : f32
    %80 = vector.shape_cast %78 : vector<16x1xi1> to vector<16x1xi1>
    %81 = vector.broadcast %80 : vector<16x1xi1> to vector<16x256xi1>
    %82 = vector.broadcast %cst_37 : f32 to vector<16x256xf32>
    %83 = arith.select %81, %79, %82 : vector<16x256xi1>, vector<16x256xf32>
    %84 = arith.truncf %76 : vector<16x256xf32> to vector<16x256xbf16>
    %c0_38 = arith.constant 0 : index
    %c0_39 = arith.constant 0 : index
    %85 = vector.load %arg10[%c0_38, %c0_39] : memref<256x256xbf16, #tpu.memory_space<vmem>>, vector<256x256xbf16>
    %cst_40 = arith.constant dense<0.000000e+00> : vector<16x256xf32>
    %86 = tpu.matmul %84, %85, %cst_40 {dimension_numbers = #tpu.dot_dimension_numbers<[1], [0], [0], [1], [0, 0, 1, 1], [], []>} : vector<16x256xbf16>, vector<256x256xbf16>, vector<16x256xf32> -> vector<16x256xf32>
    %87 = arith.truncf %69 : vector<16x256xf32> to vector<16x256xbf16>
    %c0_41 = arith.constant 0 : index
    %c0_42 = arith.constant 0 : index
    %88 = vector.load %arg11[%c0_41, %c0_42] : memref<256x256xbf16, #tpu.memory_space<vmem>>, vector<256x256xbf16>
    %cst_43 = arith.constant dense<0.000000e+00> : vector<16x256xf32>
    %89 = tpu.matmul %87, %88, %cst_43 {dimension_numbers = #tpu.dot_dimension_numbers<[1], [0], [0], [1], [0, 0, 1, 1], [], []>} : vector<16x256xbf16>, vector<256x256xbf16>, vector<16x256xf32> -> vector<16x256xf32>
    %90 = arith.addf %86, %89 : vector<16x256xf32>
    %91 = arith.truncf %83 : vector<16x256xf32> to vector<16x256xbf16>
    %c0_44 = arith.constant 0 : index
    %c0_45 = arith.constant 0 : index
    %92 = vector.load %arg12[%c0_44, %c0_45] : memref<256x256xbf16, #tpu.memory_space<vmem>>, vector<256x256xbf16>
    %cst_46 = arith.constant dense<0.000000e+00> : vector<16x256xf32>
    %93 = tpu.matmul %91, %92, %cst_46 {dimension_numbers = #tpu.dot_dimension_numbers<[1], [0], [0], [1], [0, 0, 1, 1], [], []>} : vector<16x256xbf16>, vector<256x256xbf16>, vector<16x256xf32> -> vector<16x256xf32>
    %94 = arith.addf %90, %93 : vector<16x256xf32>
    %c0_47 = arith.constant 0 : index
    %c0_48 = arith.constant 0 : index
    %95 = vector.load %arg13[%c0_47, %c0_48] : memref<1x256xf32, #tpu.memory_space<vmem>>, vector<1x256xf32>
    %96 = vector.broadcast %95 : vector<1x256xf32> to vector<16x256xf32>
    %97 = arith.addf %94, %96 : vector<16x256xf32>
    %cst_49 = arith.constant 0.000000e+00 : f32
    %98 = vector.broadcast %cst_49 : f32 to vector<16x256xf32>
    %99 = arith.maximumf %97, %98 : vector<16x256xf32>
    %c12_i32_50 = arith.constant 12 : i32
    %100 = tpu.dynamic_rotate %99 by %c12_i32_50 dim 0 : vector<16x256xf32>, i32 -> vector<16x256xf32>
    %101 = arith.maximumf %99, %100 : vector<16x256xf32>
    %c192_i32 = arith.constant 192 : i32
    %102 = tpu.dynamic_rotate %101 by %c192_i32 dim 1 : vector<16x256xf32>, i32 -> vector<16x256xf32>
    %103 = arith.maximumf %101, %102 : vector<16x256xf32>
    %104 = vector.extract_strided_slice %103 {offsets = [0, 0], sizes = [1, 256], strides = [1, 1]} : vector<16x256xf32> to vector<1x256xf32>
    %105 = vector.extract_strided_slice %103 {offsets = [8, 0], sizes = [1, 256], strides = [1, 1]} : vector<16x256xf32> to vector<1x256xf32>
    %106 = tpu.concatenate %104, %105 in 1 : vector<1x256xf32>, vector<1x256xf32> -> vector<1x512xf32>
    %107 = arith.truncf %106 : vector<1x512xf32> to vector<1x512xbf16>
    %c0_51 = arith.constant 0 : index
    %c0_52 = arith.constant 0 : index
    %108 = vector.load %arg14[%c0_51, %c0_52] : memref<512x32xbf16, #tpu.memory_space<vmem>>, vector<512x32xbf16>
    %cst_53 = arith.constant dense<0.000000e+00> : vector<1x32xf32>
    %109 = tpu.matmul %107, %108, %cst_53 {dimension_numbers = #tpu.dot_dimension_numbers<[1], [0], [0], [1], [0, 0, 1, 1], [], []>} : vector<1x512xbf16>, vector<512x32xbf16>, vector<1x32xf32> -> vector<1x32xf32>
    %c0_54 = arith.constant 0 : index
    %c0_55 = arith.constant 0 : index
    %110 = vector.load %arg15[%c0_54, %c0_55] : memref<1x32xf32, #tpu.memory_space<vmem>>, vector<1x32xf32>
    %111 = arith.addf %109, %110 : vector<1x32xf32>
    %112 = arith.truncf %111 : vector<1x32xf32> to vector<1x32xbf16>
    %c0_56 = arith.constant 0 : index
    %c0_57 = arith.constant 0 : index
    %113 = vector.load %arg16[%c0_56, %c0_57] : memref<32x256xbf16, #tpu.memory_space<vmem>>, vector<32x256xbf16>
    %cst_58 = arith.constant dense<0.000000e+00> : vector<1x256xf32>
    %114 = tpu.matmul %112, %113, %cst_58 {dimension_numbers = #tpu.dot_dimension_numbers<[1], [0], [0], [1], [0, 0, 1, 1], [], []>} : vector<1x32xbf16>, vector<32x256xbf16>, vector<1x256xf32> -> vector<1x256xf32>
    %c0_59 = arith.constant 0 : index
    %c0_60 = arith.constant 0 : index
    %115 = vector.load %arg17[%c0_59, %c0_60] : memref<1x256xf32, #tpu.memory_space<vmem>>, vector<1x256xf32>
    %116 = arith.addf %114, %115 : vector<1x256xf32>
    %cst_61 = arith.constant 0.000000e+00 : f32
    %117 = vector.broadcast %cst_61 : f32 to vector<7x128xf32>
    %118 = vector.extract_strided_slice %116 {offsets = [0, 0], sizes = [1, 128], strides = [1, 1]} : vector<1x256xf32> to vector<1x128xf32>
    %119 = vector.extract_strided_slice %116 {offsets = [0, 128], sizes = [1, 128], strides = [1, 1]} : vector<1x256xf32> to vector<1x128xf32>
    %120 = tpu.concatenate %118, %117, %119, %117 in 0 : vector<1x128xf32>, vector<7x128xf32>, vector<1x128xf32>, vector<7x128xf32> -> vector<16x128xf32>
    %c8_i32 = arith.constant 8 : i32
    %121 = vector.broadcast %c8_i32 : i32 to vector<16x1xi32>
    %122 = arith.cmpi slt, %0, %121 : vector<16x1xi32>
    %c8_i32_62 = arith.constant 8 : i32
    %123 = tpu.dynamic_rotate %120 by %c8_i32_62 dim 0 : vector<16x128xf32>, i32 -> vector<16x128xf32>
    %cst_63 = arith.constant 0.000000e+00 : f32
    %124 = vector.shape_cast %122 : vector<16x1xi1> to vector<16x1xi1>
    %125 = vector.broadcast %124 : vector<16x1xi1> to vector<16x128xi1>
    %126 = vector.broadcast %cst_63 : f32 to vector<16x128xf32>
    %127 = arith.select %125, %123, %126 : vector<16x128xi1>, vector<16x128xf32>
    %128 = arith.truncf %120 : vector<16x128xf32> to vector<16x128xbf16>
    %c0_64 = arith.constant 0 : index
    %c0_65 = arith.constant 0 : index
    %129 = vector.load %arg18[%c0_64, %c0_65] : memref<128x128xbf16, #tpu.memory_space<vmem>>, vector<128x128xbf16>
    %cst_66 = arith.constant dense<0.000000e+00> : vector<16x128xf32>
    %130 = tpu.matmul %128, %129, %cst_66 {dimension_numbers = #tpu.dot_dimension_numbers<[1], [0], [0], [1], [0, 0, 1, 1], [], []>} : vector<16x128xbf16>, vector<128x128xbf16>, vector<16x128xf32> -> vector<16x128xf32>
    %c0_67 = arith.constant 0 : index
    %c0_68 = arith.constant 0 : index
    %131 = vector.load %arg21[%c0_67, %c0_68] : memref<1x128xf32, #tpu.memory_space<vmem>>, vector<1x128xf32>
    %132 = vector.broadcast %131 : vector<1x128xf32> to vector<16x128xf32>
    %133 = arith.addf %130, %132 : vector<16x128xf32>
    %cst_69 = arith.constant 0.000000e+00 : f32
    %134 = vector.broadcast %cst_69 : f32 to vector<16x128xf32>
    %135 = arith.maximumf %133, %134 : vector<16x128xf32>
    %136 = arith.truncf %120 : vector<16x128xf32> to vector<16x128xbf16>
    %c0_70 = arith.constant 0 : index
    %c0_71 = arith.constant 0 : index
    %137 = vector.load %arg19[%c0_70, %c0_71] : memref<128x128xbf16, #tpu.memory_space<vmem>>, vector<128x128xbf16>
    %cst_72 = arith.constant dense<0.000000e+00> : vector<16x128xf32>
    %138 = tpu.matmul %136, %137, %cst_72 {dimension_numbers = #tpu.dot_dimension_numbers<[1], [0], [0], [1], [0, 0, 1, 1], [], []>} : vector<16x128xbf16>, vector<128x128xbf16>, vector<16x128xf32> -> vector<16x128xf32>
    %139 = arith.truncf %127 : vector<16x128xf32> to vector<16x128xbf16>
    %c0_73 = arith.constant 0 : index
    %c0_74 = arith.constant 0 : index
    %140 = vector.load %arg20[%c0_73, %c0_74] : memref<128x128xbf16, #tpu.memory_space<vmem>>, vector<128x128xbf16>
    %cst_75 = arith.constant dense<0.000000e+00> : vector<16x128xf32>
    %141 = tpu.matmul %139, %140, %cst_75 {dimension_numbers = #tpu.dot_dimension_numbers<[1], [0], [0], [1], [0, 0, 1, 1], [], []>} : vector<16x128xbf16>, vector<128x128xbf16>, vector<16x128xf32> -> vector<16x128xf32>
    %142 = arith.addf %138, %141 : vector<16x128xf32>
    %c0_76 = arith.constant 0 : index
    %c0_77 = arith.constant 0 : index
    %143 = vector.load %arg21[%c0_76, %c0_77] : memref<1x128xf32, #tpu.memory_space<vmem>>, vector<1x128xf32>
    %144 = vector.broadcast %143 : vector<1x128xf32> to vector<16x128xf32>
    %145 = arith.addf %142, %144 : vector<16x128xf32>
    %cst_78 = arith.constant 0.000000e+00 : f32
    %146 = vector.broadcast %cst_78 : f32 to vector<16x128xf32>
    %147 = arith.maximumf %145, %146 : vector<16x128xf32>
    %c8_i32_79 = arith.constant 8 : i32
    %c0_i32 = arith.constant 0 : i32
    %148 = arith.cmpi eq, %c8_i32_79, %c0_i32 : i32
    %c1_i32_80 = arith.constant 1 : i32
    %149 = arith.select %148, %c1_i32_80, %c8_i32_79 : i32
    %150 = vector.broadcast %149 : i32 to vector<16x1xi32>
    %151 = arith.remsi %0, %150 : vector<16x1xi32>
    %c0_i32_81 = arith.constant 0 : i32
    %152 = vector.broadcast %c0_i32_81 : i32 to vector<16x1xi32>
    %153 = arith.cmpi ne, %151, %152 : vector<16x1xi32>
    %c0_i32_82 = arith.constant 0 : i32
    %154 = vector.broadcast %c0_i32_82 : i32 to vector<16x1xi32>
    %155 = arith.cmpi slt, %151, %154 : vector<16x1xi32>
    %c0_i32_83 = arith.constant 0 : i32
    %156 = arith.cmpi slt, %149, %c0_i32_83 : i32
    %157 = vector.broadcast %156 : i1 to vector<16x1xi1>
    %158 = vector.broadcast %157 : vector<16x1xi1> to vector<16x1xi1>
    %159 = arith.xori %155, %158 : vector<16x1xi1>
    %160 = arith.andi %159, %153 : vector<16x1xi1>
    %161 = vector.broadcast %149 : i32 to vector<16x1xi32>
    %162 = arith.addi %151, %161 : vector<16x1xi32>
    %163 = arith.select %160, %162, %151 : vector<16x1xi1>, vector<16x1xi32>
    %c4_i32_84 = arith.constant 4 : i32
    %164 = vector.broadcast %c4_i32_84 : i32 to vector<16x1xi32>
    %165 = arith.cmpi sge, %163, %164 : vector<16x1xi32>
    %c4_i32_85 = arith.constant 4 : i32
    %166 = tpu.dynamic_rotate %147 by %c4_i32_85 dim 0 : vector<16x128xf32>, i32 -> vector<16x128xf32>
    %167 = vector.shape_cast %165 : vector<16x1xi1> to vector<16x1xi1>
    %168 = vector.broadcast %167 : vector<16x1xi1> to vector<16x128xi1>
    %169 = arith.select %168, %166, %135 : vector<16x128xi1>, vector<16x128xf32>
    %c12_i32_86 = arith.constant 12 : i32
    %170 = vector.broadcast %c12_i32_86 : i32 to vector<16x1xi32>
    %171 = arith.cmpi slt, %0, %170 : vector<16x1xi32>
    %c12_i32_87 = arith.constant 12 : i32
    %172 = tpu.dynamic_rotate %169 by %c12_i32_87 dim 0 : vector<16x128xf32>, i32 -> vector<16x128xf32>
    %cst_88 = arith.constant 0.000000e+00 : f32
    %173 = vector.shape_cast %171 : vector<16x1xi1> to vector<16x1xi1>
    %174 = vector.broadcast %173 : vector<16x1xi1> to vector<16x128xi1>
    %175 = vector.broadcast %cst_88 : f32 to vector<16x128xf32>
    %176 = arith.select %174, %172, %175 : vector<16x128xi1>, vector<16x128xf32>
    %177 = arith.truncf %169 : vector<16x128xf32> to vector<16x128xbf16>
    %c0_89 = arith.constant 0 : index
    %c0_90 = arith.constant 0 : index
    %178 = vector.load %arg22[%c0_89, %c0_90] : memref<128x128xbf16, #tpu.memory_space<vmem>>, vector<128x128xbf16>
    %cst_91 = arith.constant dense<0.000000e+00> : vector<16x128xf32>
    %179 = tpu.matmul %177, %178, %cst_91 {dimension_numbers = #tpu.dot_dimension_numbers<[1], [0], [0], [1], [0, 0, 1, 1], [], []>} : vector<16x128xbf16>, vector<128x128xbf16>, vector<16x128xf32> -> vector<16x128xf32>
    %c0_92 = arith.constant 0 : index
    %c0_93 = arith.constant 0 : index
    %180 = vector.load %arg25[%c0_92, %c0_93] : memref<1x128xf32, #tpu.memory_space<vmem>>, vector<1x128xf32>
    %181 = vector.broadcast %180 : vector<1x128xf32> to vector<16x128xf32>
    %182 = arith.addf %179, %181 : vector<16x128xf32>
    %cst_94 = arith.constant 0.000000e+00 : f32
    %183 = vector.broadcast %cst_94 : f32 to vector<16x128xf32>
    %184 = arith.maximumf %182, %183 : vector<16x128xf32>
    %185 = arith.truncf %169 : vector<16x128xf32> to vector<16x128xbf16>
    %c0_95 = arith.constant 0 : index
    %c0_96 = arith.constant 0 : index
    %186 = vector.load %arg23[%c0_95, %c0_96] : memref<128x128xbf16, #tpu.memory_space<vmem>>, vector<128x128xbf16>
    %cst_97 = arith.constant dense<0.000000e+00> : vector<16x128xf32>
    %187 = tpu.matmul %185, %186, %cst_97 {dimension_numbers = #tpu.dot_dimension_numbers<[1], [0], [0], [1], [0, 0, 1, 1], [], []>} : vector<16x128xbf16>, vector<128x128xbf16>, vector<16x128xf32> -> vector<16x128xf32>
    %188 = arith.truncf %176 : vector<16x128xf32> to vector<16x128xbf16>
    %c0_98 = arith.constant 0 : index
    %c0_99 = arith.constant 0 : index
    %189 = vector.load %arg24[%c0_98, %c0_99] : memref<128x128xbf16, #tpu.memory_space<vmem>>, vector<128x128xbf16>
    %cst_100 = arith.constant dense<0.000000e+00> : vector<16x128xf32>
    %190 = tpu.matmul %188, %189, %cst_100 {dimension_numbers = #tpu.dot_dimension_numbers<[1], [0], [0], [1], [0, 0, 1, 1], [], []>} : vector<16x128xbf16>, vector<128x128xbf16>, vector<16x128xf32> -> vector<16x128xf32>
    %191 = arith.addf %187, %190 : vector<16x128xf32>
    %c0_101 = arith.constant 0 : index
    %c0_102 = arith.constant 0 : index
    %192 = vector.load %arg25[%c0_101, %c0_102] : memref<1x128xf32, #tpu.memory_space<vmem>>, vector<1x128xf32>
    %193 = vector.broadcast %192 : vector<1x128xf32> to vector<16x128xf32>
    %194 = arith.addf %191, %193 : vector<16x128xf32>
    %cst_103 = arith.constant 0.000000e+00 : f32
    %195 = vector.broadcast %cst_103 : f32 to vector<16x128xf32>
    %196 = arith.maximumf %194, %195 : vector<16x128xf32>
    %c4_i32_104 = arith.constant 4 : i32
    %c0_i32_105 = arith.constant 0 : i32
    %197 = arith.cmpi eq, %c4_i32_104, %c0_i32_105 : i32
    %c1_i32_106 = arith.constant 1 : i32
    %198 = arith.select %197, %c1_i32_106, %c4_i32_104 : i32
    %199 = vector.broadcast %198 : i32 to vector<16x1xi32>
    %200 = arith.remsi %0, %199 : vector<16x1xi32>
    %c0_i32_107 = arith.constant 0 : i32
    %201 = vector.broadcast %c0_i32_107 : i32 to vector<16x1xi32>
    %202 = arith.cmpi ne, %200, %201 : vector<16x1xi32>
    %c0_i32_108 = arith.constant 0 : i32
    %203 = vector.broadcast %c0_i32_108 : i32 to vector<16x1xi32>
    %204 = arith.cmpi slt, %200, %203 : vector<16x1xi32>
    %c0_i32_109 = arith.constant 0 : i32
    %205 = arith.cmpi slt, %198, %c0_i32_109 : i32
    %206 = vector.broadcast %205 : i1 to vector<16x1xi1>
    %207 = vector.broadcast %206 : vector<16x1xi1> to vector<16x1xi1>
    %208 = arith.xori %204, %207 : vector<16x1xi1>
    %209 = arith.andi %208, %202 : vector<16x1xi1>
    %210 = vector.broadcast %198 : i32 to vector<16x1xi32>
    %211 = arith.addi %200, %210 : vector<16x1xi32>
    %212 = arith.select %209, %211, %200 : vector<16x1xi1>, vector<16x1xi32>
    %c2_i32_110 = arith.constant 2 : i32
    %213 = vector.broadcast %c2_i32_110 : i32 to vector<16x1xi32>
    %214 = arith.cmpi sge, %212, %213 : vector<16x1xi32>
    %c2_i32_111 = arith.constant 2 : i32
    %215 = tpu.dynamic_rotate %196 by %c2_i32_111 dim 0 : vector<16x128xf32>, i32 -> vector<16x128xf32>
    %216 = vector.shape_cast %214 : vector<16x1xi1> to vector<16x1xi1>
    %217 = vector.broadcast %216 : vector<16x1xi1> to vector<16x128xi1>
    %218 = arith.select %217, %215, %184 : vector<16x128xi1>, vector<16x128xf32>
    %c14_i32_112 = arith.constant 14 : i32
    %219 = vector.broadcast %c14_i32_112 : i32 to vector<16x1xi32>
    %220 = arith.cmpi slt, %0, %219 : vector<16x1xi32>
    %c14_i32_113 = arith.constant 14 : i32
    %221 = tpu.dynamic_rotate %218 by %c14_i32_113 dim 0 : vector<16x128xf32>, i32 -> vector<16x128xf32>
    %cst_114 = arith.constant 0.000000e+00 : f32
    %222 = vector.shape_cast %220 : vector<16x1xi1> to vector<16x1xi1>
    %223 = vector.broadcast %222 : vector<16x1xi1> to vector<16x128xi1>
    %224 = vector.broadcast %cst_114 : f32 to vector<16x128xf32>
    %225 = arith.select %223, %221, %224 : vector<16x128xi1>, vector<16x128xf32>
    %226 = arith.truncf %218 : vector<16x128xf32> to vector<16x128xbf16>
    %c0_115 = arith.constant 0 : index
    %c0_116 = arith.constant 0 : index
    %227 = vector.load %arg26[%c0_115, %c0_116] : memref<128x32xbf16, #tpu.memory_space<vmem>>, vector<128x32xbf16>
    %cst_117 = arith.constant dense<0.000000e+00> : vector<16x32xf32>
    %228 = tpu.matmul %226, %227, %cst_117 {dimension_numbers = #tpu.dot_dimension_numbers<[1], [0], [0], [1], [0, 0, 1, 1], [], []>} : vector<16x128xbf16>, vector<128x32xbf16>, vector<16x32xf32> -> vector<16x32xf32>
    %c0_118 = arith.constant 0 : index
    %c0_119 = arith.constant 0 : index
    %229 = vector.load %arg29[%c0_118, %c0_119] : memref<1x32xf32, #tpu.memory_space<vmem>>, vector<1x32xf32>
    %230 = vector.broadcast %229 : vector<1x32xf32> to vector<16x32xf32>
    %231 = arith.addf %228, %230 : vector<16x32xf32>
    %cst_120 = arith.constant 0.000000e+00 : f32
    %232 = vector.broadcast %cst_120 : f32 to vector<16x32xf32>
    %233 = arith.maximumf %231, %232 : vector<16x32xf32>
    %234 = arith.truncf %218 : vector<16x128xf32> to vector<16x128xbf16>
    %c0_121 = arith.constant 0 : index
    %c0_122 = arith.constant 0 : index
    %235 = vector.load %arg27[%c0_121, %c0_122] : memref<128x32xbf16, #tpu.memory_space<vmem>>, vector<128x32xbf16>
    %cst_123 = arith.constant dense<0.000000e+00> : vector<16x32xf32>
    %236 = tpu.matmul %234, %235, %cst_123 {dimension_numbers = #tpu.dot_dimension_numbers<[1], [0], [0], [1], [0, 0, 1, 1], [], []>} : vector<16x128xbf16>, vector<128x32xbf16>, vector<16x32xf32> -> vector<16x32xf32>
    %237 = arith.truncf %225 : vector<16x128xf32> to vector<16x128xbf16>
    %c0_124 = arith.constant 0 : index
    %c0_125 = arith.constant 0 : index
    %238 = vector.load %arg28[%c0_124, %c0_125] : memref<128x32xbf16, #tpu.memory_space<vmem>>, vector<128x32xbf16>
    %cst_126 = arith.constant dense<0.000000e+00> : vector<16x32xf32>
    %239 = tpu.matmul %237, %238, %cst_126 {dimension_numbers = #tpu.dot_dimension_numbers<[1], [0], [0], [1], [0, 0, 1, 1], [], []>} : vector<16x128xbf16>, vector<128x32xbf16>, vector<16x32xf32> -> vector<16x32xf32>
    %240 = arith.addf %236, %239 : vector<16x32xf32>
    %c0_127 = arith.constant 0 : index
    %c0_128 = arith.constant 0 : index
    %241 = vector.load %arg29[%c0_127, %c0_128] : memref<1x32xf32, #tpu.memory_space<vmem>>, vector<1x32xf32>
    %242 = vector.broadcast %241 : vector<1x32xf32> to vector<16x32xf32>
    %243 = arith.addf %240, %242 : vector<16x32xf32>
    %cst_129 = arith.constant 0.000000e+00 : f32
    %244 = vector.broadcast %cst_129 : f32 to vector<16x32xf32>
    %245 = arith.maximumf %243, %244 : vector<16x32xf32>
    %c2_i32_130 = arith.constant 2 : i32
    %c0_i32_131 = arith.constant 0 : i32
    %246 = arith.cmpi eq, %c2_i32_130, %c0_i32_131 : i32
    %c1_i32_132 = arith.constant 1 : i32
    %247 = arith.select %246, %c1_i32_132, %c2_i32_130 : i32
    %248 = vector.broadcast %247 : i32 to vector<16x1xi32>
    %249 = arith.remsi %0, %248 : vector<16x1xi32>
    %c0_i32_133 = arith.constant 0 : i32
    %250 = vector.broadcast %c0_i32_133 : i32 to vector<16x1xi32>
    %251 = arith.cmpi ne, %249, %250 : vector<16x1xi32>
    %c0_i32_134 = arith.constant 0 : i32
    %252 = vector.broadcast %c0_i32_134 : i32 to vector<16x1xi32>
    %253 = arith.cmpi slt, %249, %252 : vector<16x1xi32>
    %c0_i32_135 = arith.constant 0 : i32
    %254 = arith.cmpi slt, %247, %c0_i32_135 : i32
    %255 = vector.broadcast %254 : i1 to vector<16x1xi1>
    %256 = vector.broadcast %255 : vector<16x1xi1> to vector<16x1xi1>
    %257 = arith.xori %253, %256 : vector<16x1xi1>
    %258 = arith.andi %257, %251 : vector<16x1xi1>
    %259 = vector.broadcast %247 : i32 to vector<16x1xi32>
    %260 = arith.addi %249, %259 : vector<16x1xi32>
    %261 = arith.select %258, %260, %249 : vector<16x1xi1>, vector<16x1xi32>
    %c1_i32_136 = arith.constant 1 : i32
    %262 = vector.broadcast %c1_i32_136 : i32 to vector<16x1xi32>
    %263 = arith.cmpi sge, %261, %262 : vector<16x1xi32>
    %c1_i32_137 = arith.constant 1 : i32
    %264 = tpu.dynamic_rotate %245 by %c1_i32_137 dim 0 : vector<16x32xf32>, i32 -> vector<16x32xf32>
    %265 = vector.shape_cast %263 : vector<16x1xi1> to vector<16x1xi1>
    %266 = vector.broadcast %265 : vector<16x1xi1> to vector<16x32xi1>
    %267 = arith.select %266, %264, %233 : vector<16x32xi1>, vector<16x32xf32>
    %c0_138 = arith.constant 0 : index
    %c0_139 = arith.constant 0 : index
    %268 = vector.load %arg30[%c0_138, %c0_139] : memref<16x32xf32, #tpu.memory_space<vmem>>, vector<16x32xf32>
    tpu.vector_store %arg30[%c0_138, %c0_139], %267 {strides = array<i32>} : memref<16x32xf32, #tpu.memory_space<vmem>>, vector<16x32xf32>,
    return
  }
  func.func @transform_0(%arg0: i32) -> (i32, i32) {
    %c0_i32 = arith.constant 0 : i32
    %c0_i32_0 = arith.constant 0 : i32
    return %arg0, %c0_i32 : i32, i32
  }
  func.func @transform_1(%arg0: i32) -> (i32, i32) {
    %c0_i32 = arith.constant 0 : i32
    %c0_i32_0 = arith.constant 0 : i32
    %c0_i32_1 = arith.constant 0 : i32
    return %c0_i32, %c0_i32_0 : i32, i32
  }
  func.func @transform_2(%arg0: i32) -> (i32, i32) {
    %c0_i32 = arith.constant 0 : i32
    %c0_i32_0 = arith.constant 0 : i32
    %c0_i32_1 = arith.constant 0 : i32
    return %c0_i32, %c0_i32_0 : i32, i32
  }
  func.func @transform_3(%arg0: i32) -> (i32, i32) {
    %c0_i32 = arith.constant 0 : i32
    %c0_i32_0 = arith.constant 0 : i32
    %c0_i32_1 = arith.constant 0 : i32
    return %c0_i32, %c0_i32_0 : i32, i32
  }
  func.func @transform_4(%arg0: i32) -> (i32, i32) {
    %c0_i32 = arith.constant 0 : i32
    %c0_i32_0 = arith.constant 0 : i32
    %c0_i32_1 = arith.constant 0 : i32
    return %c0_i32, %c0_i32_0 : i32, i32
  }
  func.func @transform_5(%arg0: i32) -> (i32, i32) {
    %c0_i32 = arith.constant 0 : i32
    %c0_i32_0 = arith.constant 0 : i32
    %c0_i32_1 = arith.constant 0 : i32
    return %c0_i32, %c0_i32_0 : i32, i32
  }
  func.func @transform_6(%arg0: i32) -> (i32, i32) {
    %c0_i32 = arith.constant 0 : i32
    %c0_i32_0 = arith.constant 0 : i32
    %c0_i32_1 = arith.constant 0 : i32
    return %c0_i32, %c0_i32_0 : i32, i32
  }
  func.func @transform_7(%arg0: i32) -> (i32, i32) {
    %c0_i32 = arith.constant 0 : i32
    %c0_i32_0 = arith.constant 0 : i32
    %c0_i32_1 = arith.constant 0 : i32
    return %c0_i32, %c0_i32_0 : i32, i32
  }
  func.func @transform_8(%arg0: i32) -> (i32, i32) {
    %c0_i32 = arith.constant 0 : i32
    %c0_i32_0 = arith.constant 0 : i32
    %c0_i32_1 = arith.constant 0 : i32
    return %c0_i32, %c0_i32_0 : i32, i32
  }
  func.func @transform_9(%arg0: i32) -> (i32, i32) {
    %c0_i32 = arith.constant 0 : i32
    %c0_i32_0 = arith.constant 0 : i32
    %c0_i32_1 = arith.constant 0 : i32
    return %c0_i32, %c0_i32_0 : i32, i32
  }
  func.func @transform_10(%arg0: i32) -> (i32, i32) {
    %c0_i32 = arith.constant 0 : i32
    %c0_i32_0 = arith.constant 0 : i32
    %c0_i32_1 = arith.constant 0 : i32
    return %c0_i32, %c0_i32_0 : i32, i32
  }
  func.func @transform_11(%arg0: i32) -> (i32, i32) {
    %c0_i32 = arith.constant 0 : i32
    %c0_i32_0 = arith.constant 0 : i32
    %c0_i32_1 = arith.constant 0 : i32
    return %c0_i32, %c0_i32_0 : i32, i32
  }
  func.func @transform_12(%arg0: i32) -> (i32, i32) {
    %c0_i32 = arith.constant 0 : i32
    %c0_i32_0 = arith.constant 0 : i32
    %c0_i32_1 = arith.constant 0 : i32
    return %c0_i32, %c0_i32_0 : i32, i32
  }
  func.func @transform_13(%arg0: i32) -> (i32, i32) {
    %c0_i32 = arith.constant 0 : i32
    %c0_i32_0 = arith.constant 0 : i32
    %c0_i32_1 = arith.constant 0 : i32
    return %c0_i32, %c0_i32_0 : i32, i32
  }
  func.func @transform_14(%arg0: i32) -> (i32, i32) {
    %c0_i32 = arith.constant 0 : i32
    %c0_i32_0 = arith.constant 0 : i32
    %c0_i32_1 = arith.constant 0 : i32
    return %c0_i32, %c0_i32_0 : i32, i32
  }
  func.func @transform_15(%arg0: i32) -> (i32, i32) {
    %c0_i32 = arith.constant 0 : i32
    %c0_i32_0 = arith.constant 0 : i32
    %c0_i32_1 = arith.constant 0 : i32
    return %c0_i32, %c0_i32_0 : i32, i32
  }
  func.func @transform_16(%arg0: i32) -> (i32, i32) {
    %c0_i32 = arith.constant 0 : i32
    %c0_i32_0 = arith.constant 0 : i32
    %c0_i32_1 = arith.constant 0 : i32
    return %c0_i32, %c0_i32_0 : i32, i32
  }
  func.func @transform_17(%arg0: i32) -> (i32, i32) {
    %c0_i32 = arith.constant 0 : i32
    %c0_i32_0 = arith.constant 0 : i32
    %c0_i32_1 = arith.constant 0 : i32
    return %c0_i32, %c0_i32_0 : i32, i32
  }
  func.func @transform_18(%arg0: i32) -> (i32, i32) {
    %c0_i32 = arith.constant 0 : i32
    %c0_i32_0 = arith.constant 0 : i32
    %c0_i32_1 = arith.constant 0 : i32
    return %c0_i32, %c0_i32_0 : i32, i32
  }
  func.func @transform_19(%arg0: i32) -> (i32, i32) {
    %c0_i32 = arith.constant 0 : i32
    %c0_i32_0 = arith.constant 0 : i32
    %c0_i32_1 = arith.constant 0 : i32
    return %c0_i32, %c0_i32_0 : i32, i32
  }
  func.func @transform_20(%arg0: i32) -> (i32, i32) {
    %c0_i32 = arith.constant 0 : i32
    %c0_i32_0 = arith.constant 0 : i32
    %c0_i32_1 = arith.constant 0 : i32
    return %c0_i32, %c0_i32_0 : i32, i32
  }
  func.func @transform_21(%arg0: i32) -> (i32, i32) {
    %c0_i32 = arith.constant 0 : i32
    %c0_i32_0 = arith.constant 0 : i32
    %c0_i32_1 = arith.constant 0 : i32
    return %c0_i32, %c0_i32_0 : i32, i32
  }
  func.func @transform_22(%arg0: i32) -> (i32, i32) {
    %c0_i32 = arith.constant 0 : i32
    %c0_i32_0 = arith.constant 0 : i32
    %c0_i32_1 = arith.constant 0 : i32
    return %c0_i32, %c0_i32_0 : i32, i32
  }
  func.func @transform_23(%arg0: i32) -> (i32, i32) {
    %c0_i32 = arith.constant 0 : i32
    %c0_i32_0 = arith.constant 0 : i32
    %c0_i32_1 = arith.constant 0 : i32
    return %c0_i32, %c0_i32_0 : i32, i32
  }
  func.func @transform_24(%arg0: i32) -> (i32, i32) {
    %c0_i32 = arith.constant 0 : i32
    %c0_i32_0 = arith.constant 0 : i32
    %c0_i32_1 = arith.constant 0 : i32
    return %c0_i32, %c0_i32_0 : i32, i32
  }
  func.func @transform_25(%arg0: i32) -> (i32, i32) {
    %c0_i32 = arith.constant 0 : i32
    %c0_i32_0 = arith.constant 0 : i32
    %c0_i32_1 = arith.constant 0 : i32
    return %c0_i32, %c0_i32_0 : i32, i32
  }
  func.func @transform_26(%arg0: i32) -> (i32, i32) {
    %c0_i32 = arith.constant 0 : i32
    %c0_i32_0 = arith.constant 0 : i32
    %c0_i32_1 = arith.constant 0 : i32
    return %c0_i32, %c0_i32_0 : i32, i32
  }
  func.func @transform_27(%arg0: i32) -> (i32, i32) {
    %c0_i32 = arith.constant 0 : i32
    %c0_i32_0 = arith.constant 0 : i32
    %c0_i32_1 = arith.constant 0 : i32
    return %c0_i32, %c0_i32_0 : i32, i32
  }
  func.func @transform_28(%arg0: i32) -> (i32, i32) {
    %c0_i32 = arith.constant 0 : i32
    %c0_i32_0 = arith.constant 0 : i32
    %c0_i32_1 = arith.constant 0 : i32
    return %c0_i32, %c0_i32_0 : i32, i32
  }
  func.func @transform_29(%arg0: i32) -> (i32, i32) {
    %c0_i32 = arith.constant 0 : i32
    %c0_i32_0 = arith.constant 0 : i32
    return %arg0, %c0_i32 : i32, i32
  }
}

</mosaic_0001>

<llo_original>
// kernel: autoencoder_forward.1
$region0: #{autoencoder_forward.1}
  #allocation0 [shape = 'u32[]', space=smem, size = 0x4, offset = 0x4, fixed_abs, tag = 'smem constant byte address 0x4 - core index']
  #allocation1 [shape = 'u32[144,128]{1,0:T(1,128)}', space=vmem, size = 0x12000, scoped, tag = 'internal scratch']
  %s0 = inlined_call_operand.smem [shape: u32[30], index: -1, kind: input, shape index: {}]
  %s1 = sld [smem:[%s0]]
  %s2 = scalar_lea.smem %s0, 1
  %s3 = sld [smem:[%s2]]
  %s4 = scalar_lea.smem %s0, 2
  %s5 = sld [smem:[%s4]]
  %s6 = scalar_lea.smem %s0, 3
  %s7 = sld [smem:[%s6]]
  %s8 = scalar_lea.smem %s0, 4
  %s9 = sld [smem:[%s8]]
  %s10 = scalar_lea.smem %s0, 5
  %s11 = sld [smem:[%s10]]
  %s12 = scalar_lea.smem %s0, 6
  %s13 = sld [smem:[%s12]]
  %s14 = scalar_lea.smem %s0, 7
  %s15 = sld [smem:[%s14]]
  %s16 = scalar_lea.smem %s0, 8
  %s17 = sld [smem:[%s16]]
  %s18 = scalar_lea.smem %s0, 9
  %s19 = sld [smem:[%s18]]
  %s20 = scalar_lea.smem %s0, 10
  %s21 = sld [smem:[%s20]]
  %s22 = scalar_lea.smem %s0, 11
  %s23 = sld [smem:[%s22]]
  %s24 = scalar_lea.smem %s0, 12
  %s25 = sld [smem:[%s24]]
  %s26 = scalar_lea.smem %s0, 13
  %s27 = sld [smem:[%s26]]
  %s28 = scalar_lea.smem %s0, 14
  %s29 = sld [smem:[%s28]]
  %s30 = scalar_lea.smem %s0, 15
  %s31 = sld [smem:[%s30]]
  %s32 = scalar_lea.smem %s0, 16
  %s33 = sld [smem:[%s32]]
  %s34 = scalar_lea.smem %s0, 17
  %s35 = sld [smem:[%s34]]
  %s36 = scalar_lea.smem %s0, 18
  %s37 = sld [smem:[%s36]]
  %s38 = scalar_lea.smem %s0, 19
  %s39 = sld [smem:[%s38]]
  %s40 = scalar_lea.smem %s0, 20
  %s41 = sld [smem:[%s40]]
  %s42 = scalar_lea.smem %s0, 21
  %s43 = sld [smem:[%s42]]
  %s44 = scalar_lea.smem %s0, 22
  %s45 = sld [smem:[%s44]]
  %s46 = scalar_lea.smem %s0, 23
  %s47 = sld [smem:[%s46]]
  %s48 = scalar_lea.smem %s0, 24
  %s49 = sld [smem:[%s48]]
  %s50 = scalar_lea.smem %s0, 25
  %s51 = sld [smem:[%s50]]
  %s52 = scalar_lea.smem %s0, 26
  %s53 = sld [smem:[%s52]]
  %s54 = scalar_lea.smem %s0, 27
  %s55 = sld [smem:[%s54]]
  %s56 = scalar_lea.smem %s0, 28
  %s57 = sld [smem:[%s56]]
  %s58 = scalar_lea.smem %s0, 29
  %s59 = sld [smem:[%s58]]
  %s60 = sld [smem:[#allocation0]]
  $region217: #{autoencoder_forward.1} parent=0
    _
  %s62 = ssub.s32 1, %s60
  %s63 = scalar_select 0, %s62, %s60
  $region1: #{autoencoder_forward.1} parent=0
    #allocation2 [shape = 'u8[16384]{0}', space=vmem, size = 0x4000, scoped, tag = 'input window, operand 1, single buffered']
    #allocation3 [shape = 's32[2]{0}', space=sflag, size = 0x8, scoped, tag = 'scoped memory for autoencoder_forward.1']
    #allocation4 [shape = 'u8[16384]{0}', space=vmem, size = 0x4000, scoped, tag = 'input window, operand 2, single buffered']
    #allocation5 [shape = 's32[1]{0}', space=sflag, size = 0x4, scoped, tag = 'scoped memory for autoencoder_forward.1']
    #allocation6 [shape = 'u8[16384]{0}', space=vmem, size = 0x4000, scoped, tag = 'input window, operand 3, single buffered']
    #allocation7 [shape = 'u8[1024]{0}', space=vmem, size = 0x400, scoped, tag = 'input window, operand 4, single buffered']
    #allocation8 [shape = 's32[1]{0}', space=sflag, size = 0x4, scoped, tag = 'scoped memory for autoencoder_forward.1']
    #allocation9 [shape = 'u8[1024]{0}', space=vmem, size = 0x400, scoped, tag = 'input window, operand 8, single buffered']
    #allocation10 [shape = 'u8[131072]{0}', space=vmem, size = 0x20000, scoped, tag = 'input window, operand 9, single buffered']
    #allocation11 [shape = 's32[1]{0}', space=sflag, size = 0x4, scoped, tag = 'scoped memory for autoencoder_forward.1']
    #allocation12 [shape = 'u8[131072]{0}', space=vmem, size = 0x20000, scoped, tag = 'input window, operand 10, single buffered']
    #allocation13 [shape = 'u8[131072]{0}', space=vmem, size = 0x20000, scoped, tag = 'input window, operand 11, single buffered']
    #allocation14 [shape = 's32[1]{0}', space=sflag, size = 0x4, scoped, tag = 'scoped memory for autoencoder_forward.1']
    #allocation15 [shape = 'u8[1024]{0}', space=vmem, size = 0x400, scoped, tag = 'input window, operand 12, single buffered']
    #allocation16 [shape = 'u8[512]{0}', space=vmem, size = 0x400, scoped, tag = 'input window, operand 14, single buffered']
    #allocation17 [shape = 's32[1]{0}', space=sflag, size = 0x4, scoped, tag = 'scoped memory for autoencoder_forward.1']
    #allocation18 [shape = 'u8[16384]{0}', space=vmem, size = 0x4000, scoped, tag = 'input window, operand 15, single buffered']
    #allocation19 [shape = 'u8[1024]{0}', space=vmem, size = 0x400, scoped, tag = 'input window, operand 16, single buffered']
    #allocation20 [shape = 's32[1]{0}', space=sflag, size = 0x4, scoped, tag = 'scoped memory for autoencoder_forward.1']
    #allocation21 [shape = 'u8[32768]{0}', space=vmem, size = 0x8000, scoped, tag = 'input window, operand 18, single buffered']
    #allocation22 [shape = 'u8[32768]{0}', space=vmem, size = 0x8000, scoped, tag = 'input window, operand 19, single buffered']
    #allocation23 [shape = 's32[1]{0}', space=sflag, size = 0x4, scoped, tag = 'scoped memory for autoencoder_forward.1']
    #allocation24 [shape = 'u8[32768]{0}', space=vmem, size = 0x8000, scoped, tag = 'input window, operand 21, single buffered']
    #allocation25 [shape = 'u8[32768]{0}', space=vmem, size = 0x8000, scoped, tag = 'input window, operand 22, single buffered']
    #allocation26 [shape = 's32[1]{0}', space=sflag, size = 0x4, scoped, tag = 'scoped memory for autoencoder_forward.1']
    #allocation27 [shape = 'u8[32768]{0}', space=vmem, size = 0x8000, scoped, tag = 'input window, operand 23, single buffered']
    %64 = vsyncpa [#allocation3], 0
    %65 = vsyncpa [#allocation5], 0
    %66 = vsyncpa [#allocation8], 0
    %67 = vsyncpa [#allocation11], 0
    %68 = vsyncpa [#allocation14], 0
    %69 = vsyncpa [#allocation17], 0
    %70 = vsyncpa [#allocation20], 0
    %71 = vsyncpa [#allocation23], 0
    %72 = vsyncpa [#allocation26], 0
    loop: start=0, step=1, limit=4
    $region2: #{autoencoder_forward.1} parent=1 // loop_pre_header
      _
    $region3: #{autoencoder_forward.1} parent=1 // loop_header
      %s74 = sphi 0, %s78
      %p75 = scmp.ge.s32.totalorder %s74, 4
      %s84 = sphi 0, %s86
      %s87 = sphi 0, %s84
      %s88 = sphi 0, %s87
      %s104 = sphi 0, %s88
      %s108 = sphi 0, %s108
      %s110 = sphi 0, %s108
      %s111 = sphi 0, %s110
      %s125 = sphi 0, %s111
      %s129 = sphi 0, %s129
      %s131 = sphi 0, %s129
      %s132 = sphi 0, %s131
      %s146 = sphi 0, %s132
      %s150 = sphi 0, %s150
      %s152 = sphi 0, %s150
      %s153 = sphi 0, %s152
      %s167 = sphi 0, %s153
      %s171 = sphi 0, %s171
      %s173 = sphi 0, %s171
      %s174 = sphi 0, %s173
      %s188 = sphi 0, %s174
      %s192 = sphi 0, %s192
      %s194 = sphi 0, %s192
      %s195 = sphi 0, %s194
      %s209 = sphi 0, %s195
      %s213 = sphi 0, %s213
      %s215 = sphi 0, %s213
      %s216 = sphi 0, %s215
      %s230 = sphi 0, %s216
      %s234 = sphi 0, %s234
      %s236 = sphi 0, %s234
      %s237 = sphi 0, %s236
      %s251 = sphi 0, %s237
      %s255 = sphi 0, %s255
      %s257 = sphi 0, %s255
      %s258 = sphi 0, %s257
      %s272 = sphi 0, %s258
      %s276 = sphi 0, %s276
      %s278 = sphi 0, %s276
      %s279 = sphi 0, %s278
      %s293 = sphi 0, %s279
      %s297 = sphi 0, %s297
      %s299 = sphi 0, %s297
      %s300 = sphi 0, %s299
      %s314 = sphi 0, %s300
      %s318 = sphi 0, %s318
      %s320 = sphi 0, %s318
      %s321 = sphi 0, %s320
      %s335 = sphi 0, %s321
      %s339 = sphi 0, %s339
      %s341 = sphi 0, %s339
      %s342 = sphi 0, %s341
      %s356 = sphi 0, %s342
      %s360 = sphi 0, %s360
      %s362 = sphi 0, %s360
      %s363 = sphi 0, %s362
      %s377 = sphi 0, %s363
      %s381 = sphi 0, %s381
      %s383 = sphi 0, %s381
      %s384 = sphi 0, %s383
      %s398 = sphi 0, %s384
      %s402 = sphi 0, %s402
      %s404 = sphi 0, %s402
      %s405 = sphi 0, %s404
      %s419 = sphi 0, %s405
      %s423 = sphi 0, %s423
      %s425 = sphi 0, %s423
      %s426 = sphi 0, %s425
      %s440 = sphi 0, %s426
      %s444 = sphi 0, %s444
      %s446 = sphi 0, %s444
      %s447 = sphi 0, %s446
      %s461 = sphi 0, %s447
      %s465 = sphi 0, %s465
      %s467 = sphi 0, %s465
      %s468 = sphi 0, %s467
      %s482 = sphi 0, %s468
      %s486 = sphi 0, %s486
      %s488 = sphi 0, %s486
      %s489 = sphi 0, %s488
      %s503 = sphi 0, %s489
      %s507 = sphi 0, %s507
      %s509 = sphi 0, %s507
      %s510 = sphi 0, %s509
      %s524 = sphi 0, %s510
      %s528 = sphi 0, %s528
      %s530 = sphi 0, %s528
      %s531 = sphi 0, %s530
      %s545 = sphi 0, %s531
      %s549 = sphi 0, %s549
      %s551 = sphi 0, %s549
      %s552 = sphi 0, %s551
      %s566 = sphi 0, %s552
      %s570 = sphi 0, %s570
      %s572 = sphi 0, %s570
      %s573 = sphi 0, %s572
      %s587 = sphi 0, %s573
      %s591 = sphi 0, %s591
      %s593 = sphi 0, %s591
      %s594 = sphi 0, %s593
      %s608 = sphi 0, %s594
      %s612 = sphi 0, %s612
      %s614 = sphi 0, %s612
      %s615 = sphi 0, %s614
      %s629 = sphi 0, %s615
      %s633 = sphi 0, %s633
      %s635 = sphi 0, %s633
      %s636 = sphi 0, %s635
      %s650 = sphi 0, %s636
      %s654 = sphi 0, %s654
      %s656 = sphi 0, %s654
      %s657 = sphi 0, %s656
      %s671 = sphi 0, %s657
      %s675 = sphi 0, %s675
      %s677 = sphi 0, %s675
      %s678 = sphi 0, %s677
      %s692 = sphi 0, %s678
      %s698 = sphi 0, %s700
      %s701 = sphi 0, %s698
      %s702 = sphi 0, %s701
      %s718 = sphi 0, %s702
    $region4: #{autoencoder_forward.1} parent=1 // loop_header_branch
      %77 = sbr.rel (%p75) target = $region8
    $region5: #{autoencoder_forward.1} parent=1 // loop_body
      %s79 = ssub.s32 %s74, 1
      %s80 = ssub.s32 %s74, 2
      %s81 = sadd.s32 %s74, 1
      %s82 = ssub.s32 %s74, %s81
      %p83 = scmp.eq.s32.totalorder %s82, 0
      %s85 = sadd.s32 %s84, 1
      %s86 = scalar_select %p83, %s84, %s85
      %p89 = pneg %p83
      %p90 = scmp.eq.s32.totalorder %s74, 1
      %p91 = por %p89, %p90
      %p92 = scmp.ne.s32.totalorder %s84, %s87
      %p93 = scmp.eq.s32.totalorder %s74, 0
      %p94 = por %p92, %p93
      %p95 = scmp.ne.s32.totalorder %s84, %s87
      %p96 = scmp.eq.s32.totalorder %s79, 1
      %p97 = por %p95, %p96
      %p98 = scmp.ne.s32.totalorder %s87, %s88
      %p99 = scmp.eq.s32.totalorder %s79, 0
      %p100 = por %p98, %p99
      %p101 = scmp.ne.s32.totalorder %s87, %s88
      %p102 = scmp.eq.s32.totalorder %s80, 1
      %p103 = por %p101, %p102
      %p105 = scmp.ne.s32.totalorder %s88, %s104
      %p106 = scmp.eq.s32.totalorder %s80, 0
      %p107 = por %p105, %p106
      %s109 = sadd.s32 %s108, 1
      %p112 = scmp.eq.s32.totalorder %s74, 1
      %p113 = scmp.ne.s32.totalorder %s108, %s110
      %p114 = scmp.eq.s32.totalorder %s74, 0
      %p115 = por %p113, %p114
      %p116 = scmp.ne.s32.totalorder %s108, %s110
      %p117 = scmp.eq.s32.totalorder %s79, 1
      %p118 = por %p116, %p117
      %p119 = scmp.ne.s32.totalorder %s110, %s111
      %p120 = scmp.eq.s32.totalorder %s79, 0
      %p121 = por %p119, %p120
      %p122 = scmp.ne.s32.totalorder %s110, %s111
      %p123 = scmp.eq.s32.totalorder %s80, 1
      %p124 = por %p122, %p123
      %p126 = scmp.ne.s32.totalorder %s111, %s125
      %p127 = scmp.eq.s32.totalorder %s80, 0
      %p128 = por %p126, %p127
      %s130 = sadd.s32 %s129, 1
      %p133 = scmp.eq.s32.totalorder %s74, 1
      %p134 = scmp.ne.s32.totalorder %s129, %s131
      %p135 = scmp.eq.s32.totalorder %s74, 0
      %p136 = por %p134, %p135
      %p137 = scmp.ne.s32.totalorder %s129, %s131
      %p138 = scmp.eq.s32.totalorder %s79, 1
      %p139 = por %p137, %p138
      %p140 = scmp.ne.s32.totalorder %s131, %s132
      %p141 = scmp.eq.s32.totalorder %s79, 0
      %p142 = por %p140, %p141
      %p143 = scmp.ne.s32.totalorder %s131, %s132
      %p144 = scmp.eq.s32.totalorder %s80, 1
      %p145 = por %p143, %p144
      %p147 = scmp.ne.s32.totalorder %s132, %s146
      %p148 = scmp.eq.s32.totalorder %s80, 0
      %p149 = por %p147, %p148
      %s151 = sadd.s32 %s150, 1
      %p154 = scmp.eq.s32.totalorder %s74, 1
      %p155 = scmp.ne.s32.totalorder %s150, %s152
      %p156 = scmp.eq.s32.totalorder %s74, 0
      %p157 = por %p155, %p156
      %p158 = scmp.ne.s32.totalorder %s150, %s152
      %p159 = scmp.eq.s32.totalorder %s79, 1
      %p160 = por %p158, %p159
      %p161 = scmp.ne.s32.totalorder %s152, %s153
      %p162 = scmp.eq.s32.totalorder %s79, 0
      %p163 = por %p161, %p162
      %p164 = scmp.ne.s32.totalorder %s152, %s153
      %p165 = scmp.eq.s32.totalorder %s80, 1
      %p166 = por %p164, %p165
      %p168 = scmp.ne.s32.totalorder %s153, %s167
      %p169 = scmp.eq.s32.totalorder %s80, 0
      %p170 = por %p168, %p169
      %s172 = sadd.s32 %s171, 1
      %p175 = scmp.eq.s32.totalorder %s74, 1
      %p176 = scmp.ne.s32.totalorder %s171, %s173
      %p177 = scmp.eq.s32.totalorder %s74, 0
      %p178 = por %p176, %p177
      %p179 = scmp.ne.s32.totalorder %s171, %s173
      %p180 = scmp.eq.s32.totalorder %s79, 1
      %p181 = por %p179, %p180
      %p182 = scmp.ne.s32.totalorder %s173, %s174
      %p183 = scmp.eq.s32.totalorder %s79, 0
      %p184 = por %p182, %p183
      %p185 = scmp.ne.s32.totalorder %s173, %s174
      %p186 = scmp.eq.s32.totalorder %s80, 1
      %p187 = por %p185, %p186
      %p189 = scmp.ne.s32.totalorder %s174, %s188
      %p190 = scmp.eq.s32.totalorder %s80, 0
      %p191 = por %p189, %p190
      %s193 = sadd.s32 %s192, 1
      %p196 = scmp.eq.s32.totalorder %s74, 1
      %p197 = scmp.ne.s32.totalorder %s192, %s194
      %p198 = scmp.eq.s32.totalorder %s74, 0
      %p199 = por %p197, %p198
      %p200 = scmp.ne.s32.totalorder %s192, %s194
      %p201 = scmp.eq.s32.totalorder %s79, 1
      %p202 = por %p200, %p201
      %p203 = scmp.ne.s32.totalorder %s194, %s195
      %p204 = scmp.eq.s32.totalorder %s79, 0
      %p205 = por %p203, %p204
      %p206 = scmp.ne.s32.totalorder %s194, %s195
      %p207 = scmp.eq.s32.totalorder %s80, 1
      %p208 = por %p206, %p207
      %p210 = scmp.ne.s32.totalorder %s195, %s209
      %p211 = scmp.eq.s32.totalorder %s80, 0
      %p212 = por %p210, %p211
      %s214 = sadd.s32 %s213, 1
      %p217 = scmp.eq.s32.totalorder %s74, 1
      %p218 = scmp.ne.s32.totalorder %s213, %s215
      %p219 = scmp.eq.s32.totalorder %s74, 0
      %p220 = por %p218, %p219
      %p221 = scmp.ne.s32.totalorder %s213, %s215
      %p222 = scmp.eq.s32.totalorder %s79, 1
      %p223 = por %p221, %p222
      %p224 = scmp.ne.s32.totalorder %s215, %s216
      %p225 = scmp.eq.s32.totalorder %s79, 0
      %p226 = por %p224, %p225
      %p227 = scmp.ne.s32.totalorder %s215, %s216
      %p228 = scmp.eq.s32.totalorder %s80, 1
      %p229 = por %p227, %p228
      %p231 = scmp.ne.s32.totalorder %s216, %s230
      %p232 = scmp.eq.s32.totalorder %s80, 0
      %p233 = por %p231, %p232
      %s235 = sadd.s32 %s234, 1
      %p238 = scmp.eq.s32.totalorder %s74, 1
      %p239 = scmp.ne.s32.totalorder %s234, %s236
      %p240 = scmp.eq.s32.totalorder %s74, 0
      %p241 = por %p239, %p240
      %p242 = scmp.ne.s32.totalorder %s234, %s236
      %p243 = scmp.eq.s32.totalorder %s79, 1
      %p244 = por %p242, %p243
      %p245 = scmp.ne.s32.totalorder %s236, %s237
      %p246 = scmp.eq.s32.totalorder %s79, 0
      %p247 = por %p245, %p246
      %p248 = scmp.ne.s32.totalorder %s236, %s237
      %p249 = scmp.eq.s32.totalorder %s80, 1
      %p250 = por %p248, %p249
      %p252 = scmp.ne.s32.totalorder %s237, %s251
      %p253 = scmp.eq.s32.totalorder %s80, 0
      %p254 = por %p252, %p253
      %s256 = sadd.s32 %s255, 1
      %p259 = scmp.eq.s32.totalorder %s74, 1
      %p260 = scmp.ne.s32.totalorder %s255, %s257
      %p261 = scmp.eq.s32.totalorder %s74, 0
      %p262 = por %p260, %p261
      %p263 = scmp.ne.s32.totalorder %s255, %s257
      %p264 = scmp.eq.s32.totalorder %s79, 1
      %p265 = por %p263, %p264
      %p266 = scmp.ne.s32.totalorder %s257, %s258
      %p267 = scmp.eq.s32.totalorder %s79, 0
      %p268 = por %p266, %p267
      %p269 = scmp.ne.s32.totalorder %s257, %s258
      %p270 = scmp.eq.s32.totalorder %s80, 1
      %p271 = por %p269, %p270
      %p273 = scmp.ne.s32.totalorder %s258, %s272
      %p274 = scmp.eq.s32.totalorder %s80, 0
      %p275 = por %p273, %p274
      %s277 = sadd.s32 %s276, 1
      %p280 = scmp.eq.s32.totalorder %s74, 1
      %p281 = scmp.ne.s32.totalorder %s276, %s278
      %p282 = scmp.eq.s32.totalorder %s74, 0
      %p283 = por %p281, %p282
      %p284 = scmp.ne.s32.totalorder %s276, %s278
      %p285 = scmp.eq.s32.totalorder %s79, 1
      %p286 = por %p284, %p285
      %p287 = scmp.ne.s32.totalorder %s278, %s279
      %p288 = scmp.eq.s32.totalorder %s79, 0
      %p289 = por %p287, %p288
      %p290 = scmp.ne.s32.totalorder %s278, %s279
      %p291 = scmp.eq.s32.totalorder %s80, 1
      %p292 = por %p290, %p291
      %p294 = scmp.ne.s32.totalorder %s279, %s293
      %p295 = scmp.eq.s32.totalorder %s80, 0
      %p296 = por %p294, %p295
      %s298 = sadd.s32 %s297, 1
      %p301 = scmp.eq.s32.totalorder %s74, 1
      %p302 = scmp.ne.s32.totalorder %s297, %s299
      %p303 = scmp.eq.s32.totalorder %s74, 0
      %p304 = por %p302, %p303
      %p305 = scmp.ne.s32.totalorder %s297, %s299
      %p306 = scmp.eq.s32.totalorder %s79, 1
      %p307 = por %p305, %p306
      %p308 = scmp.ne.s32.totalorder %s299, %s300
      %p309 = scmp.eq.s32.totalorder %s79, 0
      %p310 = por %p308, %p309
      %p311 = scmp.ne.s32.totalorder %s299, %s300
      %p312 = scmp.eq.s32.totalorder %s80, 1
      %p313 = por %p311, %p312
      %p315 = scmp.ne.s32.totalorder %s300, %s314
      %p316 = scmp.eq.s32.totalorder %s80, 0
      %p317 = por %p315, %p316
      %s319 = sadd.s32 %s318, 1
      %p322 = scmp.eq.s32.totalorder %s74, 1
      %p323 = scmp.ne.s32.totalorder %s318, %s320
      %p324 = scmp.eq.s32.totalorder %s74, 0
      %p325 = por %p323, %p324
      %p326 = scmp.ne.s32.totalorder %s318, %s320
      %p327 = scmp.eq.s32.totalorder %s79, 1
      %p328 = por %p326, %p327
      %p329 = scmp.ne.s32.totalorder %s320, %s321
      %p330 = scmp.eq.s32.totalorder %s79, 0
      %p331 = por %p329, %p330
      %p332 = scmp.ne.s32.totalorder %s320, %s321
      %p333 = scmp.eq.s32.totalorder %s80, 1
      %p334 = por %p332, %p333
      %p336 = scmp.ne.s32.totalorder %s321, %s335
      %p337 = scmp.eq.s32.totalorder %s80, 0
      %p338 = por %p336, %p337
      %s340 = sadd.s32 %s339, 1
      %p343 = scmp.eq.s32.totalorder %s74, 1
      %p344 = scmp.ne.s32.totalorder %s339, %s341
      %p345 = scmp.eq.s32.totalorder %s74, 0
      %p346 = por %p344, %p345
      %p347 = scmp.ne.s32.totalorder %s339, %s341
      %p348 = scmp.eq.s32.totalorder %s79, 1
      %p349 = por %p347, %p348
      %p350 = scmp.ne.s32.totalorder %s341, %s342
      %p351 = scmp.eq.s32.totalorder %s79, 0
      %p352 = por %p350, %p351
      %p353 = scmp.ne.s32.totalorder %s341, %s342
      %p354 = scmp.eq.s32.totalorder %s80, 1
      %p355 = por %p353, %p354
      %p357 = scmp.ne.s32.totalorder %s342, %s356
      %p358 = scmp.eq.s32.totalorder %s80, 0
      %p359 = por %p357, %p358
      %s361 = sadd.s32 %s360, 1
      %p364 = scmp.eq.s32.totalorder %s74, 1
      %p365 = scmp.ne.s32.totalorder %s360, %s362
      %p366 = scmp.eq.s32.totalorder %s74, 0
      %p367 = por %p365, %p366
      %p368 = scmp.ne.s32.totalorder %s360, %s362
      %p369 = scmp.eq.s32.totalorder %s79, 1
      %p370 = por %p368, %p369
      %p371 = scmp.ne.s32.totalorder %s362, %s363
      %p372 = scmp.eq.s32.totalorder %s79, 0
      %p373 = por %p371, %p372
      %p374 = scmp.ne.s32.totalorder %s362, %s363
      %p375 = scmp.eq.s32.totalorder %s80, 1
      %p376 = por %p374, %p375
      %p378 = scmp.ne.s32.totalorder %s363, %s377
      %p379 = scmp.eq.s32.totalorder %s80, 0
      %p380 = por %p378, %p379
      %s382 = sadd.s32 %s381, 1
      %p385 = scmp.eq.s32.totalorder %s74, 1
      %p386 = scmp.ne.s32.totalorder %s381, %s383
      %p387 = scmp.eq.s32.totalorder %s74, 0
      %p388 = por %p386, %p387
      %p389 = scmp.ne.s32.totalorder %s381, %s383
      %p390 = scmp.eq.s32.totalorder %s79, 1
      %p391 = por %p389, %p390
      %p392 = scmp.ne.s32.totalorder %s383, %s384
      %p393 = scmp.eq.s32.totalorder %s79, 0
      %p394 = por %p392, %p393
      %p395 = scmp.ne.s32.totalorder %s383, %s384
      %p396 = scmp.eq.s32.totalorder %s80, 1
      %p397 = por %p395, %p396
      %p399 = scmp.ne.s32.totalorder %s384, %s398
      %p400 = scmp.eq.s32.totalorder %s80, 0
      %p401 = por %p399, %p400
      %s403 = sadd.s32 %s402, 1
      %p406 = scmp.eq.s32.totalorder %s74, 1
      %p407 = scmp.ne.s32.totalorder %s402, %s404
      %p408 = scmp.eq.s32.totalorder %s74, 0
      %p409 = por %p407, %p408
      %p410 = scmp.ne.s32.totalorder %s402, %s404
      %p411 = scmp.eq.s32.totalorder %s79, 1
      %p412 = por %p410, %p411
      %p413 = scmp.ne.s32.totalorder %s404, %s405
      %p414 = scmp.eq.s32.totalorder %s79, 0
      %p415 = por %p413, %p414
      %p416 = scmp.ne.s32.totalorder %s404, %s405
      %p417 = scmp.eq.s32.totalorder %s80, 1
      %p418 = por %p416, %p417
      %p420 = scmp.ne.s32.totalorder %s405, %s419
      %p421 = scmp.eq.s32.totalorder %s80, 0
      %p422 = por %p420, %p421
      %s424 = sadd.s32 %s423, 1
      %p427 = scmp.eq.s32.totalorder %s74, 1
      %p428 = scmp.ne.s32.totalorder %s423, %s425
      %p429 = scmp.eq.s32.totalorder %s74, 0
      %p430 = por %p428, %p429
      %p431 = scmp.ne.s32.totalorder %s423, %s425
      %p432 = scmp.eq.s32.totalorder %s79, 1
      %p433 = por %p431, %p432
      %p434 = scmp.ne.s32.totalorder %s425, %s426
      %p435 = scmp.eq.s32.totalorder %s79, 0
      %p436 = por %p434, %p435
      %p437 = scmp.ne.s32.totalorder %s425, %s426
      %p438 = scmp.eq.s32.totalorder %s80, 1
      %p439 = por %p437, %p438
      %p441 = scmp.ne.s32.totalorder %s426, %s440
      %p442 = scmp.eq.s32.totalorder %s80, 0
      %p443 = por %p441, %p442
      %s445 = sadd.s32 %s444, 1
      %p448 = scmp.eq.s32.totalorder %s74, 1
      %p449 = scmp.ne.s32.totalorder %s444, %s446
      %p450 = scmp.eq.s32.totalorder %s74, 0
      %p451 = por %p449, %p450
      %p452 = scmp.ne.s32.totalorder %s444, %s446
      %p453 = scmp.eq.s32.totalorder %s79, 1
      %p454 = por %p452, %p453
      %p455 = scmp.ne.s32.totalorder %s446, %s447
      %p456 = scmp.eq.s32.totalorder %s79, 0
      %p457 = por %p455, %p456
      %p458 = scmp.ne.s32.totalorder %s446, %s447
      %p459 = scmp.eq.s32.totalorder %s80, 1
      %p460 = por %p458, %p459
      %p462 = scmp.ne.s32.totalorder %s447, %s461
      %p463 = scmp.eq.s32.totalorder %s80, 0
      %p464 = por %p462, %p463
      %s466 = sadd.s32 %s465, 1
      %p469 = scmp.eq.s32.totalorder %s74, 1
      %p470 = scmp.ne.s32.totalorder %s465, %s467
      %p471 = scmp.eq.s32.totalorder %s74, 0
      %p472 = por %p470, %p471
      %p473 = scmp.ne.s32.totalorder %s465, %s467
      %p474 = scmp.eq.s32.totalorder %s79, 1
      %p475 = por %p473, %p474
      %p476 = scmp.ne.s32.totalorder %s467, %s468
      %p477 = scmp.eq.s32.totalorder %s79, 0
      %p478 = por %p476, %p477
      %p479 = scmp.ne.s32.totalorder %s467, %s468
      %p480 = scmp.eq.s32.totalorder %s80, 1
      %p481 = por %p479, %p480
      %p483 = scmp.ne.s32.totalorder %s468, %s482
      %p484 = scmp.eq.s32.totalorder %s80, 0
      %p485 = por %p483, %p484
      %s487 = sadd.s32 %s486, 1
      %p490 = scmp.eq.s32.totalorder %s74, 1
      %p491 = scmp.ne.s32.totalorder %s486, %s488
      %p492 = scmp.eq.s32.totalorder %s74, 0
      %p493 = por %p491, %p492
      %p494 = scmp.ne.s32.totalorder %s486, %s488
      %p495 = scmp.eq.s32.totalorder %s79, 1
      %p496 = por %p494, %p495
      %p497 = scmp.ne.s32.totalorder %s488, %s489
      %p498 = scmp.eq.s32.totalorder %s79, 0
      %p499 = por %p497, %p498
      %p500 = scmp.ne.s32.totalorder %s488, %s489
      %p501 = scmp.eq.s32.totalorder %s80, 1
      %p502 = por %p500, %p501
      %p504 = scmp.ne.s32.totalorder %s489, %s503
      %p505 = scmp.eq.s32.totalorder %s80, 0
      %p506 = por %p504, %p505
      %s508 = sadd.s32 %s507, 1
      %p511 = scmp.eq.s32.totalorder %s74, 1
      %p512 = scmp.ne.s32.totalorder %s507, %s509
      %p513 = scmp.eq.s32.totalorder %s74, 0
      %p514 = por %p512, %p513
      %p515 = scmp.ne.s32.totalorder %s507, %s509
      %p516 = scmp.eq.s32.totalorder %s79, 1
      %p517 = por %p515, %p516
      %p518 = scmp.ne.s32.totalorder %s509, %s510
      %p519 = scmp.eq.s32.totalorder %s79, 0
      %p520 = por %p518, %p519
      %p521 = scmp.ne.s32.totalorder %s509, %s510
      %p522 = scmp.eq.s32.totalorder %s80, 1
      %p523 = por %p521, %p522
      %p525 = scmp.ne.s32.totalorder %s510, %s524
      %p526 = scmp.eq.s32.totalorder %s80, 0
      %p527 = por %p525, %p526
      %s529 = sadd.s32 %s528, 1
      %p532 = scmp.eq.s32.totalorder %s74, 1
      %p533 = scmp.ne.s32.totalorder %s528, %s530
      %p534 = scmp.eq.s32.totalorder %s74, 0
      %p535 = por %p533, %p534
      %p536 = scmp.ne.s32.totalorder %s528, %s530
      %p537 = scmp.eq.s32.totalorder %s79, 1
      %p538 = por %p536, %p537
      %p539 = scmp.ne.s32.totalorder %s530, %s531
      %p540 = scmp.eq.s32.totalorder %s79, 0
      %p541 = por %p539, %p540
      %p542 = scmp.ne.s32.totalorder %s530, %s531
      %p543 = scmp.eq.s32.totalorder %s80, 1
      %p544 = por %p542, %p543
      %p546 = scmp.ne.s32.totalorder %s531, %s545
      %p547 = scmp.eq.s32.totalorder %s80, 0
      %p548 = por %p546, %p547
      %s550 = sadd.s32 %s549, 1
      %p553 = scmp.eq.s32.totalorder %s74, 1
      %p554 = scmp.ne.s32.totalorder %s549, %s551
      %p555 = scmp.eq.s32.totalorder %s74, 0
      %p556 = por %p554, %p555
      %p557 = scmp.ne.s32.totalorder %s549, %s551
      %p558 = scmp.eq.s32.totalorder %s79, 1
      %p559 = por %p557, %p558
      %p560 = scmp.ne.s32.totalorder %s551, %s552
      %p561 = scmp.eq.s32.totalorder %s79, 0
      %p562 = por %p560, %p561
      %p563 = scmp.ne.s32.totalorder %s551, %s552
      %p564 = scmp.eq.s32.totalorder %s80, 1
      %p565 = por %p563, %p564
      %p567 = scmp.ne.s32.totalorder %s552, %s566
      %p568 = scmp.eq.s32.totalorder %s80, 0
      %p569 = por %p567, %p568
      %s571 = sadd.s32 %s570, 1
      %p574 = scmp.eq.s32.totalorder %s74, 1
      %p575 = scmp.ne.s32.totalorder %s570, %s572
      %p576 = scmp.eq.s32.totalorder %s74, 0
      %p577 = por %p575, %p576
      %p578 = scmp.ne.s32.totalorder %s570, %s572
      %p579 = scmp.eq.s32.totalorder %s79, 1
      %p580 = por %p578, %p579
      %p581 = scmp.ne.s32.totalorder %s572, %s573
      %p582 = scmp.eq.s32.totalorder %s79, 0
      %p583 = por %p581, %p582
      %p584 = scmp.ne.s32.totalorder %s572, %s573
      %p585 = scmp.eq.s32.totalorder %s80, 1
      %p586 = por %p584, %p585
      %p588 = scmp.ne.s32.totalorder %s573, %s587
      %p589 = scmp.eq.s32.totalorder %s80, 0
      %p590 = por %p588, %p589
      %s592 = sadd.s32 %s591, 1
      %p595 = scmp.eq.s32.totalorder %s74, 1
      %p596 = scmp.ne.s32.totalorder %s591, %s593
      %p597 = scmp.eq.s32.totalorder %s74, 0
      %p598 = por %p596, %p597
      %p599 = scmp.ne.s32.totalorder %s591, %s593
      %p600 = scmp.eq.s32.totalorder %s79, 1
      %p601 = por %p599, %p600
      %p602 = scmp.ne.s32.totalorder %s593, %s594
      %p603 = scmp.eq.s32.totalorder %s79, 0
      %p604 = por %p602, %p603
      %p605 = scmp.ne.s32.totalorder %s593, %s594
      %p606 = scmp.eq.s32.totalorder %s80, 1
      %p607 = por %p605, %p606
      %p609 = scmp.ne.s32.totalorder %s594, %s608
      %p610 = scmp.eq.s32.totalorder %s80, 0
      %p611 = por %p609, %p610
      %s613 = sadd.s32 %s612, 1
      %p616 = scmp.eq.s32.totalorder %s74, 1
      %p617 = scmp.ne.s32.totalorder %s612, %s614
      %p618 = scmp.eq.s32.totalorder %s74, 0
      %p619 = por %p617, %p618
      %p620 = scmp.ne.s32.totalorder %s612, %s614
      %p621 = scmp.eq.s32.totalorder %s79, 1
      %p622 = por %p620, %p621
      %p623 = scmp.ne.s32.totalorder %s614, %s615
      %p624 = scmp.eq.s32.totalorder %s79, 0
      %p625 = por %p623, %p624
      %p626 = scmp.ne.s32.totalorder %s614, %s615
      %p627 = scmp.eq.s32.totalorder %s80, 1
      %p628 = por %p626, %p627
      %p630 = scmp.ne.s32.totalorder %s615, %s629
      %p631 = scmp.eq.s32.totalorder %s80, 0
      %p632 = por %p630, %p631
      %s634 = sadd.s32 %s633, 1
      %p637 = scmp.eq.s32.totalorder %s74, 1
      %p638 = scmp.ne.s32.totalorder %s633, %s635
      %p639 = scmp.eq.s32.totalorder %s74, 0
      %p640 = por %p638, %p639
      %p641 = scmp.ne.s32.totalorder %s633, %s635
      %p642 = scmp.eq.s32.totalorder %s79, 1
      %p643 = por %p641, %p642
      %p644 = scmp.ne.s32.totalorder %s635, %s636
      %p645 = scmp.eq.s32.totalorder %s79, 0
      %p646 = por %p644, %p645
      %p647 = scmp.ne.s32.totalorder %s635, %s636
      %p648 = scmp.eq.s32.totalorder %s80, 1
      %p649 = por %p647, %p648
      %p651 = scmp.ne.s32.totalorder %s636, %s650
      %p652 = scmp.eq.s32.totalorder %s80, 0
      %p653 = por %p651, %p652
      %s655 = sadd.s32 %s654, 1
      %p658 = scmp.eq.s32.totalorder %s74, 1
      %p659 = scmp.ne.s32.totalorder %s654, %s656
      %p660 = scmp.eq.s32.totalorder %s74, 0
      %p661 = por %p659, %p660
      %p662 = scmp.ne.s32.totalorder %s654, %s656
      %p663 = scmp.eq.s32.totalorder %s79, 1
      %p664 = por %p662, %p663
      %p665 = scmp.ne.s32.totalorder %s656, %s657
      %p666 = scmp.eq.s32.totalorder %s79, 0
      %p667 = por %p665, %p666
      %p668 = scmp.ne.s32.totalorder %s656, %s657
      %p669 = scmp.eq.s32.totalorder %s80, 1
      %p670 = por %p668, %p669
      %p672 = scmp.ne.s32.totalorder %s657, %s671
      %p673 = scmp.eq.s32.totalorder %s80, 0
      %p674 = por %p672, %p673
      %s676 = sadd.s32 %s675, 1
      %p679 = scmp.eq.s32.totalorder %s74, 1
      %p680 = scmp.ne.s32.totalorder %s675, %s677
      %p681 = scmp.eq.s32.totalorder %s74, 0
      %p682 = por %p680, %p681
      %p683 = scmp.ne.s32.totalorder %s675, %s677
      %p684 = scmp.eq.s32.totalorder %s79, 1
      %p685 = por %p683, %p684
      %p686 = scmp.ne.s32.totalorder %s677, %s678
      %p687 = scmp.eq.s32.totalorder %s79, 0
      %p688 = por %p686, %p687
      %p689 = scmp.ne.s32.totalorder %s677, %s678
      %p690 = scmp.eq.s32.totalorder %s80, 1
      %p691 = por %p689, %p690
      %p693 = scmp.ne.s32.totalorder %s678, %s692
      %p694 = scmp.eq.s32.totalorder %s80, 0
      %p695 = por %p693, %p694
      %s696 = ssub.s32 %s74, %s81
      %p697 = scmp.eq.s32.totalorder %s696, 0
      %s699 = sadd.s32 %s698, 1
      %s700 = scalar_select %p697, %s698, %s699
      %p703 = pneg %p697
      %p704 = scmp.eq.s32.totalorder %s74, 1
      %p705 = por %p703, %p704
      %p706 = scmp.ne.s32.totalorder %s698, %s701
      %p707 = scmp.eq.s32.totalorder %s74, 0
      %p708 = por %p706, %p707
      %p709 = scmp.ne.s32.totalorder %s698, %s701
      %p710 = scmp.eq.s32.totalorder %s79, 1
      %p711 = por %p709, %p710
      %p712 = scmp.ne.s32.totalorder %s701, %s702
      %p713 = scmp.eq.s32.totalorder %s79, 0
      %p714 = por %p712, %p713
      %p715 = scmp.ne.s32.totalorder %s701, %s702
      %p716 = scmp.eq.s32.totalorder %s80, 1
      %p717 = por %p715, %p716
      %p719 = scmp.ne.s32.totalorder %s702, %s718
      %p720 = scmp.eq.s32.totalorder %s80, 0
      %p721 = por %p719, %p720
      %p722 = scmp.le.s32.totalorder 1, %s74
      %p723 = scmp.lt.s32.totalorder %s74, 3
      %p724 = pnand %p722, %p723
      %p725 = pneg %p724
      // Predicated region
      $region9: #{autoencoder_forward.1} parent=5 // pred_check
        _
      $region10: #{autoencoder_forward.1} parent=5 // pred_check_branch
        %727 = sbr.rel (%p724) target = $region12
      $region11: #{autoencoder_forward.1} parent=5 // pred_region
        %s728 = ssub.s32 %s74, 1
        // Predicated region
        $region13: #{autoencoder_forward.1} parent=11 // pred_check
          %p729 = pneg %p121
        $region14: #{autoencoder_forward.1} parent=11 // pred_check_branch
          %731 = sbr.rel (%p729) target = $region16
        $region15: #{autoencoder_forward.1} parent=11 // pred_region
          %s733 = ssub.s32 512, 512
          %734 = vsyncadd [#allocation3], %s733
          %s735 = sshll.u32 [#allocation2], 4
          %s736 = int_to_ptr.vmem [resolvable:$true] %s735
          %741 = dma.hbm_to_vmem [thread:$0]  %s3, 512, %s736, [#allocation3], 128, 128, 8
        $region16: #{autoencoder_forward.1} parent=11 // pred_fallthru
          _
        // Predicated region
        $region17: #{autoencoder_forward.1} parent=11 // pred_check
          %p742 = pneg %p142
        $region18: #{autoencoder_forward.1} parent=11 // pred_check_branch
          %744 = sbr.rel (%p742) target = $region20
        $region19: #{autoencoder_forward.1} parent=11 // pred_region
          %s746 = ssub.s32 512, 512
          %747 = vsyncadd [#allocation5], %s746
          %s748 = sshll.u32 [#allocation4], 4
          %s749 = int_to_ptr.vmem [resolvable:$true] %s748
          %754 = dma.hbm_to_vmem [thread:$0]  %s5, 512, %s749, [#allocation5], 128, 128, 8
        $region20: #{autoencoder_forward.1} parent=11 // pred_fallthru
          _
        // Predicated region
        $region21: #{autoencoder_forward.1} parent=11 // pred_check
          %p755 = pneg %p163
        $region22: #{autoencoder_forward.1} parent=11 // pred_check_branch
          %757 = sbr.rel (%p755) target = $region24
        $region23: #{autoencoder_forward.1} parent=11 // pred_region
          %s759 = ssub.s32 512, 512
          %760 = vsyncadd [#allocation5], %s759
          %s761 = sshll.u32 [#allocation6], 4
          %s762 = int_to_ptr.vmem [resolvable:$true] %s761
          %767 = dma.hbm_to_vmem [thread:$0]  %s7, 512, %s762, [#allocation5], 128, 128, 8
        $region24: #{autoencoder_forward.1} parent=11 // pred_fallthru
          _
        // Predicated region
        $region25: #{autoencoder_forward.1} parent=11 // pred_check
          %p768 = pneg %p184
        $region26: #{autoencoder_forward.1} parent=11 // pred_check_branch
          %770 = sbr.rel (%p768) target = $region28
        $region27: #{autoencoder_forward.1} parent=11 // pred_region
          %s772 = ssub.s32 32, 32
          %773 = vsyncadd [#allocation8], %s772
          %s775 = sshll.u32 [#allocation7], 4
          %s776 = int_to_ptr.vmem [resolvable:$true] %s775
          %778 = dma.hbm_to_vmem [thread:$0]  %s9, 32, %s776, [#allocation8]
        $region28: #{autoencoder_forward.1} parent=11 // pred_fallthru
          _
        // Predicated region
        $region29: #{autoencoder_forward.1} parent=11 // pred_check
          %p779 = pneg %p205
        $region30: #{autoencoder_forward.1} parent=11 // pred_check_branch
          %781 = sbr.rel (%p779) target = $region32
        $region31: #{autoencoder_forward.1} parent=11 // pred_region
          _
        $region32: #{autoencoder_forward.1} parent=11 // pred_fallthru
          _
        // Predicated region
        $region33: #{autoencoder_forward.1} parent=11 // pred_check
          %p782 = pneg %p226
        $region34: #{autoencoder_forward.1} parent=11 // pred_check_branch
          %784 = sbr.rel (%p782) target = $region36
        $region35: #{autoencoder_forward.1} parent=11 // pred_region
          _
        $region36: #{autoencoder_forward.1} parent=11 // pred_fallthru
          _
        // Predicated region
        $region37: #{autoencoder_forward.1} parent=11 // pred_check
          %p785 = pneg %p247
        $region38: #{autoencoder_forward.1} parent=11 // pred_check_branch
          %787 = sbr.rel (%p785) target = $region40
        $region39: #{autoencoder_forward.1} parent=11 // pred_region
          _
        $region40: #{autoencoder_forward.1} parent=11 // pred_fallthru
          _
        // Predicated region
        $region41: #{autoencoder_forward.1} parent=11 // pred_check
          %p788 = pneg %p268
        $region42: #{autoencoder_forward.1} parent=11 // pred_check_branch
          %790 = sbr.rel (%p788) target = $region44
        $region43: #{autoencoder_forward.1} parent=11 // pred_region
          %s792 = ssub.s32 32, 32
          %793 = vsyncadd [#allocation8], %s792
          %s795 = sshll.u32 [#allocation9], 4
          %s796 = int_to_ptr.vmem [resolvable:$true] %s795
          %798 = dma.hbm_to_vmem [thread:$0]  %s17, 32, %s796, [#allocation8]
        $region44: #{autoencoder_forward.1} parent=11 // pred_fallthru
          _
        // Predicated region
        $region45: #{autoencoder_forward.1} parent=11 // pred_check
          %p799 = pneg %p289
        $region46: #{autoencoder_forward.1} parent=11 // pred_check_branch
          %801 = sbr.rel (%p799) target = $region48
        $region47: #{autoencoder_forward.1} parent=11 // pred_region
          %s803 = ssub.s32 4096, 4096
          %804 = vsyncadd [#allocation11], %s803
          %s805 = sshll.u32 [#allocation10], 4
          %s806 = int_to_ptr.vmem [resolvable:$true] %s805
          %811 = dma.hbm_to_vmem [thread:$0]  %s19, 4096, %s806, [#allocation11], 128, 128, 8
        $region48: #{autoencoder_forward.1} parent=11 // pred_fallthru
          _
        // Predicated region
        $region49: #{autoencoder_forward.1} parent=11 // pred_check
          %p812 = pneg %p310
        $region50: #{autoencoder_forward.1} parent=11 // pred_check_branch
          %814 = sbr.rel (%p812) target = $region52
        $region51: #{autoencoder_forward.1} parent=11 // pred_region
          %s816 = ssub.s32 4096, 4096
          %817 = vsyncadd [#allocation11], %s816
          %s818 = sshll.u32 [#allocation12], 4
          %s819 = int_to_ptr.vmem [resolvable:$true] %s818
          %824 = dma.hbm_to_vmem [thread:$0]  %s21, 4096, %s819, [#allocation11], 128, 128, 8
        $region52: #{autoencoder_forward.1} parent=11 // pred_fallthru
          _
        // Predicated region
        $region53: #{autoencoder_forward.1} parent=11 // pred_check
          %p825 = pneg %p331
        $region54: #{autoencoder_forward.1} parent=11 // pred_check_branch
          %827 = sbr.rel (%p825) target = $region56
        $region55: #{autoencoder_forward.1} parent=11 // pred_region
          %s829 = ssub.s32 4096, 4096
          %830 = vsyncadd [#allocation14], %s829
          %s831 = sshll.u32 [#allocation13], 4
          %s832 = int_to_ptr.vmem [resolvable:$true] %s831
          %837 = dma.hbm_to_vmem [thread:$0]  %s23, 4096, %s832, [#allocation14], 128, 128, 8
        $region56: #{autoencoder_forward.1} parent=11 // pred_fallthru
          _
        // Predicated region
        $region57: #{autoencoder_forward.1} parent=11 // pred_check
          %p838 = pneg %p352
        $region58: #{autoencoder_forward.1} parent=11 // pred_check_branch
          %840 = sbr.rel (%p838) target = $region60
        $region59: #{autoencoder_forward.1} parent=11 // pred_region
          %s842 = ssub.s32 32, 32
          %843 = vsyncadd [#allocation14], %s842
          %s845 = sshll.u32 [#allocation15], 4
          %s846 = int_to_ptr.vmem [resolvable:$true] %s845
          %848 = dma.hbm_to_vmem [thread:$0]  %s25, 32, %s846, [#allocation14]
        $region60: #{autoencoder_forward.1} parent=11 // pred_fallthru
          _
        // Predicated region
        $region61: #{autoencoder_forward.1} parent=11 // pred_check
          %p849 = pneg %p373
        $region62: #{autoencoder_forward.1} parent=11 // pred_check_branch
          %851 = sbr.rel (%p849) target = $region64
        $region63: #{autoencoder_forward.1} parent=11 // pred_region
          _
        $region64: #{autoencoder_forward.1} parent=11 // pred_fallthru
          _
        // Predicated region
        $region65: #{autoencoder_forward.1} parent=11 // pred_check
          %p852 = pneg %p394
        $region66: #{autoencoder_forward.1} parent=11 // pred_check_branch
          %854 = sbr.rel (%p852) target = $region68
        $region67: #{autoencoder_forward.1} parent=11 // pred_region
          %s856 = ssub.s32 16, 16
          %857 = vsyncadd [#allocation17], %s856
          %s859 = sshll.u32 [#allocation16], 4
          %s860 = int_to_ptr.vmem [resolvable:$true] %s859
          %862 = dma.hbm_to_vmem [thread:$0]  %s29, 16, %s860, [#allocation17]
        $region68: #{autoencoder_forward.1} parent=11 // pred_fallthru
          _
        // Predicated region
        $region69: #{autoencoder_forward.1} parent=11 // pred_check
          %p863 = pneg %p415
        $region70: #{autoencoder_forward.1} parent=11 // pred_check_branch
          %865 = sbr.rel (%p863) target = $region72
        $region71: #{autoencoder_forward.1} parent=11 // pred_region
          %s867 = ssub.s32 512, 512
          %868 = vsyncadd [#allocation17], %s867
          %s869 = sshll.u32 [#allocation18], 4
          %s870 = int_to_ptr.vmem [resolvable:$true] %s869
          %875 = dma.hbm_to_vmem [thread:$0]  %s31, 512, %s870, [#allocation17], 128, 128, 8
        $region72: #{autoencoder_forward.1} parent=11 // pred_fallthru
          _
        // Predicated region
        $region73: #{autoencoder_forward.1} parent=11 // pred_check
          %p876 = pneg %p436
        $region74: #{autoencoder_forward.1} parent=11 // pred_check_branch
          %878 = sbr.rel (%p876) target = $region76
        $region75: #{autoencoder_forward.1} parent=11 // pred_region
          %s880 = ssub.s32 32, 32
          %881 = vsyncadd [#allocation20], %s880
          %s883 = sshll.u32 [#allocation19], 4
          %s884 = int_to_ptr.vmem [resolvable:$true] %s883
          %886 = dma.hbm_to_vmem [thread:$0]  %s33, 32, %s884, [#allocation20]
        $region76: #{autoencoder_forward.1} parent=11 // pred_fallthru
          _
        // Predicated region
        $region77: #{autoencoder_forward.1} parent=11 // pred_check
          %p887 = pneg %p457
        $region78: #{autoencoder_forward.1} parent=11 // pred_check_branch
          %889 = sbr.rel (%p887) target = $region80
        $region79: #{autoencoder_forward.1} parent=11 // pred_region
          _
        $region80: #{autoencoder_forward.1} parent=11 // pred_fallthru
          _
        // Predicated region
        $region81: #{autoencoder_forward.1} parent=11 // pred_check
          %p890 = pneg %p478
        $region82: #{autoencoder_forward.1} parent=11 // pred_check_branch
          %892 = sbr.rel (%p890) target = $region84
        $region83: #{autoencoder_forward.1} parent=11 // pred_region
          %s894 = ssub.s32 1024, 1024
          %895 = vsyncadd [#allocation20], %s894
          %s896 = sshll.u32 [#allocation21], 4
          %s897 = int_to_ptr.vmem [resolvable:$true] %s896
          %902 = dma.hbm_to_vmem [thread:$0]  %s37, 1024, %s897, [#allocation20], 64, 64, 4
        $region84: #{autoencoder_forward.1} parent=11 // pred_fallthru
          _
        // Predicated region
        $region85: #{autoencoder_forward.1} parent=11 // pred_check
          %p903 = pneg %p499
        $region86: #{autoencoder_forward.1} parent=11 // pred_check_branch
          %905 = sbr.rel (%p903) target = $region88
        $region87: #{autoencoder_forward.1} parent=11 // pred_region
          %s907 = ssub.s32 1024, 1024
          %908 = vsyncadd [#allocation23], %s907
          %s909 = sshll.u32 [#allocation22], 4
          %s910 = int_to_ptr.vmem [resolvable:$true] %s909
          %915 = dma.hbm_to_vmem [thread:$0]  %s39, 1024, %s910, [#allocation23], 64, 64, 4
        $region88: #{autoencoder_forward.1} parent=11 // pred_fallthru
          _
        // Predicated region
        $region89: #{autoencoder_forward.1} parent=11 // pred_check
          %p916 = pneg %p520
        $region90: #{autoencoder_forward.1} parent=11 // pred_check_branch
          %918 = sbr.rel (%p916) target = $region92
        $region91: #{autoencoder_forward.1} parent=11 // pred_region
          _
        $region92: #{autoencoder_forward.1} parent=11 // pred_fallthru
          _
        // Predicated region
        $region93: #{autoencoder_forward.1} parent=11 // pred_check
          %p919 = pneg %p541
        $region94: #{autoencoder_forward.1} parent=11 // pred_check_branch
          %921 = sbr.rel (%p919) target = $region96
        $region95: #{autoencoder_forward.1} parent=11 // pred_region
          %s923 = ssub.s32 1024, 1024
          %924 = vsyncadd [#allocation23], %s923
          %s925 = sshll.u32 [#allocation24], 4
          %s926 = int_to_ptr.vmem [resolvable:$true] %s925
          %931 = dma.hbm_to_vmem [thread:$0]  %s43, 1024, %s926, [#allocation23], 64, 64, 4
        $region96: #{autoencoder_forward.1} parent=11 // pred_fallthru
          _
        // Predicated region
        $region97: #{autoencoder_forward.1} parent=11 // pred_check
          %p932 = pneg %p562
        $region98: #{autoencoder_forward.1} parent=11 // pred_check_branch
          %934 = sbr.rel (%p932) target = $region100
        $region99: #{autoencoder_forward.1} parent=11 // pred_region
          %s936 = ssub.s32 1024, 1024
          %937 = vsyncadd [#allocation26], %s936
          %s938 = sshll.u32 [#allocation25], 4
          %s939 = int_to_ptr.vmem [resolvable:$true] %s938
          %944 = dma.hbm_to_vmem [thread:$0]  %s45, 1024, %s939, [#allocation26], 64, 64, 4
        $region100: #{autoencoder_forward.1} parent=11 // pred_fallthru
          _
        // Predicated region
        $region101: #{autoencoder_forward.1} parent=11 // pred_check
          %p945 = pneg %p583
        $region102: #{autoencoder_forward.1} parent=11 // pred_check_branch
          %947 = sbr.rel (%p945) target = $region104
        $region103: #{autoencoder_forward.1} parent=11 // pred_region
          %s949 = ssub.s32 1024, 1024
          %950 = vsyncadd [#allocation26], %s949
          %s951 = sshll.u32 [#allocation27], 4
          %s952 = int_to_ptr.vmem [resolvable:$true] %s951
          %957 = dma.hbm_to_vmem [thread:$0]  %s47, 1024, %s952, [#allocation26], 64, 64, 4
        $region104: #{autoencoder_forward.1} parent=11 // pred_fallthru
          _
        // Predicated region
        $region105: #{autoencoder_forward.1} parent=11 // pred_check
          %p958 = pneg %p604
        $region106: #{autoencoder_forward.1} parent=11 // pred_check_branch
          %960 = sbr.rel (%p958) target = $region108
        $region107: #{autoencoder_forward.1} parent=11 // pred_region
          _
        $region108: #{autoencoder_forward.1} parent=11 // pred_fallthru
          _
        // Predicated region
        $region109: #{autoencoder_forward.1} parent=11 // pred_check
          %p961 = pneg %p625
        $region110: #{autoencoder_forward.1} parent=11 // pred_check_branch
          %963 = sbr.rel (%p961) target = $region112
        $region111: #{autoencoder_forward.1} parent=11 // pred_region
          _
        $region112: #{autoencoder_forward.1} parent=11 // pred_fallthru
          _
        // Predicated region
        $region113: #{autoencoder_forward.1} parent=11 // pred_check
          %p964 = pneg %p646
        $region114: #{autoencoder_forward.1} parent=11 // pred_check_branch
          %966 = sbr.rel (%p964) target = $region116
        $region115: #{autoencoder_forward.1} parent=11 // pred_region
          _
        $region116: #{autoencoder_forward.1} parent=11 // pred_fallthru
          _
        // Predicated region
        $region117: #{autoencoder_forward.1} parent=11 // pred_check
          %p967 = pneg %p667
        $region118: #{autoencoder_forward.1} parent=11 // pred_check_branch
          %969 = sbr.rel (%p967) target = $region120
        $region119: #{autoencoder_forward.1} parent=11 // pred_region
          _
        $region120: #{autoencoder_forward.1} parent=11 // pred_fallthru
          _
        // Predicated region
        $region121: #{autoencoder_forward.1} parent=11 // pred_check
          %p970 = pneg %p688
        $region122: #{autoencoder_forward.1} parent=11 // pred_check_branch
          %972 = sbr.rel (%p970) target = $region124
        $region123: #{autoencoder_forward.1} parent=11 // pred_region
          _
        $region124: #{autoencoder_forward.1} parent=11 // pred_fallthru
          _
      $region12: #{autoencoder_forward.1} parent=5 // pred_fallthru
        _
      %p973 = scmp.lt.s32.totalorder %s74, 2
      // Predicated region
      $region125: #{autoencoder_forward.1} parent=5 // pred_check
        %p974 = pneg %p973
      $region126: #{autoencoder_forward.1} parent=5 // pred_check_branch
        %976 = sbr.rel (%p974) target = $region128
      $region127: #{autoencoder_forward.1} parent=5 // pred_region
        // Predicated region
        $region129: #{autoencoder_forward.1} parent=127 // pred_check
          %p977 = pneg %p94
        $region130: #{autoencoder_forward.1} parent=127 // pred_check_branch
          %979 = sbr.rel (%p977) target = $region132
        $region131: #{autoencoder_forward.1} parent=127 // pred_region
          %s980 = smul.u32 2, %s74
          %p981 = scmp.lt.s32.totalorder %s980, 3
          %s982 = scalar_select %p981, %s980, 3
          %s983 = smul.addr %s982, 8
          %s984 = scalar_lea.vmem %s1, %s983
          %s985 = smul.u32 2, %s74
        $region132: #{autoencoder_forward.1} parent=127 // pred_fallthru
          _
      $region128: #{autoencoder_forward.1} parent=5 // pred_fallthru
        _
      %p986 = scmp.le.s32.totalorder 1, %s74
      %p987 = scmp.lt.s32.totalorder %s74, 3
      %p988 = pnand %p986, %p987
      %p989 = pneg %p988
      // Predicated region
      $region133: #{autoencoder_forward.1} parent=5 // pred_check
        _
      $region134: #{autoencoder_forward.1} parent=5 // pred_check_branch
        %991 = sbr.rel (%p988) target = $region136
      $region135: #{autoencoder_forward.1} parent=5 // pred_region
        %s992 = ssub.s32 %s74, 1
        // Predicated region
        $region137: #{autoencoder_forward.1} parent=135 // pred_check
          %p993 = pneg %p121
        $region138: #{autoencoder_forward.1} parent=135 // pred_check_branch
          %995 = sbr.rel (%p993) target = $region140
        $region139: #{autoencoder_forward.1} parent=135 // pred_region
          %996 = dma.done [#allocation3], 512
        $region140: #{autoencoder_forward.1} parent=135 // pred_fallthru
          _
        // Predicated region
        $region141: #{autoencoder_forward.1} parent=135 // pred_check
          %p997 = pneg %p142
        $region142: #{autoencoder_forward.1} parent=135 // pred_check_branch
          %999 = sbr.rel (%p997) target = $region144
        $region143: #{autoencoder_forward.1} parent=135 // pred_region
          %1000 = dma.done [#allocation5], 512
        $region144: #{autoencoder_forward.1} parent=135 // pred_fallthru
          _
        // Predicated region
        $region145: #{autoencoder_forward.1} parent=135 // pred_check
          %p1001 = pneg %p163
        $region146: #{autoencoder_forward.1} parent=135 // pred_check_branch
          %1003 = sbr.rel (%p1001) target = $region148
        $region147: #{autoencoder_forward.1} parent=135 // pred_region
          %1004 = dma.done [#allocation5], 512
        $region148: #{autoencoder_forward.1} parent=135 // pred_fallthru
          _
        // Predicated region
        $region149: #{autoencoder_forward.1} parent=135 // pred_check
          %p1005 = pneg %p184
        $region150: #{autoencoder_forward.1} parent=135 // pred_check_branch
          %1007 = sbr.rel (%p1005) target = $region152
        $region151: #{autoencoder_forward.1} parent=135 // pred_region
          %1008 = dma.done [#allocation8], 32
        $region152: #{autoencoder_forward.1} parent=135 // pred_fallthru
          _
        // Predicated region
        $region153: #{autoencoder_forward.1} parent=135 // pred_check
          %p1009 = pneg %p268
        $region154: #{autoencoder_forward.1} parent=135 // pred_check_branch
          %1011 = sbr.rel (%p1009) target = $region156
        $region155: #{autoencoder_forward.1} parent=135 // pred_region
          %1012 = dma.done [#allocation8], 32
        $region156: #{autoencoder_forward.1} parent=135 // pred_fallthru
          _
        // Predicated region
        $region157: #{autoencoder_forward.1} parent=135 // pred_check
          %p1013 = pneg %p289
        $region158: #{autoencoder_forward.1} parent=135 // pred_check_branch
          %1015 = sbr.rel (%p1013) target = $region160
        $region159: #{autoencoder_forward.1} parent=135 // pred_region
          %1016 = dma.done [#allocation11], 4096
        $region160: #{autoencoder_forward.1} parent=135 // pred_fallthru
          _
        // Predicated region
        $region161: #{autoencoder_forward.1} parent=135 // pred_check
          %p1017 = pneg %p310
        $region162: #{autoencoder_forward.1} parent=135 // pred_check_branch
          %1019 = sbr.rel (%p1017) target = $region164
        $region163: #{autoencoder_forward.1} parent=135 // pred_region
          %1020 = dma.done [#allocation11], 4096
        $region164: #{autoencoder_forward.1} parent=135 // pred_fallthru
          _
        // Predicated region
        $region165: #{autoencoder_forward.1} parent=135 // pred_check
          %p1021 = pneg %p331
        $region166: #{autoencoder_forward.1} parent=135 // pred_check_branch
          %1023 = sbr.rel (%p1021) target = $region168
        $region167: #{autoencoder_forward.1} parent=135 // pred_region
          %1024 = dma.done [#allocation14], 4096
        $region168: #{autoencoder_forward.1} parent=135 // pred_fallthru
          _
        // Predicated region
        $region169: #{autoencoder_forward.1} parent=135 // pred_check
          %p1025 = pneg %p352
        $region170: #{autoencoder_forward.1} parent=135 // pred_check_branch
          %1027 = sbr.rel (%p1025) target = $region172
        $region171: #{autoencoder_forward.1} parent=135 // pred_region
          %1028 = dma.done [#allocation14], 32
        $region172: #{autoencoder_forward.1} parent=135 // pred_fallthru
          _
        // Predicated region
        $region173: #{autoencoder_forward.1} parent=135 // pred_check
          %p1029 = pneg %p394
        $region174: #{autoencoder_forward.1} parent=135 // pred_check_branch
          %1031 = sbr.rel (%p1029) target = $region176
        $region175: #{autoencoder_forward.1} parent=135 // pred_region
          %1032 = dma.done [#allocation17], 16
        $region176: #{autoencoder_forward.1} parent=135 // pred_fallthru
          _
        // Predicated region
        $region177: #{autoencoder_forward.1} parent=135 // pred_check
          %p1033 = pneg %p415
        $region178: #{autoencoder_forward.1} parent=135 // pred_check_branch
          %1035 = sbr.rel (%p1033) target = $region180
        $region179: #{autoencoder_forward.1} parent=135 // pred_region
          %1036 = dma.done [#allocation17], 512
        $region180: #{autoencoder_forward.1} parent=135 // pred_fallthru
          _
        // Predicated region
        $region181: #{autoencoder_forward.1} parent=135 // pred_check
          %p1037 = pneg %p436
        $region182: #{autoencoder_forward.1} parent=135 // pred_check_branch
          %1039 = sbr.rel (%p1037) target = $region184
        $region183: #{autoencoder_forward.1} parent=135 // pred_region
          %1040 = dma.done [#allocation20], 32
        $region184: #{autoencoder_forward.1} parent=135 // pred_fallthru
          _
        // Predicated region
        $region185: #{autoencoder_forward.1} parent=135 // pred_check
          %p1041 = pneg %p478
        $region186: #{autoencoder_forward.1} parent=135 // pred_check_branch
          %1043 = sbr.rel (%p1041) target = $region188
        $region187: #{autoencoder_forward.1} parent=135 // pred_region
          %1044 = dma.done [#allocation20], 1024
        $region188: #{autoencoder_forward.1} parent=135 // pred_fallthru
          _
        // Predicated region
        $region189: #{autoencoder_forward.1} parent=135 // pred_check
          %p1045 = pneg %p499
        $region190: #{autoencoder_forward.1} parent=135 // pred_check_branch
          %1047 = sbr.rel (%p1045) target = $region192
        $region191: #{autoencoder_forward.1} parent=135 // pred_region
          %1048 = dma.done [#allocation23], 1024
        $region192: #{autoencoder_forward.1} parent=135 // pred_fallthru
          _
        // Predicated region
        $region193: #{autoencoder_forward.1} parent=135 // pred_check
          %p1049 = pneg %p541
        $region194: #{autoencoder_forward.1} parent=135 // pred_check_branch
          %1051 = sbr.rel (%p1049) target = $region196
        $region195: #{autoencoder_forward.1} parent=135 // pred_region
          %1052 = dma.done [#allocation23], 1024
        $region196: #{autoencoder_forward.1} parent=135 // pred_fallthru
          _
        // Predicated region
        $region197: #{autoencoder_forward.1} parent=135 // pred_check
          %p1053 = pneg %p562
        $region198: #{autoencoder_forward.1} parent=135 // pred_check_branch
          %1055 = sbr.rel (%p1053) target = $region200
        $region199: #{autoencoder_forward.1} parent=135 // pred_region
          %1056 = dma.done [#allocation26], 1024
        $region200: #{autoencoder_forward.1} parent=135 // pred_fallthru
          _
        // Predicated region
        $region201: #{autoencoder_forward.1} parent=135 // pred_check
          %p1057 = pneg %p583
        $region202: #{autoencoder_forward.1} parent=135 // pred_check_branch
          %1059 = sbr.rel (%p1057) target = $region204
        $region203: #{autoencoder_forward.1} parent=135 // pred_region
          %1060 = dma.done [#allocation26], 1024
        $region204: #{autoencoder_forward.1} parent=135 // pred_fallthru
          _
        %s1061 = smul.u32 2, %s79
        %p1062 = scmp.lt.s32.totalorder %s1061, 3
        %s1063 = scalar_select %p1062, %s1061, 3
        %s1064 = smul.addr %s1063, 8
        %s1065 = scalar_lea.vmem %s1, %s1064
        %p1066 = pneg %p100
        %p1067 = pneg %p97
        %p1068 = pneg %p121
        %p1069 = pneg %p118
        %p1070 = pneg %p142
        %p1071 = pneg %p139
        %p1072 = pneg %p163
        %p1073 = pneg %p160
        %p1074 = pneg %p184
        %p1075 = pneg %p181
        %p1076 = pneg %p205
        %p1077 = pneg %p202
        %p1078 = pneg %p226
        %p1079 = pneg %p223
        %p1080 = pneg %p247
        %p1081 = pneg %p244
        %p1082 = pneg %p268
        %p1083 = pneg %p265
        %p1084 = pneg %p289
        %p1085 = pneg %p286
        %p1086 = pneg %p310
        %p1087 = pneg %p307
        %p1088 = pneg %p331
        %p1089 = pneg %p328
        %p1090 = pneg %p352
        %p1091 = pneg %p349
        %p1092 = pneg %p373
        %p1093 = pneg %p370
        %p1094 = pneg %p394
        %p1095 = pneg %p391
        %p1096 = pneg %p415
        %p1097 = pneg %p412
        %p1098 = pneg %p436
        %p1099 = pneg %p433
        %p1100 = pneg %p457
        %p1101 = pneg %p454
        %p1102 = pneg %p478
        %p1103 = pneg %p475
        %p1104 = pneg %p499
        %p1105 = pneg %p496
        %p1106 = pneg %p520
        %p1107 = pneg %p517
        %p1108 = pneg %p541
        %p1109 = pneg %p538
        %p1110 = pneg %p562
        %p1111 = pneg %p559
        %p1112 = pneg %p583
        %p1113 = pneg %p580
        %p1114 = pneg %p604
        %p1115 = pneg %p601
        %p1116 = pneg %p625
        %p1117 = pneg %p622
        %p1118 = pneg %p646
        %p1119 = pneg %p643
        %p1120 = pneg %p667
        %p1121 = pneg %p664
        %p1122 = pneg %p688
        %p1123 = pneg %p685
        %p1124 = pneg %p714
        %p1125 = pneg %p711
        %s1126 = smul.u32 2, %s79
        %p1127 = scmp.lt.s32.totalorder %s1126, 3
        %s1128 = scalar_select %p1127, %s1126, 3
        %s1129 = smul.addr %s1128, 8
        %s1130 = scalar_lea.vmem %s59, %s1129
        %s1131 = smul.u32 2, %s79
        %p1132 = scmp.lt.s32.totalorder %s1131, 3
        %s1133 = scalar_select %p1132, %s1131, 3
        %s1134 = smul.addr %s1133, 8
        %s1135 = scalar_lea.vmem %s1, %s1134
        %s1136 = smul.u32 2, %s79
        %s1137 = smul.u32 2, %s79
        %p1138 = scmp.lt.s32.totalorder %s1137, 3
        %s1139 = scalar_select %p1138, %s1137, 3
        %s1140 = smul.addr %s1139, 8
        %s1141 = scalar_lea.vmem %s59, %s1140
        %s1142 = smul.u32 2, %s79
        %v1144 = vlaneseq
        %v1145 = vshrl.u32 %v1144, 7
        %v1146 = vadd.s32 %v1145, 8
        %v1147 = vld [vmem:[%s1135] sm:$0xff]
        %v1148 = vld [vmem:[%s1135 + $0x8] sm:$0xff]
        %vm1149 = vcmp.ge.s32.totalorder %v1145, 1
        %vm1150 = vcmp.ge.s32.totalorder %v1146, 1
        %v1151 = vrot.slane %v1147, 7
        %v1152 = vrot.slane %v1148, 7
        %vm1153 = vcmp.lt.s32.totalorder %v1145, 1
        %v1154 = vsel %vm1153, %v1151, %v1152
        %v1155 = vsel %vm1153, %v1152, %v1151
        %v1156 = vsel %vm1149, 1, 0
        %v1157 = vsel %vm1150, 1, 0
        %vm1158 = vcmp.eq.s32.totalorder %v1156, 1
        %vm1159 = vcmp.eq.s32.totalorder %v1157, 1
        %v1160 = vsel %vm1158, %v1155, 0.0
        %v1161 = vsel %vm1159, %v1154, 0.0
        %vm1162 = vcmp.lt.s32.totalorder %v1145, 15
        %vm1163 = vcmp.lt.s32.totalorder %v1146, 15
        %v1164 = vrot.slane %v1147, 1
        %v1165 = vrot.slane %v1148, 1
        %vm1166 = vcmp.lt.s32.totalorder %v1145, 7
        %v1167 = vsel %vm1166, %v1164, %v1165
        %v1168 = vsel %vm1166, %v1165, %v1164
        %v1169 = vsel %vm1162, 1, 0
        %v1170 = vsel %vm1163, 1, 0
        %vm1171 = vcmp.eq.s32.totalorder %v1169, 1
        %vm1172 = vcmp.eq.s32.totalorder %v1170, 1
        %v1173 = vsel %vm1171, %v1167, 0.0
        %v1174 = vsel %vm1172, %v1168, 0.0
        %v1175 = vpack.c.bf16 %v1161, %v1160
        %v1176 = vld [vmem:[#allocation2] sm:$0xff]
        %v1177 = vld [vmem:[#allocation2 + $0x8] sm:$0xff]
        %v1178 = vld [vmem:[#allocation2 + $0x10] sm:$0xff]
        %v1179 = vld [vmem:[#allocation2 + $0x18] sm:$0xff]
        %v1180 = vpack.c.bf16 %v1148, %v1147
        %v1181 = vld [vmem:[#allocation4] sm:$0xff]
        %v1182 = vld [vmem:[#allocation4 + $0x8] sm:$0xff]
        %v1183 = vld [vmem:[#allocation4 + $0x10] sm:$0xff]
        %v1184 = vld [vmem:[#allocation4 + $0x18] sm:$0xff]
        %v1189 = vunpack.c.l.b16 %v1181
        %v1190 = vunpack.c.h.b16 %v1181
        %v1191 = vunpack.c.l.b16 %v1182
        %v1192 = vunpack.c.h.b16 %v1182
        %v1193 = vunpack.c.l.b16 %v1183
        %v1194 = vunpack.c.h.b16 %v1183
        %v1195 = vunpack.c.l.b16 %v1184
        %v1196 = vunpack.c.h.b16 %v1184
        %v1197 = vpack.c.b16 %v1191, %v1189
        %v1198 = vpack.c.b16 %v1192, %v1190
        %v1199 = vpack.c.b16 %v1195, %v1193
        %v1200 = vpack.c.b16 %v1196, %v1194
        %vm1205 = vcmask 261120
        %v1207 = vsel %vm1205, %v1180, 0
        %1209 = vmatprep.subr.bf16.mxu0 %v1198
        %1210 = vmatpush1.bf16.msra.mxu0 %v1197
        %1211 = vmatprep.subr.bf16.mxu0 %v1200
        %1212 = vmatpush1.bf16.msra.mxu0 %v1199
        %1213 = vmatprep.subr.bf16.mxu0 0
        %1214 = vmatpush1.bf16.msra.mxu0 0
        %1215 = vmatprep.subr.bf16.mxu0 0
        %1216 = vmatpush1.bf16.msra.mxu0 0
        %1217 = vmatprep.subr.bf16.mxu0 0
        %1218 = vmatpush1.bf16.msra.mxu0 0
        %1219 = vmatprep.subr.bf16.mxu0 0
        %1220 = vmatpush1.bf16.msra.mxu0 0
        %1221 = vmatprep.subr.bf16.mxu0 0
        %1222 = vmatpush1.bf16.msra.mxu0 0
        %1223 = vmatprep.subr.bf16.mxu0 0
        %1224 = vmatpush1.bf16.msra.mxu0 0
        %1225 = vmatprep.subr.bf16.mxu0 0
        %1226 = vmatpush1.bf16.msra.mxu0 0
        %1227 = vmatprep.subr.bf16.mxu0 0
        %1228 = vmatpush1.bf16.msra.mxu0 0
        %1229 = vmatprep.subr.bf16.mxu0 0
        %1230 = vmatpush1.bf16.msra.mxu0 0
        %1231 = vmatprep.subr.bf16.mxu0 0
        %1232 = vmatpush1.bf16.msra.mxu0 0
        %1233 = vmatprep.subr.bf16.mxu0 0
        %1234 = vmatpush1.bf16.msra.mxu0 0
        %1235 = vmatprep.subr.bf16.mxu0 0
        %1236 = vmatpush1.bf16.msra.mxu0 0
        %1237 = vmatprep.subr.bf16.mxu0 0
        %1238 = vmatpush1.bf16.msra.mxu0 0
        %1239 = vmatprep.subr.bf16.mxu0 0
        %1240 = vmatpush1.bf16.msra.mxu0 0
        %1241 = vmatprep.mubr.bf16.mxu0 0
        %1242 = vmatmul.mubr.bf16.gmra.mrb[0].mxu0 %v1207
        %v1243 = vpop.f32.mrb[0].mxu0
        %v1244 = vadd.f32 0.0, %v1243
        %v1245 = vpop.f32.mrb[0].mxu0
        %v1246 = vadd.f32 0.0, %v1245
        %v1247 = vpop.f32.mrb[0].mxu0
        %v1248 = vadd.f32 0.0, %v1247
        %v1249 = vpop.f32.mrb[0].mxu0
        %v1250 = vadd.f32 0.0, %v1249
        %1251 = vdwg.mxu0
        %v1256 = vunpack.c.l.b16 %v1176
        %v1257 = vunpack.c.h.b16 %v1176
        %v1258 = vunpack.c.l.b16 %v1177
        %v1259 = vunpack.c.h.b16 %v1177
        %v1260 = vunpack.c.l.b16 %v1178
        %v1261 = vunpack.c.h.b16 %v1178
        %v1262 = vunpack.c.l.b16 %v1179
        %v1263 = vunpack.c.h.b16 %v1179
        %v1264 = vpack.c.b16 %v1258, %v1256
        %v1265 = vpack.c.b16 %v1259, %v1257
        %v1266 = vpack.c.b16 %v1262, %v1260
        %v1267 = vpack.c.b16 %v1263, %v1261
        %v1273 = vsel %vm1205, %v1175, 0
        %1275 = vmatprep.subr.bf16.mxu0 %v1265
        %1276 = vmatpush1.bf16.msra.mxu0 %v1264
        %1277 = vmatprep.subr.bf16.mxu0 %v1267
        %1278 = vmatpush1.bf16.msra.mxu0 %v1266
        %1279 = vmatprep.subr.bf16.mxu0 0
        %1280 = vmatpush1.bf16.msra.mxu0 0
        %1281 = vmatprep.subr.bf16.mxu0 0
        %1282 = vmatpush1.bf16.msra.mxu0 0
        %1283 = vmatprep.subr.bf16.mxu0 0
        %1284 = vmatpush1.bf16.msra.mxu0 0
        %1285 = vmatprep.subr.bf16.mxu0 0
        %1286 = vmatpush1.bf16.msra.mxu0 0
        %1287 = vmatprep.subr.bf16.mxu0 0
        %1288 = vmatpush1.bf16.msra.mxu0 0
        %1289 = vmatprep.subr.bf16.mxu0 0
        %1290 = vmatpush1.bf16.msra.mxu0 0
        %1291 = vmatprep.subr.bf16.mxu0 0
        %1292 = vmatpush1.bf16.msra.mxu0 0
        %1293 = vmatprep.subr.bf16.mxu0 0
        %1294 = vmatpush1.bf16.msra.mxu0 0
        %1295 = vmatprep.subr.bf16.mxu0 0
        %1296 = vmatpush1.bf16.msra.mxu0 0
        %1297 = vmatprep.subr.bf16.mxu0 0
        %1298 = vmatpush1.bf16.msra.mxu0 0
        %1299 = vmatprep.subr.bf16.mxu0 0
        %1300 = vmatpush1.bf16.msra.mxu0 0
        %1301 = vmatprep.subr.bf16.mxu0 0
        %1302 = vmatpush1.bf16.msra.mxu0 0
        %1303 = vmatprep.subr.bf16.mxu0 0
        %1304 = vmatpush1.bf16.msra.mxu0 0
        %1305 = vmatprep.subr.bf16.mxu0 0
        %1306 = vmatpush1.bf16.msra.mxu0 0
        %1307 = vmatprep.mubr.bf16.mxu0 0
        %1308 = vmatmul.mubr.bf16.gmra.mrb[0].mxu0 %v1273
        %v1309 = vpop.f32.mrb[0].mxu0
        %v1310 = vadd.f32 %v1244, %v1309
        %v1311 = vpop.f32.mrb[0].mxu0
        %v1312 = vadd.f32 %v1246, %v1311
        %v1313 = vpop.f32.mrb[0].mxu0
        %v1314 = vadd.f32 %v1248, %v1313
        %v1315 = vpop.f32.mrb[0].mxu0
        %v1316 = vadd.f32 %v1250, %v1315
        %1317 = vdwg.mxu0
        %v1318 = vpack.c.bf16 %v1174, %v1173
        %v1319 = vld [vmem:[#allocation6] sm:$0xff]
        %v1320 = vld [vmem:[#allocation6 + $0x8] sm:$0xff]
        %v1321 = vld [vmem:[#allocation6 + $0x10] sm:$0xff]
        %v1322 = vld [vmem:[#allocation6 + $0x18] sm:$0xff]
        %v1327 = vunpack.c.l.b16 %v1319
        %v1328 = vunpack.c.h.b16 %v1319
        %v1329 = vunpack.c.l.b16 %v1320
        %v1330 = vunpack.c.h.b16 %v1320
        %v1331 = vunpack.c.l.b16 %v1321
        %v1332 = vunpack.c.h.b16 %v1321
        %v1333 = vunpack.c.l.b16 %v1322
        %v1334 = vunpack.c.h.b16 %v1322
        %v1335 = vpack.c.b16 %v1329, %v1327
        %v1336 = vpack.c.b16 %v1330, %v1328
        %v1337 = vpack.c.b16 %v1333, %v1331
        %v1338 = vpack.c.b16 %v1334, %v1332
        %v1344 = vsel %vm1205, %v1318, 0
        %1346 = vmatprep.subr.bf16.mxu0 %v1336
        %1347 = vmatpush1.bf16.msra.mxu0 %v1335
        %1348 = vmatprep.subr.bf16.mxu0 %v1338
        %1349 = vmatpush1.bf16.msra.mxu0 %v1337
        %1350 = vmatprep.subr.bf16.mxu0 0
        %1351 = vmatpush1.bf16.msra.mxu0 0
        %1352 = vmatprep.subr.bf16.mxu0 0
        %1353 = vmatpush1.bf16.msra.mxu0 0
        %1354 = vmatprep.subr.bf16.mxu0 0
        %1355 = vmatpush1.bf16.msra.mxu0 0
        %1356 = vmatprep.subr.bf16.mxu0 0
        %1357 = vmatpush1.bf16.msra.mxu0 0
        %1358 = vmatprep.subr.bf16.mxu0 0
        %1359 = vmatpush1.bf16.msra.mxu0 0
        %1360 = vmatprep.subr.bf16.mxu0 0
        %1361 = vmatpush1.bf16.msra.mxu0 0
        %1362 = vmatprep.subr.bf16.mxu0 0
        %1363 = vmatpush1.bf16.msra.mxu0 0
        %1364 = vmatprep.subr.bf16.mxu0 0
        %1365 = vmatpush1.bf16.msra.mxu0 0
        %1366 = vmatprep.subr.bf16.mxu0 0
        %1367 = vmatpush1.bf16.msra.mxu0 0
        %1368 = vmatprep.subr.bf16.mxu0 0
        %1369 = vmatpush1.bf16.msra.mxu0 0
        %1370 = vmatprep.subr.bf16.mxu0 0
        %1371 = vmatpush1.bf16.msra.mxu0 0
        %1372 = vmatprep.subr.bf16.mxu0 0
        %1373 = vmatpush1.bf16.msra.mxu0 0
        %1374 = vmatprep.subr.bf16.mxu0 0
        %1375 = vmatpush1.bf16.msra.mxu0 0
        %1376 = vmatprep.subr.bf16.mxu0 0
        %1377 = vmatpush1.bf16.msra.mxu0 0
        %1378 = vmatprep.mubr.bf16.mxu0 0
        %1379 = vmatmul.mubr.bf16.gmra.mrb[0].mxu0 %v1344
        %v1380 = vpop.f32.mrb[0].mxu0
        %v1381 = vadd.f32 0.0, %v1380
        %v1382 = vpop.f32.mrb[0].mxu0
        %v1383 = vadd.f32 0.0, %v1382
        %v1384 = vpop.f32.mrb[0].mxu0
        %v1385 = vadd.f32 0.0, %v1384
        %v1386 = vpop.f32.mrb[0].mxu0
        %v1387 = vadd.f32 0.0, %v1386
        %1388 = vdwg.mxu0
        %v1389 = vadd.f32 %v1310, %v1381
        %v1390 = vadd.f32 %v1312, %v1383
        %v1391 = vadd.f32 %v1314, %v1385
        %v1392 = vadd.f32 %v1316, %v1387
        %v1393 = vld [vmem:[#allocation7] sm:$0x3]
        %v1395 = vlaneseq
        %v1396 = vshrl.u32 %v1395, 7
        %v1397 = vsub.s32 0, %v1396
        %v1398 = vrot.slane %v1393, %v1397
        %v1399 = vlaneseq
        %v1400 = vshrl.u32 %v1399, 7
        %v1401 = vsub.s32 1, %v1400
        %v1402 = vrot.slane %v1393, %v1401
        %v1405 = vadd.f32 %v1389, %v1398
        %v1406 = vadd.f32 %v1390, %v1402
        %v1407 = vadd.f32 %v1391, %v1398
        %v1408 = vadd.f32 %v1392, %v1402
        %v1409 = vmax.f32 %v1405, 0.0
        %v1410 = vmax.f32 %v1406, 0.0
        %v1411 = vmax.f32 %v1407, 0.0
        %v1412 = vmax.f32 %v1408, 0.0
        %v1413 = vrot.slane %v1409, 1
        %v1414 = vrot.slane %v1410, 1
        %v1415 = vrot.slane %v1411, 1
        %v1416 = vrot.slane %v1412, 1
        %v1417 = vsel %vm1166, %v1413, %v1415
        %v1418 = vsel %vm1166, %v1414, %v1416
        %v1419 = vsel %vm1166, %v1415, %v1413
        %v1420 = vsel %vm1166, %v1416, %v1414
        %v1421 = vmax.f32 %v1409, %v1417
        %v1422 = vmax.f32 %v1410, %v1418
        %v1423 = vmax.f32 %v1411, %v1419
        %v1424 = vmax.f32 %v1412, %v1420
        %1425 = vrot.lane.b32.xlu0 %v1421, 112
        %v1426 = vpop.permute.xlu0 %1425
        %1427 = vrot.lane.b32.xlu0 %v1423, 112
        %v1428 = vpop.permute.xlu0 %1427
        %1429 = vrot.lane.b32.xlu0 %v1422, 112
        %v1430 = vpop.permute.xlu0 %1429
        %1431 = vrot.lane.b32.xlu0 %v1424, 112
        %v1432 = vpop.permute.xlu0 %1431
        %v1433 = vlaneseq
        %v1434 = vand.u32 %v1433, 127
        %vm1435 = vcmp.lt.s32.totalorder %v1434, 112
        %v1436 = vsel %vm1435, %v1426, %v1430
        %v1437 = vsel %vm1435, %v1428, %v1432
        %v1438 = vsel %vm1435, %v1430, %v1426
        %v1439 = vsel %vm1435, %v1432, %v1428
        %v1440 = vmax.f32 %v1421, %v1436
        %v1441 = vmax.f32 %v1422, %v1438
        %v1442 = vmax.f32 %v1423, %v1437
        %v1443 = vmax.f32 %v1424, %v1439
        %vm1444 = vcmp.ge.s32.totalorder %v1145, 2
        %vm1445 = vcmp.ge.s32.totalorder %v1146, 2
        %v1446 = vrot.slane %v1440, 6
        %v1447 = vrot.slane %v1441, 6
        %v1448 = vrot.slane %v1442, 6
        %v1449 = vrot.slane %v1443, 6
        %vm1450 = vcmp.lt.s32.totalorder %v1145, 2
        %v1451 = vsel %vm1450, %v1446, %v1448
        %v1452 = vsel %vm1450, %v1447, %v1449
        %v1453 = vsel %vm1450, %v1448, %v1446
        %v1454 = vsel %vm1450, %v1449, %v1447
        %v1455 = vsel %vm1444, 1, 0
        %v1456 = vsel %vm1445, 1, 0
        %vm1457 = vcmp.eq.s32.totalorder %v1455, 1
        %vm1458 = vcmp.eq.s32.totalorder %v1456, 1
        %v1459 = vsel %vm1457, %v1453, 0.0
        %v1460 = vsel %vm1457, %v1454, 0.0
        %v1461 = vsel %vm1458, %v1451, 0.0
        %v1462 = vsel %vm1458, %v1452, 0.0
        %vm1463 = vcmp.lt.s32.totalorder %v1145, 14
        %vm1464 = vcmp.lt.s32.totalorder %v1146, 14
        %v1465 = vrot.slane %v1440, 2
        %v1466 = vrot.slane %v1441, 2
        %v1467 = vrot.slane %v1442, 2
        %v1468 = vrot.slane %v1443, 2
        %vm1469 = vcmp.lt.s32.totalorder %v1145, 6
        %v1470 = vsel %vm1469, %v1465, %v1467
        %v1471 = vsel %vm1469, %v1466, %v1468
        %v1472 = vsel %vm1469, %v1467, %v1465
        %v1473 = vsel %vm1469, %v1468, %v1466
        %v1474 = vsel %vm1463, 1, 0
        %v1475 = vsel %vm1464, 1, 0
        %vm1476 = vcmp.eq.s32.totalorder %v1474, 1
        %vm1477 = vcmp.eq.s32.totalorder %v1475, 1
        %v1478 = vsel %vm1476, %v1470, 0.0
        %v1479 = vsel %vm1476, %v1471, 0.0
        %v1480 = vsel %vm1477, %v1472, 0.0
        %v1481 = vsel %vm1477, %v1473, 0.0
        %v1482 = vpack.c.bf16 %v1461, %v1459
        %v1483 = vpack.c.bf16 %v1462, %v1460
        %v1484 = vld [vmem:[%s11] sm:$0xff]
        %v1485 = vld [vmem:[%s11 + $0x8] sm:$0xff]
        %v1486 = vld [vmem:[%s11 + $0x10] sm:$0xff]
        %v1487 = vld [vmem:[%s11 + $0x18] sm:$0xff]
        %v1488 = vld [vmem:[%s11 + $0x20] sm:$0xff]
        %v1489 = vld [vmem:[%s11 + $0x28] sm:$0xff]
        %v1490 = vld [vmem:[%s11 + $0x30] sm:$0xff]
        %v1491 = vld [vmem:[%s11 + $0x38] sm:$0xff]
        %v1492 = vld [vmem:[%s11 + $0x40] sm:$0xff]
        %v1493 = vld [vmem:[%s11 + $0x48] sm:$0xff]
        %v1494 = vld [vmem:[%s11 + $0x50] sm:$0xff]
        %v1495 = vld [vmem:[%s11 + $0x58] sm:$0xff]
        %v1496 = vld [vmem:[%s11 + $0x60] sm:$0xff]
        %v1497 = vld [vmem:[%s11 + $0x68] sm:$0xff]
        %v1498 = vld [vmem:[%s11 + $0x70] sm:$0xff]
        %v1499 = vld [vmem:[%s11 + $0x78] sm:$0xff]
        %v1500 = vld [vmem:[%s11 + $0x80] sm:$0xff]
        %v1501 = vld [vmem:[%s11 + $0x88] sm:$0xff]
        %v1502 = vld [vmem:[%s11 + $0x90] sm:$0xff]
        %v1503 = vld [vmem:[%s11 + $0x98] sm:$0xff]
        %v1504 = vld [vmem:[%s11 + $0xa0] sm:$0xff]
        %v1505 = vld [vmem:[%s11 + $0xa8] sm:$0xff]
        %v1506 = vld [vmem:[%s11 + $0xb0] sm:$0xff]
        %v1507 = vld [vmem:[%s11 + $0xb8] sm:$0xff]
        %v1508 = vld [vmem:[%s11 + $0xc0] sm:$0xff]
        %v1509 = vld [vmem:[%s11 + $0xc8] sm:$0xff]
        %v1510 = vld [vmem:[%s11 + $0xd0] sm:$0xff]
        %v1511 = vld [vmem:[%s11 + $0xd8] sm:$0xff]
        %v1512 = vld [vmem:[%s11 + $0xe0] sm:$0xff]
        %v1513 = vld [vmem:[%s11 + $0xe8] sm:$0xff]
        %v1514 = vld [vmem:[%s11 + $0xf0] sm:$0xff]
        %v1515 = vld [vmem:[%s11 + $0xf8] sm:$0xff]
        %v1516 = vpack.c.bf16 %v1442, %v1440
        %v1517 = vpack.c.bf16 %v1443, %v1441
        %v1518 = vld [vmem:[%s13] sm:$0xff]
        %v1519 = vld [vmem:[%s13 + $0x8] sm:$0xff]
        %v1520 = vld [vmem:[%s13 + $0x10] sm:$0xff]
        %v1521 = vld [vmem:[%s13 + $0x18] sm:$0xff]
        %v1522 = vld [vmem:[%s13 + $0x20] sm:$0xff]
        %v1523 = vld [vmem:[%s13 + $0x28] sm:$0xff]
        %v1524 = vld [vmem:[%s13 + $0x30] sm:$0xff]
        %v1525 = vld [vmem:[%s13 + $0x38] sm:$0xff]
        %v1526 = vld [vmem:[%s13 + $0x40] sm:$0xff]
        %v1527 = vld [vmem:[%s13 + $0x48] sm:$0xff]
        %v1528 = vld [vmem:[%s13 + $0x50] sm:$0xff]
        %v1529 = vld [vmem:[%s13 + $0x58] sm:$0xff]
        %v1530 = vld [vmem:[%s13 + $0x60] sm:$0xff]
        %v1531 = vld [vmem:[%s13 + $0x68] sm:$0xff]
        %v1532 = vld [vmem:[%s13 + $0x70] sm:$0xff]
        %v1533 = vld [vmem:[%s13 + $0x78] sm:$0xff]
        %v1534 = vld [vmem:[%s13 + $0x80] sm:$0xff]
        %v1535 = vld [vmem:[%s13 + $0x88] sm:$0xff]
        %v1536 = vld [vmem:[%s13 + $0x90] sm:$0xff]
        %v1537 = vld [vmem:[%s13 + $0x98] sm:$0xff]
        %v1538 = vld [vmem:[%s13 + $0xa0] sm:$0xff]
        %v1539 = vld [vmem:[%s13 + $0xa8] sm:$0xff]
        %v1540 = vld [vmem:[%s13 + $0xb0] sm:$0xff]
        %v1541 = vld [vmem:[%s13 + $0xb8] sm:$0xff]
        %v1542 = vld [vmem:[%s13 + $0xc0] sm:$0xff]
        %v1543 = vld [vmem:[%s13 + $0xc8] sm:$0xff]
        %v1544 = vld [vmem:[%s13 + $0xd0] sm:$0xff]
        %v1545 = vld [vmem:[%s13 + $0xd8] sm:$0xff]
        %v1546 = vld [vmem:[%s13 + $0xe0] sm:$0xff]
        %v1547 = vld [vmem:[%s13 + $0xe8] sm:$0xff]
        %v1548 = vld [vmem:[%s13 + $0xf0] sm:$0xff]
        %v1549 = vld [vmem:[%s13 + $0xf8] sm:$0xff]
        %v1582 = vunpack.c.l.b16 %v1518
        %v1583 = vunpack.c.h.b16 %v1518
        %v1584 = vunpack.c.l.b16 %v1519
        %v1585 = vunpack.c.h.b16 %v1519
        %v1586 = vunpack.c.l.b16 %v1520
        %v1587 = vunpack.c.h.b16 %v1520
        %v1588 = vunpack.c.l.b16 %v1521
        %v1589 = vunpack.c.h.b16 %v1521
        %v1590 = vunpack.c.l.b16 %v1522
        %v1591 = vunpack.c.h.b16 %v1522
        %v1592 = vunpack.c.l.b16 %v1523
        %v1593 = vunpack.c.h.b16 %v1523
        %v1594 = vunpack.c.l.b16 %v1524
        %v1595 = vunpack.c.h.b16 %v1524
        %v1596 = vunpack.c.l.b16 %v1525
        %v1597 = vunpack.c.h.b16 %v1525
        %v1598 = vunpack.c.l.b16 %v1526
        %v1599 = vunpack.c.h.b16 %v1526
        %v1600 = vunpack.c.l.b16 %v1527
        %v1601 = vunpack.c.h.b16 %v1527
        %v1602 = vunpack.c.l.b16 %v1528
        %v1603 = vunpack.c.h.b16 %v1528
        %v1604 = vunpack.c.l.b16 %v1529
        %v1605 = vunpack.c.h.b16 %v1529
        %v1606 = vunpack.c.l.b16 %v1530
        %v1607 = vunpack.c.h.b16 %v1530
        %v1608 = vunpack.c.l.b16 %v1531
        %v1609 = vunpack.c.h.b16 %v1531
        %v1610 = vunpack.c.l.b16 %v1532
        %v1611 = vunpack.c.h.b16 %v1532
        %v1612 = vunpack.c.l.b16 %v1533
        %v1613 = vunpack.c.h.b16 %v1533
        %v1614 = vunpack.c.l.b16 %v1534
        %v1615 = vunpack.c.h.b16 %v1534
        %v1616 = vunpack.c.l.b16 %v1535
        %v1617 = vunpack.c.h.b16 %v1535
        %v1618 = vunpack.c.l.b16 %v1536
        %v1619 = vunpack.c.h.b16 %v1536
        %v1620 = vunpack.c.l.b16 %v1537
        %v1621 = vunpack.c.h.b16 %v1537
        %v1622 = vunpack.c.l.b16 %v1538
        %v1623 = vunpack.c.h.b16 %v1538
        %v1624 = vunpack.c.l.b16 %v1539
        %v1625 = vunpack.c.h.b16 %v1539
        %v1626 = vunpack.c.l.b16 %v1540
        %v1627 = vunpack.c.h.b16 %v1540
        %v1628 = vunpack.c.l.b16 %v1541
        %v1629 = vunpack.c.h.b16 %v1541
        %v1630 = vunpack.c.l.b16 %v1542
        %v1631 = vunpack.c.h.b16 %v1542
        %v1632 = vunpack.c.l.b16 %v1543
        %v1633 = vunpack.c.h.b16 %v1543
        %v1634 = vunpack.c.l.b16 %v1544
        %v1635 = vunpack.c.h.b16 %v1544
        %v1636 = vunpack.c.l.b16 %v1545
        %v1637 = vunpack.c.h.b16 %v1545
        %v1638 = vunpack.c.l.b16 %v1546
        %v1639 = vunpack.c.h.b16 %v1546
        %v1640 = vunpack.c.l.b16 %v1547
        %v1641 = vunpack.c.h.b16 %v1547
        %v1642 = vunpack.c.l.b16 %v1548
        %v1643 = vunpack.c.h.b16 %v1548
        %v1644 = vunpack.c.l.b16 %v1549
        %v1645 = vunpack.c.h.b16 %v1549
        %v1646 = vpack.c.b16 %v1584, %v1582
        %v1647 = vpack.c.b16 %v1585, %v1583
        %v1648 = vpack.c.b16 %v1588, %v1586
        %v1649 = vpack.c.b16 %v1589, %v1587
        %v1650 = vpack.c.b16 %v1592, %v1590
        %v1651 = vpack.c.b16 %v1593, %v1591
        %v1652 = vpack.c.b16 %v1596, %v1594
        %v1653 = vpack.c.b16 %v1597, %v1595
        %v1654 = vpack.c.b16 %v1600, %v1598
        %v1655 = vpack.c.b16 %v1601, %v1599
        %v1656 = vpack.c.b16 %v1604, %v1602
        %v1657 = vpack.c.b16 %v1605, %v1603
        %v1658 = vpack.c.b16 %v1608, %v1606
        %v1659 = vpack.c.b16 %v1609, %v1607
        %v1660 = vpack.c.b16 %v1612, %v1610
        %v1661 = vpack.c.b16 %v1613, %v1611
        %v1662 = vpack.c.b16 %v1616, %v1614
        %v1663 = vpack.c.b16 %v1617, %v1615
        %v1664 = vpack.c.b16 %v1620, %v1618
        %v1665 = vpack.c.b16 %v1621, %v1619
        %v1666 = vpack.c.b16 %v1624, %v1622
        %v1667 = vpack.c.b16 %v1625, %v1623
        %v1668 = vpack.c.b16 %v1628, %v1626
        %v1669 = vpack.c.b16 %v1629, %v1627
        %v1670 = vpack.c.b16 %v1632, %v1630
        %v1671 = vpack.c.b16 %v1633, %v1631
        %v1672 = vpack.c.b16 %v1636, %v1634
        %v1673 = vpack.c.b16 %v1637, %v1635
        %v1674 = vpack.c.b16 %v1640, %v1638
        %v1675 = vpack.c.b16 %v1641, %v1639
        %v1676 = vpack.c.b16 %v1644, %v1642
        %v1677 = vpack.c.b16 %v1645, %v1643
        %1710 = vmatprep.subr.bf16.mxu0 %v1647
        %1711 = vmatpush1.bf16.msra.mxu0 %v1646
        %1712 = vmatprep.subr.bf16.mxu0 %v1649
        %1713 = vmatpush1.bf16.msra.mxu0 %v1648
        %1714 = vmatprep.subr.bf16.mxu0 %v1651
        %1715 = vmatpush1.bf16.msra.mxu0 %v1650
        %1716 = vmatprep.subr.bf16.mxu0 %v1653
        %1717 = vmatpush1.bf16.msra.mxu0 %v1652
        %1718 = vmatprep.subr.bf16.mxu0 %v1655
        %1719 = vmatpush1.bf16.msra.mxu0 %v1654
        %1720 = vmatprep.subr.bf16.mxu0 %v1657
        %1721 = vmatpush1.bf16.msra.mxu0 %v1656
        %1722 = vmatprep.subr.bf16.mxu0 %v1659
        %1723 = vmatpush1.bf16.msra.mxu0 %v1658
        %1724 = vmatprep.subr.bf16.mxu0 %v1661
        %1725 = vmatpush1.bf16.msra.mxu0 %v1660
        %1726 = vmatprep.subr.bf16.mxu0 %v1663
        %1727 = vmatpush1.bf16.msra.mxu0 %v1662
        %1728 = vmatprep.subr.bf16.mxu0 %v1665
        %1729 = vmatpush1.bf16.msra.mxu0 %v1664
        %1730 = vmatprep.subr.bf16.mxu0 %v1667
        %1731 = vmatpush1.bf16.msra.mxu0 %v1666
        %1732 = vmatprep.subr.bf16.mxu0 %v1669
        %1733 = vmatpush1.bf16.msra.mxu0 %v1668
        %1734 = vmatprep.subr.bf16.mxu0 %v1671
        %1735 = vmatpush1.bf16.msra.mxu0 %v1670
        %1736 = vmatprep.subr.bf16.mxu0 %v1673
        %1737 = vmatpush1.bf16.msra.mxu0 %v1672
        %1738 = vmatprep.subr.bf16.mxu0 %v1675
        %1739 = vmatpush1.bf16.msra.mxu0 %v1674
        %1740 = vmatprep.subr.bf16.mxu0 %v1677
        %1741 = vmatpush1.bf16.msra.mxu0 %v1676
        %1742 = vmatprep.mubr.bf16.mxu0 %v1517
        %1743 = vmatmul.mubr.bf16.gmra.mrb[0].mxu0 %v1516
        %v1744 = vpop.f32.mrb[0].mxu0
        %v1745 = vadd.f32 0.0, %v1744
        %v1746 = vpop.f32.mrb[0].mxu0
        %v1747 = vadd.f32 0.0, %v1746
        %v1748 = vpop.f32.mrb[0].mxu0
        %v1749 = vadd.f32 0.0, %v1748
        %v1750 = vpop.f32.mrb[0].mxu0
        %v1751 = vadd.f32 0.0, %v1750
        %1752 = vdwg.mxu0
        %v1785 = vunpack.c.l.b16 %v1484
        %v1786 = vunpack.c.h.b16 %v1484
        %v1787 = vunpack.c.l.b16 %v1485
        %v1788 = vunpack.c.h.b16 %v1485
        %v1789 = vunpack.c.l.b16 %v1486
        %v1790 = vunpack.c.h.b16 %v1486
        %v1791 = vunpack.c.l.b16 %v1487
        %v1792 = vunpack.c.h.b16 %v1487
        %v1793 = vunpack.c.l.b16 %v1488
        %v1794 = vunpack.c.h.b16 %v1488
        %v1795 = vunpack.c.l.b16 %v1489
        %v1796 = vunpack.c.h.b16 %v1489
        %v1797 = vunpack.c.l.b16 %v1490
        %v1798 = vunpack.c.h.b16 %v1490
        %v1799 = vunpack.c.l.b16 %v1491
        %v1800 = vunpack.c.h.b16 %v1491
        %v1801 = vunpack.c.l.b16 %v1492
        %v1802 = vunpack.c.h.b16 %v1492
        %v1803 = vunpack.c.l.b16 %v1493
        %v1804 = vunpack.c.h.b16 %v1493
        %v1805 = vunpack.c.l.b16 %v1494
        %v1806 = vunpack.c.h.b16 %v1494
        %v1807 = vunpack.c.l.b16 %v1495
        %v1808 = vunpack.c.h.b16 %v1495
        %v1809 = vunpack.c.l.b16 %v1496
        %v1810 = vunpack.c.h.b16 %v1496
        %v1811 = vunpack.c.l.b16 %v1497
        %v1812 = vunpack.c.h.b16 %v1497
        %v1813 = vunpack.c.l.b16 %v1498
        %v1814 = vunpack.c.h.b16 %v1498
        %v1815 = vunpack.c.l.b16 %v1499
        %v1816 = vunpack.c.h.b16 %v1499
        %v1817 = vunpack.c.l.b16 %v1500
        %v1818 = vunpack.c.h.b16 %v1500
        %v1819 = vunpack.c.l.b16 %v1501
        %v1820 = vunpack.c.h.b16 %v1501
        %v1821 = vunpack.c.l.b16 %v1502
        %v1822 = vunpack.c.h.b16 %v1502
        %v1823 = vunpack.c.l.b16 %v1503
        %v1824 = vunpack.c.h.b16 %v1503
        %v1825 = vunpack.c.l.b16 %v1504
        %v1826 = vunpack.c.h.b16 %v1504
        %v1827 = vunpack.c.l.b16 %v1505
        %v1828 = vunpack.c.h.b16 %v1505
        %v1829 = vunpack.c.l.b16 %v1506
        %v1830 = vunpack.c.h.b16 %v1506
        %v1831 = vunpack.c.l.b16 %v1507
        %v1832 = vunpack.c.h.b16 %v1507
        %v1833 = vunpack.c.l.b16 %v1508
        %v1834 = vunpack.c.h.b16 %v1508
        %v1835 = vunpack.c.l.b16 %v1509
        %v1836 = vunpack.c.h.b16 %v1509
        %v1837 = vunpack.c.l.b16 %v1510
        %v1838 = vunpack.c.h.b16 %v1510
        %v1839 = vunpack.c.l.b16 %v1511
        %v1840 = vunpack.c.h.b16 %v1511
        %v1841 = vunpack.c.l.b16 %v1512
        %v1842 = vunpack.c.h.b16 %v1512
        %v1843 = vunpack.c.l.b16 %v1513
        %v1844 = vunpack.c.h.b16 %v1513
        %v1845 = vunpack.c.l.b16 %v1514
        %v1846 = vunpack.c.h.b16 %v1514
        %v1847 = vunpack.c.l.b16 %v1515
        %v1848 = vunpack.c.h.b16 %v1515
        %v1849 = vpack.c.b16 %v1787, %v1785
        %v1850 = vpack.c.b16 %v1788, %v1786
        %v1851 = vpack.c.b16 %v1791, %v1789
        %v1852 = vpack.c.b16 %v1792, %v1790
        %v1853 = vpack.c.b16 %v1795, %v1793
        %v1854 = vpack.c.b16 %v1796, %v1794
        %v1855 = vpack.c.b16 %v1799, %v1797
        %v1856 = vpack.c.b16 %v1800, %v1798
        %v1857 = vpack.c.b16 %v1803, %v1801
        %v1858 = vpack.c.b16 %v1804, %v1802
        %v1859 = vpack.c.b16 %v1807, %v1805
        %v1860 = vpack.c.b16 %v1808, %v1806
        %v1861 = vpack.c.b16 %v1811, %v1809
        %v1862 = vpack.c.b16 %v1812, %v1810
        %v1863 = vpack.c.b16 %v1815, %v1813
        %v1864 = vpack.c.b16 %v1816, %v1814
        %v1865 = vpack.c.b16 %v1819, %v1817
        %v1866 = vpack.c.b16 %v1820, %v1818
        %v1867 = vpack.c.b16 %v1823, %v1821
        %v1868 = vpack.c.b16 %v1824, %v1822
        %v1869 = vpack.c.b16 %v1827, %v1825
        %v1870 = vpack.c.b16 %v1828, %v1826
        %v1871 = vpack.c.b16 %v1831, %v1829
        %v1872 = vpack.c.b16 %v1832, %v1830
        %v1873 = vpack.c.b16 %v1835, %v1833
        %v1874 = vpack.c.b16 %v1836, %v1834
        %v1875 = vpack.c.b16 %v1839, %v1837
        %v1876 = vpack.c.b16 %v1840, %v1838
        %v1877 = vpack.c.b16 %v1843, %v1841
        %v1878 = vpack.c.b16 %v1844, %v1842
        %v1879 = vpack.c.b16 %v1847, %v1845
        %v1880 = vpack.c.b16 %v1848, %v1846
        %1913 = vmatprep.subr.bf16.mxu0 %v1850
        %1914 = vmatpush1.bf16.msra.mxu0 %v1849
        %1915 = vmatprep.subr.bf16.mxu0 %v1852
        %1916 = vmatpush1.bf16.msra.mxu0 %v1851
        %1917 = vmatprep.subr.bf16.mxu0 %v1854
        %1918 = vmatpush1.bf16.msra.mxu0 %v1853
        %1919 = vmatprep.subr.bf16.mxu0 %v1856
        %1920 = vmatpush1.bf16.msra.mxu0 %v1855
        %1921 = vmatprep.subr.bf16.mxu0 %v1858
        %1922 = vmatpush1.bf16.msra.mxu0 %v1857
        %1923 = vmatprep.subr.bf16.mxu0 %v1860
        %1924 = vmatpush1.bf16.msra.mxu0 %v1859
        %1925 = vmatprep.subr.bf16.mxu0 %v1862
        %1926 = vmatpush1.bf16.msra.mxu0 %v1861
        %1927 = vmatprep.subr.bf16.mxu0 %v1864
        %1928 = vmatpush1.bf16.msra.mxu0 %v1863
        %1929 = vmatprep.subr.bf16.mxu0 %v1866
        %1930 = vmatpush1.bf16.msra.mxu0 %v1865
        %1931 = vmatprep.subr.bf16.mxu0 %v1868
        %1932 = vmatpush1.bf16.msra.mxu0 %v1867
        %1933 = vmatprep.subr.bf16.mxu0 %v1870
        %1934 = vmatpush1.bf16.msra.mxu0 %v1869
        %1935 = vmatprep.subr.bf16.mxu0 %v1872
        %1936 = vmatpush1.bf16.msra.mxu0 %v1871
        %1937 = vmatprep.subr.bf16.mxu0 %v1874
        %1938 = vmatpush1.bf16.msra.mxu0 %v1873
        %1939 = vmatprep.subr.bf16.mxu0 %v1876
        %1940 = vmatpush1.bf16.msra.mxu0 %v1875
        %1941 = vmatprep.subr.bf16.mxu0 %v1878
        %1942 = vmatpush1.bf16.msra.mxu0 %v1877
        %1943 = vmatprep.subr.bf16.mxu0 %v1880
        %1944 = vmatpush1.bf16.msra.mxu0 %v1879
        %1945 = vmatprep.mubr.bf16.mxu0 %v1483
        %1946 = vmatmul.mubr.bf16.gmra.mrb[0].mxu0 %v1482
        %v1947 = vpop.f32.mrb[0].mxu0
        %v1948 = vadd.f32 %v1745, %v1947
        %v1949 = vpop.f32.mrb[0].mxu0
        %v1950 = vadd.f32 %v1747, %v1949
        %v1951 = vpop.f32.mrb[0].mxu0
        %v1952 = vadd.f32 %v1749, %v1951
        %v1953 = vpop.f32.mrb[0].mxu0
        %v1954 = vadd.f32 %v1751, %v1953
        %1955 = vdwg.mxu0
        %v1956 = vpack.c.bf16 %v1480, %v1478
        %v1957 = vpack.c.bf16 %v1481, %v1479
        %v1958 = vld [vmem:[%s15] sm:$0xff]
        %v1959 = vld [vmem:[%s15 + $0x8] sm:$0xff]
        %v1960 = vld [vmem:[%s15 + $0x10] sm:$0xff]
        %v1961 = vld [vmem:[%s15 + $0x18] sm:$0xff]
        %v1962 = vld [vmem:[%s15 + $0x20] sm:$0xff]
        %v1963 = vld [vmem:[%s15 + $0x28] sm:$0xff]
        %v1964 = vld [vmem:[%s15 + $0x30] sm:$0xff]
        %v1965 = vld [vmem:[%s15 + $0x38] sm:$0xff]
        %v1966 = vld [vmem:[%s15 + $0x40] sm:$0xff]
        %v1967 = vld [vmem:[%s15 + $0x48] sm:$0xff]
        %v1968 = vld [vmem:[%s15 + $0x50] sm:$0xff]
        %v1969 = vld [vmem:[%s15 + $0x58] sm:$0xff]
        %v1970 = vld [vmem:[%s15 + $0x60] sm:$0xff]
        %v1971 = vld [vmem:[%s15 + $0x68] sm:$0xff]
        %v1972 = vld [vmem:[%s15 + $0x70] sm:$0xff]
        %v1973 = vld [vmem:[%s15 + $0x78] sm:$0xff]
        %v1974 = vld [vmem:[%s15 + $0x80] sm:$0xff]
        %v1975 = vld [vmem:[%s15 + $0x88] sm:$0xff]
        %v1976 = vld [vmem:[%s15 + $0x90] sm:$0xff]
        %v1977 = vld [vmem:[%s15 + $0x98] sm:$0xff]
        %v1978 = vld [vmem:[%s15 + $0xa0] sm:$0xff]
        %v1979 = vld [vmem:[%s15 + $0xa8] sm:$0xff]
        %v1980 = vld [vmem:[%s15 + $0xb0] sm:$0xff]
        %v1981 = vld [vmem:[%s15 + $0xb8] sm:$0xff]
        %v1982 = vld [vmem:[%s15 + $0xc0] sm:$0xff]
        %v1983 = vld [vmem:[%s15 + $0xc8] sm:$0xff]
        %v1984 = vld [vmem:[%s15 + $0xd0] sm:$0xff]
        %v1985 = vld [vmem:[%s15 + $0xd8] sm:$0xff]
        %v1986 = vld [vmem:[%s15 + $0xe0] sm:$0xff]
        %v1987 = vld [vmem:[%s15 + $0xe8] sm:$0xff]
        %v1988 = vld [vmem:[%s15 + $0xf0] sm:$0xff]
        %v1989 = vld [vmem:[%s15 + $0xf8] sm:$0xff]
        %v2022 = vunpack.c.l.b16 %v1958
        %v2023 = vunpack.c.h.b16 %v1958
        %v2024 = vunpack.c.l.b16 %v1959
        %v2025 = vunpack.c.h.b16 %v1959
        %v2026 = vunpack.c.l.b16 %v1960
        %v2027 = vunpack.c.h.b16 %v1960
        %v2028 = vunpack.c.l.b16 %v1961
        %v2029 = vunpack.c.h.b16 %v1961
        %v2030 = vunpack.c.l.b16 %v1962
        %v2031 = vunpack.c.h.b16 %v1962
        %v2032 = vunpack.c.l.b16 %v1963
        %v2033 = vunpack.c.h.b16 %v1963
        %v2034 = vunpack.c.l.b16 %v1964
        %v2035 = vunpack.c.h.b16 %v1964
        %v2036 = vunpack.c.l.b16 %v1965
        %v2037 = vunpack.c.h.b16 %v1965
        %v2038 = vunpack.c.l.b16 %v1966
        %v2039 = vunpack.c.h.b16 %v1966
        %v2040 = vunpack.c.l.b16 %v1967
        %v2041 = vunpack.c.h.b16 %v1967
        %v2042 = vunpack.c.l.b16 %v1968
        %v2043 = vunpack.c.h.b16 %v1968
        %v2044 = vunpack.c.l.b16 %v1969
        %v2045 = vunpack.c.h.b16 %v1969
        %v2046 = vunpack.c.l.b16 %v1970
        %v2047 = vunpack.c.h.b16 %v1970
        %v2048 = vunpack.c.l.b16 %v1971
        %v2049 = vunpack.c.h.b16 %v1971
        %v2050 = vunpack.c.l.b16 %v1972
        %v2051 = vunpack.c.h.b16 %v1972
        %v2052 = vunpack.c.l.b16 %v1973
        %v2053 = vunpack.c.h.b16 %v1973
        %v2054 = vunpack.c.l.b16 %v1974
        %v2055 = vunpack.c.h.b16 %v1974
        %v2056 = vunpack.c.l.b16 %v1975
        %v2057 = vunpack.c.h.b16 %v1975
        %v2058 = vunpack.c.l.b16 %v1976
        %v2059 = vunpack.c.h.b16 %v1976
        %v2060 = vunpack.c.l.b16 %v1977
        %v2061 = vunpack.c.h.b16 %v1977
        %v2062 = vunpack.c.l.b16 %v1978
        %v2063 = vunpack.c.h.b16 %v1978
        %v2064 = vunpack.c.l.b16 %v1979
        %v2065 = vunpack.c.h.b16 %v1979
        %v2066 = vunpack.c.l.b16 %v1980
        %v2067 = vunpack.c.h.b16 %v1980
        %v2068 = vunpack.c.l.b16 %v1981
        %v2069 = vunpack.c.h.b16 %v1981
        %v2070 = vunpack.c.l.b16 %v1982
        %v2071 = vunpack.c.h.b16 %v1982
        %v2072 = vunpack.c.l.b16 %v1983
        %v2073 = vunpack.c.h.b16 %v1983
        %v2074 = vunpack.c.l.b16 %v1984
        %v2075 = vunpack.c.h.b16 %v1984
        %v2076 = vunpack.c.l.b16 %v1985
        %v2077 = vunpack.c.h.b16 %v1985
        %v2078 = vunpack.c.l.b16 %v1986
        %v2079 = vunpack.c.h.b16 %v1986
        %v2080 = vunpack.c.l.b16 %v1987
        %v2081 = vunpack.c.h.b16 %v1987
        %v2082 = vunpack.c.l.b16 %v1988
        %v2083 = vunpack.c.h.b16 %v1988
        %v2084 = vunpack.c.l.b16 %v1989
        %v2085 = vunpack.c.h.b16 %v1989
        %v2086 = vpack.c.b16 %v2024, %v2022
        %v2087 = vpack.c.b16 %v2025, %v2023
        %v2088 = vpack.c.b16 %v2028, %v2026
        %v2089 = vpack.c.b16 %v2029, %v2027
        %v2090 = vpack.c.b16 %v2032, %v2030
        %v2091 = vpack.c.b16 %v2033, %v2031
        %v2092 = vpack.c.b16 %v2036, %v2034
        %v2093 = vpack.c.b16 %v2037, %v2035
        %v2094 = vpack.c.b16 %v2040, %v2038
        %v2095 = vpack.c.b16 %v2041, %v2039
        %v2096 = vpack.c.b16 %v2044, %v2042
        %v2097 = vpack.c.b16 %v2045, %v2043
        %v2098 = vpack.c.b16 %v2048, %v2046
        %v2099 = vpack.c.b16 %v2049, %v2047
        %v2100 = vpack.c.b16 %v2052, %v2050
        %v2101 = vpack.c.b16 %v2053, %v2051
        %v2102 = vpack.c.b16 %v2056, %v2054
        %v2103 = vpack.c.b16 %v2057, %v2055
        %v2104 = vpack.c.b16 %v2060, %v2058
        %v2105 = vpack.c.b16 %v2061, %v2059
        %v2106 = vpack.c.b16 %v2064, %v2062
        %v2107 = vpack.c.b16 %v2065, %v2063
        %v2108 = vpack.c.b16 %v2068, %v2066
        %v2109 = vpack.c.b16 %v2069, %v2067
        %v2110 = vpack.c.b16 %v2072, %v2070
        %v2111 = vpack.c.b16 %v2073, %v2071
        %v2112 = vpack.c.b16 %v2076, %v2074
        %v2113 = vpack.c.b16 %v2077, %v2075
        %v2114 = vpack.c.b16 %v2080, %v2078
        %v2115 = vpack.c.b16 %v2081, %v2079
        %v2116 = vpack.c.b16 %v2084, %v2082
        %v2117 = vpack.c.b16 %v2085, %v2083
        %2150 = vmatprep.subr.bf16.mxu0 %v2087
        %2151 = vmatpush1.bf16.msra.mxu0 %v2086
        %2152 = vmatprep.subr.bf16.mxu0 %v2089
        %2153 = vmatpush1.bf16.msra.mxu0 %v2088
        %2154 = vmatprep.subr.bf16.mxu0 %v2091
        %2155 = vmatpush1.bf16.msra.mxu0 %v2090
        %2156 = vmatprep.subr.bf16.mxu0 %v2093
        %2157 = vmatpush1.bf16.msra.mxu0 %v2092
        %2158 = vmatprep.subr.bf16.mxu0 %v2095
        %2159 = vmatpush1.bf16.msra.mxu0 %v2094
        %2160 = vmatprep.subr.bf16.mxu0 %v2097
        %2161 = vmatpush1.bf16.msra.mxu0 %v2096
        %2162 = vmatprep.subr.bf16.mxu0 %v2099
        %2163 = vmatpush1.bf16.msra.mxu0 %v2098
        %2164 = vmatprep.subr.bf16.mxu0 %v2101
        %2165 = vmatpush1.bf16.msra.mxu0 %v2100
        %2166 = vmatprep.subr.bf16.mxu0 %v2103
        %2167 = vmatpush1.bf16.msra.mxu0 %v2102
        %2168 = vmatprep.subr.bf16.mxu0 %v2105
        %2169 = vmatpush1.bf16.msra.mxu0 %v2104
        %2170 = vmatprep.subr.bf16.mxu0 %v2107
        %2171 = vmatpush1.bf16.msra.mxu0 %v2106
        %2172 = vmatprep.subr.bf16.mxu0 %v2109
        %2173 = vmatpush1.bf16.msra.mxu0 %v2108
        %2174 = vmatprep.subr.bf16.mxu0 %v2111
        %2175 = vmatpush1.bf16.msra.mxu0 %v2110
        %2176 = vmatprep.subr.bf16.mxu0 %v2113
        %2177 = vmatpush1.bf16.msra.mxu0 %v2112
        %2178 = vmatprep.subr.bf16.mxu0 %v2115
        %2179 = vmatpush1.bf16.msra.mxu0 %v2114
        %2180 = vmatprep.subr.bf16.mxu0 %v2117
        %2181 = vmatpush1.bf16.msra.mxu0 %v2116
        %2182 = vmatprep.mubr.bf16.mxu0 %v1957
        %2183 = vmatmul.mubr.bf16.gmra.mrb[0].mxu0 %v1956
        %v2184 = vpop.f32.mrb[0].mxu0
        %v2185 = vadd.f32 0.0, %v2184
        %v2186 = vpop.f32.mrb[0].mxu0
        %v2187 = vadd.f32 0.0, %v2186
        %v2188 = vpop.f32.mrb[0].mxu0
        %v2189 = vadd.f32 0.0, %v2188
        %v2190 = vpop.f32.mrb[0].mxu0
        %v2191 = vadd.f32 0.0, %v2190
        %2192 = vdwg.mxu0
        %v2193 = vadd.f32 %v1948, %v2185
        %v2194 = vadd.f32 %v1950, %v2187
        %v2195 = vadd.f32 %v1952, %v2189
        %v2196 = vadd.f32 %v1954, %v2191
        %v2197 = vld [vmem:[#allocation9] sm:$0x3]
        %v2199 = vlaneseq
        %v2200 = vshrl.u32 %v2199, 7
        %v2201 = vsub.s32 0, %v2200
        %v2202 = vrot.slane %v2197, %v2201
        %v2203 = vlaneseq
        %v2204 = vshrl.u32 %v2203, 7
        %v2205 = vsub.s32 1, %v2204
        %v2206 = vrot.slane %v2197, %v2205
        %v2209 = vadd.f32 %v2193, %v2202
        %v2210 = vadd.f32 %v2194, %v2206
        %v2211 = vadd.f32 %v2195, %v2202
        %v2212 = vadd.f32 %v2196, %v2206
        %v2213 = vmax.f32 %v2209, 0.0
        %v2214 = vmax.f32 %v2210, 0.0
        %v2215 = vmax.f32 %v2211, 0.0
        %v2216 = vmax.f32 %v2212, 0.0
        %v2217 = vrot.slane %v2213, 2
        %v2218 = vrot.slane %v2214, 2
        %v2219 = vrot.slane %v2215, 2
        %v2220 = vrot.slane %v2216, 2
        %v2221 = vsel %vm1469, %v2217, %v2219
        %v2222 = vsel %vm1469, %v2218, %v2220
        %v2223 = vsel %vm1469, %v2219, %v2217
        %v2224 = vsel %vm1469, %v2220, %v2218
        %v2225 = vmax.f32 %v2213, %v2221
        %v2226 = vmax.f32 %v2214, %v2222
        %v2227 = vmax.f32 %v2215, %v2223
        %v2228 = vmax.f32 %v2216, %v2224
        %2229 = vrot.lane.b32.xlu0 %v2225, 96
        %v2230 = vpop.permute.xlu0 %2229
        %2231 = vrot.lane.b32.xlu0 %v2227, 96
        %v2232 = vpop.permute.xlu0 %2231
        %2233 = vrot.lane.b32.xlu0 %v2226, 96
        %v2234 = vpop.permute.xlu0 %2233
        %2235 = vrot.lane.b32.xlu0 %v2228, 96
        %v2236 = vpop.permute.xlu0 %2235
        %vm2237 = vcmp.lt.s32.totalorder %v1434, 96
        %v2238 = vsel %vm2237, %v2230, %v2234
        %v2239 = vsel %vm2237, %v2232, %v2236
        %v2240 = vsel %vm2237, %v2234, %v2230
        %v2241 = vsel %vm2237, %v2236, %v2232
        %v2242 = vmax.f32 %v2225, %v2238
        %v2243 = vmax.f32 %v2226, %v2240
        %v2244 = vmax.f32 %v2227, %v2239
        %v2245 = vmax.f32 %v2228, %v2241
        %vm2246 = vcmp.ge.s32.totalorder %v1145, 4
        %vm2247 = vcmp.ge.s32.totalorder %v1146, 4
        %v2248 = vrot.slane %v2242, 4
        %v2249 = vrot.slane %v2243, 4
        %v2250 = vrot.slane %v2244, 4
        %v2251 = vrot.slane %v2245, 4
        %vm2252 = vcmp.lt.s32.totalorder %v1145, 4
        %v2253 = vsel %vm2252, %v2248, %v2250
        %v2254 = vsel %vm2252, %v2249, %v2251
        %v2255 = vsel %vm2252, %v2250, %v2248
        %v2256 = vsel %vm2252, %v2251, %v2249
        %v2257 = vsel %vm2246, 1, 0
        %v2258 = vsel %vm2247, 1, 0
        %vm2259 = vcmp.eq.s32.totalorder %v2257, 1
        %vm2260 = vcmp.eq.s32.totalorder %v2258, 1
        %v2261 = vsel %vm2259, %v2255, 0.0
        %v2262 = vsel %vm2259, %v2256, 0.0
        %v2263 = vsel %vm2260, %v2253, 0.0
        %v2264 = vsel %vm2260, %v2254, 0.0
        %vm2265 = vcmp.lt.s32.totalorder %v1145, 12
        %vm2266 = vcmp.lt.s32.totalorder %v1146, 12
        %v2267 = vsel %vm2265, 1, 0
        %v2268 = vsel %vm2266, 1, 0
        %vm2269 = vcmp.eq.s32.totalorder %v2267, 1
        %vm2270 = vcmp.eq.s32.totalorder %v2268, 1
        %v2271 = vsel %vm2269, %v2253, 0.0
        %v2272 = vsel %vm2269, %v2254, 0.0
        %v2273 = vsel %vm2270, %v2255, 0.0
        %v2274 = vsel %vm2270, %v2256, 0.0
        %v2275 = vpack.c.bf16 %v2263, %v2261
        %v2276 = vpack.c.bf16 %v2264, %v2262
        %v2277 = vld [vmem:[#allocation10] sm:$0xff]
        %v2278 = vld [vmem:[#allocation10 + $0x8] sm:$0xff]
        %v2279 = vld [vmem:[#allocation10 + $0x10] sm:$0xff]
        %v2280 = vld [vmem:[#allocation10 + $0x18] sm:$0xff]
        %v2281 = vld [vmem:[#allocation10 + $0x20] sm:$0xff]
        %v2282 = vld [vmem:[#allocation10 + $0x28] sm:$0xff]
        %v2283 = vld [vmem:[#allocation10 + $0x30] sm:$0xff]
        %v2284 = vld [vmem:[#allocation10 + $0x38] sm:$0xff]
        %v2285 = vld [vmem:[#allocation10 + $0x40] sm:$0xff]
        %v2286 = vld [vmem:[#allocation10 + $0x48] sm:$0xff]
        %v2287 = vld [vmem:[#allocation10 + $0x50] sm:$0xff]
        %v2288 = vld [vmem:[#allocation10 + $0x58] sm:$0xff]
        %v2289 = vld [vmem:[#allocation10 + $0x60] sm:$0xff]
        %v2290 = vld [vmem:[#allocation10 + $0x68] sm:$0xff]
        %v2291 = vld [vmem:[#allocation10 + $0x70] sm:$0xff]
        %v2292 = vld [vmem:[#allocation10 + $0x78] sm:$0xff]
        %v2293 = vld [vmem:[#allocation10 + $0x80] sm:$0xff]
        %v2294 = vld [vmem:[#allocation10 + $0x88] sm:$0xff]
        %v2295 = vld [vmem:[#allocation10 + $0x90] sm:$0xff]
        %v2296 = vld [vmem:[#allocation10 + $0x98] sm:$0xff]
        %v2297 = vld [vmem:[#allocation10 + $0xa0] sm:$0xff]
        %v2298 = vld [vmem:[#allocation10 + $0xa8] sm:$0xff]
        %v2299 = vld [vmem:[#allocation10 + $0xb0] sm:$0xff]
        %v2300 = vld [vmem:[#allocation10 + $0xb8] sm:$0xff]
        %v2301 = vld [vmem:[#allocation10 + $0xc0] sm:$0xff]
        %v2302 = vld [vmem:[#allocation10 + $0xc8] sm:$0xff]
        %v2303 = vld [vmem:[#allocation10 + $0xd0] sm:$0xff]
        %v2304 = vld [vmem:[#allocation10 + $0xd8] sm:$0xff]
        %v2305 = vld [vmem:[#allocation10 + $0xe0] sm:$0xff]
        %v2306 = vld [vmem:[#allocation10 + $0xe8] sm:$0xff]
        %v2307 = vld [vmem:[#allocation10 + $0xf0] sm:$0xff]
        %v2308 = vld [vmem:[#allocation10 + $0xf8] sm:$0xff]
        %v2309 = vpack.c.bf16 %v2244, %v2242
        %v2310 = vpack.c.bf16 %v2245, %v2243
        %v2311 = vld [vmem:[#allocation12] sm:$0xff]
        %v2312 = vld [vmem:[#allocation12 + $0x8] sm:$0xff]
        %v2313 = vld [vmem:[#allocation12 + $0x10] sm:$0xff]
        %v2314 = vld [vmem:[#allocation12 + $0x18] sm:$0xff]
        %v2315 = vld [vmem:[#allocation12 + $0x20] sm:$0xff]
        %v2316 = vld [vmem:[#allocation12 + $0x28] sm:$0xff]
        %v2317 = vld [vmem:[#allocation12 + $0x30] sm:$0xff]
        %v2318 = vld [vmem:[#allocation12 + $0x38] sm:$0xff]
        %v2319 = vld [vmem:[#allocation12 + $0x40] sm:$0xff]
        %v2320 = vld [vmem:[#allocation12 + $0x48] sm:$0xff]
        %v2321 = vld [vmem:[#allocation12 + $0x50] sm:$0xff]
        %v2322 = vld [vmem:[#allocation12 + $0x58] sm:$0xff]
        %v2323 = vld [vmem:[#allocation12 + $0x60] sm:$0xff]
        %v2324 = vld [vmem:[#allocation12 + $0x68] sm:$0xff]
        %v2325 = vld [vmem:[#allocation12 + $0x70] sm:$0xff]
        %v2326 = vld [vmem:[#allocation12 + $0x78] sm:$0xff]
        %v2327 = vld [vmem:[#allocation12 + $0x80] sm:$0xff]
        %v2328 = vld [vmem:[#allocation12 + $0x88] sm:$0xff]
        %v2329 = vld [vmem:[#allocation12 + $0x90] sm:$0xff]
        %v2330 = vld [vmem:[#allocation12 + $0x98] sm:$0xff]
        %v2331 = vld [vmem:[#allocation12 + $0xa0] sm:$0xff]
        %v2332 = vld [vmem:[#allocation12 + $0xa8] sm:$0xff]
        %v2333 = vld [vmem:[#allocation12 + $0xb0] sm:$0xff]
        %v2334 = vld [vmem:[#allocation12 + $0xb8] sm:$0xff]
        %v2335 = vld [vmem:[#allocation12 + $0xc0] sm:$0xff]
        %v2336 = vld [vmem:[#allocation12 + $0xc8] sm:$0xff]
        %v2337 = vld [vmem:[#allocation12 + $0xd0] sm:$0xff]
        %v2338 = vld [vmem:[#allocation12 + $0xd8] sm:$0xff]
        %v2339 = vld [vmem:[#allocation12 + $0xe0] sm:$0xff]
        %v2340 = vld [vmem:[#allocation12 + $0xe8] sm:$0xff]
        %v2341 = vld [vmem:[#allocation12 + $0xf0] sm:$0xff]
        %v2342 = vld [vmem:[#allocation12 + $0xf8] sm:$0xff]
        %v2375 = vunpack.c.l.b16 %v2311
        %v2376 = vunpack.c.h.b16 %v2311
        %v2377 = vunpack.c.l.b16 %v2312
        %v2378 = vunpack.c.h.b16 %v2312
        %v2379 = vunpack.c.l.b16 %v2313
        %v2380 = vunpack.c.h.b16 %v2313
        %v2381 = vunpack.c.l.b16 %v2314
        %v2382 = vunpack.c.h.b16 %v2314
        %v2383 = vunpack.c.l.b16 %v2315
        %v2384 = vunpack.c.h.b16 %v2315
        %v2385 = vunpack.c.l.b16 %v2316
        %v2386 = vunpack.c.h.b16 %v2316
        %v2387 = vunpack.c.l.b16 %v2317
        %v2388 = vunpack.c.h.b16 %v2317
        %v2389 = vunpack.c.l.b16 %v2318
        %v2390 = vunpack.c.h.b16 %v2318
        %v2391 = vunpack.c.l.b16 %v2319
        %v2392 = vunpack.c.h.b16 %v2319
        %v2393 = vunpack.c.l.b16 %v2320
        %v2394 = vunpack.c.h.b16 %v2320
        %v2395 = vunpack.c.l.b16 %v2321
        %v2396 = vunpack.c.h.b16 %v2321
        %v2397 = vunpack.c.l.b16 %v2322
        %v2398 = vunpack.c.h.b16 %v2322
        %v2399 = vunpack.c.l.b16 %v2323
        %v2400 = vunpack.c.h.b16 %v2323
        %v2401 = vunpack.c.l.b16 %v2324
        %v2402 = vunpack.c.h.b16 %v2324
        %v2403 = vunpack.c.l.b16 %v2325
        %v2404 = vunpack.c.h.b16 %v2325
        %v2405 = vunpack.c.l.b16 %v2326
        %v2406 = vunpack.c.h.b16 %v2326
        %v2407 = vunpack.c.l.b16 %v2327
        %v2408 = vunpack.c.h.b16 %v2327
        %v2409 = vunpack.c.l.b16 %v2328
        %v2410 = vunpack.c.h.b16 %v2328
        %v2411 = vunpack.c.l.b16 %v2329
        %v2412 = vunpack.c.h.b16 %v2329
        %v2413 = vunpack.c.l.b16 %v2330
        %v2414 = vunpack.c.h.b16 %v2330
        %v2415 = vunpack.c.l.b16 %v2331
        %v2416 = vunpack.c.h.b16 %v2331
        %v2417 = vunpack.c.l.b16 %v2332
        %v2418 = vunpack.c.h.b16 %v2332
        %v2419 = vunpack.c.l.b16 %v2333
        %v2420 = vunpack.c.h.b16 %v2333
        %v2421 = vunpack.c.l.b16 %v2334
        %v2422 = vunpack.c.h.b16 %v2334
        %v2423 = vunpack.c.l.b16 %v2335
        %v2424 = vunpack.c.h.b16 %v2335
        %v2425 = vunpack.c.l.b16 %v2336
        %v2426 = vunpack.c.h.b16 %v2336
        %v2427 = vunpack.c.l.b16 %v2337
        %v2428 = vunpack.c.h.b16 %v2337
        %v2429 = vunpack.c.l.b16 %v2338
        %v2430 = vunpack.c.h.b16 %v2338
        %v2431 = vunpack.c.l.b16 %v2339
        %v2432 = vunpack.c.h.b16 %v2339
        %v2433 = vunpack.c.l.b16 %v2340
        %v2434 = vunpack.c.h.b16 %v2340
        %v2435 = vunpack.c.l.b16 %v2341
        %v2436 = vunpack.c.h.b16 %v2341
        %v2437 = vunpack.c.l.b16 %v2342
        %v2438 = vunpack.c.h.b16 %v2342
        %v2439 = vpack.c.b16 %v2377, %v2375
        %v2440 = vpack.c.b16 %v2378, %v2376
        %v2441 = vpack.c.b16 %v2381, %v2379
        %v2442 = vpack.c.b16 %v2382, %v2380
        %v2443 = vpack.c.b16 %v2385, %v2383
        %v2444 = vpack.c.b16 %v2386, %v2384
        %v2445 = vpack.c.b16 %v2389, %v2387
        %v2446 = vpack.c.b16 %v2390, %v2388
        %v2447 = vpack.c.b16 %v2393, %v2391
        %v2448 = vpack.c.b16 %v2394, %v2392
        %v2449 = vpack.c.b16 %v2397, %v2395
        %v2450 = vpack.c.b16 %v2398, %v2396
        %v2451 = vpack.c.b16 %v2401, %v2399
        %v2452 = vpack.c.b16 %v2402, %v2400
        %v2453 = vpack.c.b16 %v2405, %v2403
        %v2454 = vpack.c.b16 %v2406, %v2404
        %v2455 = vpack.c.b16 %v2409, %v2407
        %v2456 = vpack.c.b16 %v2410, %v2408
        %v2457 = vpack.c.b16 %v2413, %v2411
        %v2458 = vpack.c.b16 %v2414, %v2412
        %v2459 = vpack.c.b16 %v2417, %v2415
        %v2460 = vpack.c.b16 %v2418, %v2416
        %v2461 = vpack.c.b16 %v2421, %v2419
        %v2462 = vpack.c.b16 %v2422, %v2420
        %v2463 = vpack.c.b16 %v2425, %v2423
        %v2464 = vpack.c.b16 %v2426, %v2424
        %v2465 = vpack.c.b16 %v2429, %v2427
        %v2466 = vpack.c.b16 %v2430, %v2428
        %v2467 = vpack.c.b16 %v2433, %v2431
        %v2468 = vpack.c.b16 %v2434, %v2432
        %v2469 = vpack.c.b16 %v2437, %v2435
        %v2470 = vpack.c.b16 %v2438, %v2436
        %2503 = vmatprep.subr.bf16.mxu0 %v2440
        %2504 = vmatpush1.bf16.msra.mxu0 %v2439
        %2505 = vmatprep.subr.bf16.mxu0 %v2442
        %2506 = vmatpush1.bf16.msra.mxu0 %v2441
        %2507 = vmatprep.subr.bf16.mxu0 %v2444
        %2508 = vmatpush1.bf16.msra.mxu0 %v2443
        %2509 = vmatprep.subr.bf16.mxu0 %v2446
        %2510 = vmatpush1.bf16.msra.mxu0 %v2445
        %2511 = vmatprep.subr.bf16.mxu0 %v2448
        %2512 = vmatpush1.bf16.msra.mxu0 %v2447
        %2513 = vmatprep.subr.bf16.mxu0 %v2450
        %2514 = vmatpush1.bf16.msra.mxu0 %v2449
        %2515 = vmatprep.subr.bf16.mxu0 %v2452
        %2516 = vmatpush1.bf16.msra.mxu0 %v2451
        %2517 = vmatprep.subr.bf16.mxu0 %v2454
        %2518 = vmatpush1.bf16.msra.mxu0 %v2453
        %2519 = vmatprep.subr.bf16.mxu0 %v2456
        %2520 = vmatpush1.bf16.msra.mxu0 %v2455
        %2521 = vmatprep.subr.bf16.mxu0 %v2458
        %2522 = vmatpush1.bf16.msra.mxu0 %v2457
        %2523 = vmatprep.subr.bf16.mxu0 %v2460
        %2524 = vmatpush1.bf16.msra.mxu0 %v2459
        %2525 = vmatprep.subr.bf16.mxu0 %v2462
        %2526 = vmatpush1.bf16.msra.mxu0 %v2461
        %2527 = vmatprep.subr.bf16.mxu0 %v2464
        %2528 = vmatpush1.bf16.msra.mxu0 %v2463
        %2529 = vmatprep.subr.bf16.mxu0 %v2466
        %2530 = vmatpush1.bf16.msra.mxu0 %v2465
        %2531 = vmatprep.subr.bf16.mxu0 %v2468
        %2532 = vmatpush1.bf16.msra.mxu0 %v2467
        %2533 = vmatprep.subr.bf16.mxu0 %v2470
        %2534 = vmatpush1.bf16.msra.mxu0 %v2469
        %2535 = vmatprep.mubr.bf16.mxu0 %v2310
        %2536 = vmatmul.mubr.bf16.gmra.mrb[0].mxu0 %v2309
        %v2537 = vpop.f32.mrb[0].mxu0
        %v2538 = vadd.f32 0.0, %v2537
        %v2539 = vpop.f32.mrb[0].mxu0
        %v2540 = vadd.f32 0.0, %v2539
        %v2541 = vpop.f32.mrb[0].mxu0
        %v2542 = vadd.f32 0.0, %v2541
        %v2543 = vpop.f32.mrb[0].mxu0
        %v2544 = vadd.f32 0.0, %v2543
        %2545 = vdwg.mxu0
        %v2578 = vunpack.c.l.b16 %v2277
        %v2579 = vunpack.c.h.b16 %v2277
        %v2580 = vunpack.c.l.b16 %v2278
        %v2581 = vunpack.c.h.b16 %v2278
        %v2582 = vunpack.c.l.b16 %v2279
        %v2583 = vunpack.c.h.b16 %v2279
        %v2584 = vunpack.c.l.b16 %v2280
        %v2585 = vunpack.c.h.b16 %v2280
        %v2586 = vunpack.c.l.b16 %v2281
        %v2587 = vunpack.c.h.b16 %v2281
        %v2588 = vunpack.c.l.b16 %v2282
        %v2589 = vunpack.c.h.b16 %v2282
        %v2590 = vunpack.c.l.b16 %v2283
        %v2591 = vunpack.c.h.b16 %v2283
        %v2592 = vunpack.c.l.b16 %v2284
        %v2593 = vunpack.c.h.b16 %v2284
        %v2594 = vunpack.c.l.b16 %v2285
        %v2595 = vunpack.c.h.b16 %v2285
        %v2596 = vunpack.c.l.b16 %v2286
        %v2597 = vunpack.c.h.b16 %v2286
        %v2598 = vunpack.c.l.b16 %v2287
        %v2599 = vunpack.c.h.b16 %v2287
        %v2600 = vunpack.c.l.b16 %v2288
        %v2601 = vunpack.c.h.b16 %v2288
        %v2602 = vunpack.c.l.b16 %v2289
        %v2603 = vunpack.c.h.b16 %v2289
        %v2604 = vunpack.c.l.b16 %v2290
        %v2605 = vunpack.c.h.b16 %v2290
        %v2606 = vunpack.c.l.b16 %v2291
        %v2607 = vunpack.c.h.b16 %v2291
        %v2608 = vunpack.c.l.b16 %v2292
        %v2609 = vunpack.c.h.b16 %v2292
        %v2610 = vunpack.c.l.b16 %v2293
        %v2611 = vunpack.c.h.b16 %v2293
        %v2612 = vunpack.c.l.b16 %v2294
        %v2613 = vunpack.c.h.b16 %v2294
        %v2614 = vunpack.c.l.b16 %v2295
        %v2615 = vunpack.c.h.b16 %v2295
        %v2616 = vunpack.c.l.b16 %v2296
        %v2617 = vunpack.c.h.b16 %v2296
        %v2618 = vunpack.c.l.b16 %v2297
        %v2619 = vunpack.c.h.b16 %v2297
        %v2620 = vunpack.c.l.b16 %v2298
        %v2621 = vunpack.c.h.b16 %v2298
        %v2622 = vunpack.c.l.b16 %v2299
        %v2623 = vunpack.c.h.b16 %v2299
        %v2624 = vunpack.c.l.b16 %v2300
        %v2625 = vunpack.c.h.b16 %v2300
        %v2626 = vunpack.c.l.b16 %v2301
        %v2627 = vunpack.c.h.b16 %v2301
        %v2628 = vunpack.c.l.b16 %v2302
        %v2629 = vunpack.c.h.b16 %v2302
        %v2630 = vunpack.c.l.b16 %v2303
        %v2631 = vunpack.c.h.b16 %v2303
        %v2632 = vunpack.c.l.b16 %v2304
        %v2633 = vunpack.c.h.b16 %v2304
        %v2634 = vunpack.c.l.b16 %v2305
        %v2635 = vunpack.c.h.b16 %v2305
        %v2636 = vunpack.c.l.b16 %v2306
        %v2637 = vunpack.c.h.b16 %v2306
        %v2638 = vunpack.c.l.b16 %v2307
        %v2639 = vunpack.c.h.b16 %v2307
        %v2640 = vunpack.c.l.b16 %v2308
        %v2641 = vunpack.c.h.b16 %v2308
        %v2642 = vpack.c.b16 %v2580, %v2578
        %v2643 = vpack.c.b16 %v2581, %v2579
        %v2644 = vpack.c.b16 %v2584, %v2582
        %v2645 = vpack.c.b16 %v2585, %v2583
        %v2646 = vpack.c.b16 %v2588, %v2586
        %v2647 = vpack.c.b16 %v2589, %v2587
        %v2648 = vpack.c.b16 %v2592, %v2590
        %v2649 = vpack.c.b16 %v2593, %v2591
        %v2650 = vpack.c.b16 %v2596, %v2594
        %v2651 = vpack.c.b16 %v2597, %v2595
        %v2652 = vpack.c.b16 %v2600, %v2598
        %v2653 = vpack.c.b16 %v2601, %v2599
        %v2654 = vpack.c.b16 %v2604, %v2602
        %v2655 = vpack.c.b16 %v2605, %v2603
        %v2656 = vpack.c.b16 %v2608, %v2606
        %v2657 = vpack.c.b16 %v2609, %v2607
        %v2658 = vpack.c.b16 %v2612, %v2610
        %v2659 = vpack.c.b16 %v2613, %v2611
        %v2660 = vpack.c.b16 %v2616, %v2614
        %v2661 = vpack.c.b16 %v2617, %v2615
        %v2662 = vpack.c.b16 %v2620, %v2618
        %v2663 = vpack.c.b16 %v2621, %v2619
        %v2664 = vpack.c.b16 %v2624, %v2622
        %v2665 = vpack.c.b16 %v2625, %v2623
        %v2666 = vpack.c.b16 %v2628, %v2626
        %v2667 = vpack.c.b16 %v2629, %v2627
        %v2668 = vpack.c.b16 %v2632, %v2630
        %v2669 = vpack.c.b16 %v2633, %v2631
        %v2670 = vpack.c.b16 %v2636, %v2634
        %v2671 = vpack.c.b16 %v2637, %v2635
        %v2672 = vpack.c.b16 %v2640, %v2638
        %v2673 = vpack.c.b16 %v2641, %v2639
        %2706 = vmatprep.subr.bf16.mxu0 %v2643
        %2707 = vmatpush1.bf16.msra.mxu0 %v2642
        %2708 = vmatprep.subr.bf16.mxu0 %v2645
        %2709 = vmatpush1.bf16.msra.mxu0 %v2644
        %2710 = vmatprep.subr.bf16.mxu0 %v2647
        %2711 = vmatpush1.bf16.msra.mxu0 %v2646
        %2712 = vmatprep.subr.bf16.mxu0 %v2649
        %2713 = vmatpush1.bf16.msra.mxu0 %v2648
        %2714 = vmatprep.subr.bf16.mxu0 %v2651
        %2715 = vmatpush1.bf16.msra.mxu0 %v2650
        %2716 = vmatprep.subr.bf16.mxu0 %v2653
        %2717 = vmatpush1.bf16.msra.mxu0 %v2652
        %2718 = vmatprep.subr.bf16.mxu0 %v2655
        %2719 = vmatpush1.bf16.msra.mxu0 %v2654
        %2720 = vmatprep.subr.bf16.mxu0 %v2657
        %2721 = vmatpush1.bf16.msra.mxu0 %v2656
        %2722 = vmatprep.subr.bf16.mxu0 %v2659
        %2723 = vmatpush1.bf16.msra.mxu0 %v2658
        %2724 = vmatprep.subr.bf16.mxu0 %v2661
        %2725 = vmatpush1.bf16.msra.mxu0 %v2660
        %2726 = vmatprep.subr.bf16.mxu0 %v2663
        %2727 = vmatpush1.bf16.msra.mxu0 %v2662
        %2728 = vmatprep.subr.bf16.mxu0 %v2665
        %2729 = vmatpush1.bf16.msra.mxu0 %v2664
        %2730 = vmatprep.subr.bf16.mxu0 %v2667
        %2731 = vmatpush1.bf16.msra.mxu0 %v2666
        %2732 = vmatprep.subr.bf16.mxu0 %v2669
        %2733 = vmatpush1.bf16.msra.mxu0 %v2668
        %2734 = vmatprep.subr.bf16.mxu0 %v2671
        %2735 = vmatpush1.bf16.msra.mxu0 %v2670
        %2736 = vmatprep.subr.bf16.mxu0 %v2673
        %2737 = vmatpush1.bf16.msra.mxu0 %v2672
        %2738 = vmatprep.mubr.bf16.mxu0 %v2276
        %2739 = vmatmul.mubr.bf16.gmra.mrb[0].mxu0 %v2275
        %v2740 = vpop.f32.mrb[0].mxu0
        %v2741 = vadd.f32 %v2538, %v2740
        %v2742 = vpop.f32.mrb[0].mxu0
        %v2743 = vadd.f32 %v2540, %v2742
        %v2744 = vpop.f32.mrb[0].mxu0
        %v2745 = vadd.f32 %v2542, %v2744
        %v2746 = vpop.f32.mrb[0].mxu0
        %v2747 = vadd.f32 %v2544, %v2746
        %2748 = vdwg.mxu0
        %v2749 = vpack.c.bf16 %v2273, %v2271
        %v2750 = vpack.c.bf16 %v2274, %v2272
        %v2751 = vld [vmem:[#allocation13] sm:$0xff]
        %v2752 = vld [vmem:[#allocation13 + $0x8] sm:$0xff]
        %v2753 = vld [vmem:[#allocation13 + $0x10] sm:$0xff]
        %v2754 = vld [vmem:[#allocation13 + $0x18] sm:$0xff]
        %v2755 = vld [vmem:[#allocation13 + $0x20] sm:$0xff]
        %v2756 = vld [vmem:[#allocation13 + $0x28] sm:$0xff]
        %v2757 = vld [vmem:[#allocation13 + $0x30] sm:$0xff]
        %v2758 = vld [vmem:[#allocation13 + $0x38] sm:$0xff]
        %v2759 = vld [vmem:[#allocation13 + $0x40] sm:$0xff]
        %v2760 = vld [vmem:[#allocation13 + $0x48] sm:$0xff]
        %v2761 = vld [vmem:[#allocation13 + $0x50] sm:$0xff]
        %v2762 = vld [vmem:[#allocation13 + $0x58] sm:$0xff]
        %v2763 = vld [vmem:[#allocation13 + $0x60] sm:$0xff]
        %v2764 = vld [vmem:[#allocation13 + $0x68] sm:$0xff]
        %v2765 = vld [vmem:[#allocation13 + $0x70] sm:$0xff]
        %v2766 = vld [vmem:[#allocation13 + $0x78] sm:$0xff]
        %v2767 = vld [vmem:[#allocation13 + $0x80] sm:$0xff]
        %v2768 = vld [vmem:[#allocation13 + $0x88] sm:$0xff]
        %v2769 = vld [vmem:[#allocation13 + $0x90] sm:$0xff]
        %v2770 = vld [vmem:[#allocation13 + $0x98] sm:$0xff]
        %v2771 = vld [vmem:[#allocation13 + $0xa0] sm:$0xff]
        %v2772 = vld [vmem:[#allocation13 + $0xa8] sm:$0xff]
        %v2773 = vld [vmem:[#allocation13 + $0xb0] sm:$0xff]
        %v2774 = vld [vmem:[#allocation13 + $0xb8] sm:$0xff]
        %v2775 = vld [vmem:[#allocation13 + $0xc0] sm:$0xff]
        %v2776 = vld [vmem:[#allocation13 + $0xc8] sm:$0xff]
        %v2777 = vld [vmem:[#allocation13 + $0xd0] sm:$0xff]
        %v2778 = vld [vmem:[#allocation13 + $0xd8] sm:$0xff]
        %v2779 = vld [vmem:[#allocation13 + $0xe0] sm:$0xff]
        %v2780 = vld [vmem:[#allocation13 + $0xe8] sm:$0xff]
        %v2781 = vld [vmem:[#allocation13 + $0xf0] sm:$0xff]
        %v2782 = vld [vmem:[#allocation13 + $0xf8] sm:$0xff]
        %v2815 = vunpack.c.l.b16 %v2751
        %v2816 = vunpack.c.h.b16 %v2751
        %v2817 = vunpack.c.l.b16 %v2752
        %v2818 = vunpack.c.h.b16 %v2752
        %v2819 = vunpack.c.l.b16 %v2753
        %v2820 = vunpack.c.h.b16 %v2753
        %v2821 = vunpack.c.l.b16 %v2754
        %v2822 = vunpack.c.h.b16 %v2754
        %v2823 = vunpack.c.l.b16 %v2755
        %v2824 = vunpack.c.h.b16 %v2755
        %v2825 = vunpack.c.l.b16 %v2756
        %v2826 = vunpack.c.h.b16 %v2756
        %v2827 = vunpack.c.l.b16 %v2757
        %v2828 = vunpack.c.h.b16 %v2757
        %v2829 = vunpack.c.l.b16 %v2758
        %v2830 = vunpack.c.h.b16 %v2758
        %v2831 = vunpack.c.l.b16 %v2759
        %v2832 = vunpack.c.h.b16 %v2759
        %v2833 = vunpack.c.l.b16 %v2760
        %v2834 = vunpack.c.h.b16 %v2760
        %v2835 = vunpack.c.l.b16 %v2761
        %v2836 = vunpack.c.h.b16 %v2761
        %v2837 = vunpack.c.l.b16 %v2762
        %v2838 = vunpack.c.h.b16 %v2762
        %v2839 = vunpack.c.l.b16 %v2763
        %v2840 = vunpack.c.h.b16 %v2763
        %v2841 = vunpack.c.l.b16 %v2764
        %v2842 = vunpack.c.h.b16 %v2764
        %v2843 = vunpack.c.l.b16 %v2765
        %v2844 = vunpack.c.h.b16 %v2765
        %v2845 = vunpack.c.l.b16 %v2766
        %v2846 = vunpack.c.h.b16 %v2766
        %v2847 = vunpack.c.l.b16 %v2767
        %v2848 = vunpack.c.h.b16 %v2767
        %v2849 = vunpack.c.l.b16 %v2768
        %v2850 = vunpack.c.h.b16 %v2768
        %v2851 = vunpack.c.l.b16 %v2769
        %v2852 = vunpack.c.h.b16 %v2769
        %v2853 = vunpack.c.l.b16 %v2770
        %v2854 = vunpack.c.h.b16 %v2770
        %v2855 = vunpack.c.l.b16 %v2771
        %v2856 = vunpack.c.h.b16 %v2771
        %v2857 = vunpack.c.l.b16 %v2772
        %v2858 = vunpack.c.h.b16 %v2772
        %v2859 = vunpack.c.l.b16 %v2773
        %v2860 = vunpack.c.h.b16 %v2773
        %v2861 = vunpack.c.l.b16 %v2774
        %v2862 = vunpack.c.h.b16 %v2774
        %v2863 = vunpack.c.l.b16 %v2775
        %v2864 = vunpack.c.h.b16 %v2775
        %v2865 = vunpack.c.l.b16 %v2776
        %v2866 = vunpack.c.h.b16 %v2776
        %v2867 = vunpack.c.l.b16 %v2777
        %v2868 = vunpack.c.h.b16 %v2777
        %v2869 = vunpack.c.l.b16 %v2778
        %v2870 = vunpack.c.h.b16 %v2778
        %v2871 = vunpack.c.l.b16 %v2779
        %v2872 = vunpack.c.h.b16 %v2779
        %v2873 = vunpack.c.l.b16 %v2780
        %v2874 = vunpack.c.h.b16 %v2780
        %v2875 = vunpack.c.l.b16 %v2781
        %v2876 = vunpack.c.h.b16 %v2781
        %v2877 = vunpack.c.l.b16 %v2782
        %v2878 = vunpack.c.h.b16 %v2782
        %v2879 = vpack.c.b16 %v2817, %v2815
        %v2880 = vpack.c.b16 %v2818, %v2816
        %v2881 = vpack.c.b16 %v2821, %v2819
        %v2882 = vpack.c.b16 %v2822, %v2820
        %v2883 = vpack.c.b16 %v2825, %v2823
        %v2884 = vpack.c.b16 %v2826, %v2824
        %v2885 = vpack.c.b16 %v2829, %v2827
        %v2886 = vpack.c.b16 %v2830, %v2828
        %v2887 = vpack.c.b16 %v2833, %v2831
        %v2888 = vpack.c.b16 %v2834, %v2832
        %v2889 = vpack.c.b16 %v2837, %v2835
        %v2890 = vpack.c.b16 %v2838, %v2836
        %v2891 = vpack.c.b16 %v2841, %v2839
        %v2892 = vpack.c.b16 %v2842, %v2840
        %v2893 = vpack.c.b16 %v2845, %v2843
        %v2894 = vpack.c.b16 %v2846, %v2844
        %v2895 = vpack.c.b16 %v2849, %v2847
        %v2896 = vpack.c.b16 %v2850, %v2848
        %v2897 = vpack.c.b16 %v2853, %v2851
        %v2898 = vpack.c.b16 %v2854, %v2852
        %v2899 = vpack.c.b16 %v2857, %v2855
        %v2900 = vpack.c.b16 %v2858, %v2856
        %v2901 = vpack.c.b16 %v2861, %v2859
        %v2902 = vpack.c.b16 %v2862, %v2860
        %v2903 = vpack.c.b16 %v2865, %v2863
        %v2904 = vpack.c.b16 %v2866, %v2864
        %v2905 = vpack.c.b16 %v2869, %v2867
        %v2906 = vpack.c.b16 %v2870, %v2868
        %v2907 = vpack.c.b16 %v2873, %v2871
        %v2908 = vpack.c.b16 %v2874, %v2872
        %v2909 = vpack.c.b16 %v2877, %v2875
        %v2910 = vpack.c.b16 %v2878, %v2876
        %2943 = vmatprep.subr.bf16.mxu0 %v2880
        %2944 = vmatpush1.bf16.msra.mxu0 %v2879
        %2945 = vmatprep.subr.bf16.mxu0 %v2882
        %2946 = vmatpush1.bf16.msra.mxu0 %v2881
        %2947 = vmatprep.subr.bf16.mxu0 %v2884
        %2948 = vmatpush1.bf16.msra.mxu0 %v2883
        %2949 = vmatprep.subr.bf16.mxu0 %v2886
        %2950 = vmatpush1.bf16.msra.mxu0 %v2885
        %2951 = vmatprep.subr.bf16.mxu0 %v2888
        %2952 = vmatpush1.bf16.msra.mxu0 %v2887
        %2953 = vmatprep.subr.bf16.mxu0 %v2890
        %2954 = vmatpush1.bf16.msra.mxu0 %v2889
        %2955 = vmatprep.subr.bf16.mxu0 %v2892
        %2956 = vmatpush1.bf16.msra.mxu0 %v2891
        %2957 = vmatprep.subr.bf16.mxu0 %v2894
        %2958 = vmatpush1.bf16.msra.mxu0 %v2893
        %2959 = vmatprep.subr.bf16.mxu0 %v2896
        %2960 = vmatpush1.bf16.msra.mxu0 %v2895
        %2961 = vmatprep.subr.bf16.mxu0 %v2898
        %2962 = vmatpush1.bf16.msra.mxu0 %v2897
        %2963 = vmatprep.subr.bf16.mxu0 %v2900
        %2964 = vmatpush1.bf16.msra.mxu0 %v2899
        %2965 = vmatprep.subr.bf16.mxu0 %v2902
        %2966 = vmatpush1.bf16.msra.mxu0 %v2901
        %2967 = vmatprep.subr.bf16.mxu0 %v2904
        %2968 = vmatpush1.bf16.msra.mxu0 %v2903
        %2969 = vmatprep.subr.bf16.mxu0 %v2906
        %2970 = vmatpush1.bf16.msra.mxu0 %v2905
        %2971 = vmatprep.subr.bf16.mxu0 %v2908
        %2972 = vmatpush1.bf16.msra.mxu0 %v2907
        %2973 = vmatprep.subr.bf16.mxu0 %v2910
        %2974 = vmatpush1.bf16.msra.mxu0 %v2909
        %2975 = vmatprep.mubr.bf16.mxu0 %v2750
        %2976 = vmatmul.mubr.bf16.gmra.mrb[0].mxu0 %v2749
        %v2977 = vpop.f32.mrb[0].mxu0
        %v2978 = vadd.f32 0.0, %v2977
        %v2979 = vpop.f32.mrb[0].mxu0
        %v2980 = vadd.f32 0.0, %v2979
        %v2981 = vpop.f32.mrb[0].mxu0
        %v2982 = vadd.f32 0.0, %v2981
        %v2983 = vpop.f32.mrb[0].mxu0
        %v2984 = vadd.f32 0.0, %v2983
        %2985 = vdwg.mxu0
        %v2986 = vadd.f32 %v2741, %v2978
        %v2987 = vadd.f32 %v2743, %v2980
        %v2988 = vadd.f32 %v2745, %v2982
        %v2989 = vadd.f32 %v2747, %v2984
        %v2990 = vld [vmem:[#allocation15] sm:$0x3]
        %v2992 = vlaneseq
        %v2993 = vshrl.u32 %v2992, 7
        %v2994 = vsub.s32 0, %v2993
        %v2995 = vrot.slane %v2990, %v2994
        %v2996 = vlaneseq
        %v2997 = vshrl.u32 %v2996, 7
        %v2998 = vsub.s32 1, %v2997
        %v2999 = vrot.slane %v2990, %v2998
        %v3002 = vadd.f32 %v2986, %v2995
        %v3003 = vadd.f32 %v2987, %v2999
        %v3004 = vadd.f32 %v2988, %v2995
        %v3005 = vadd.f32 %v2989, %v2999
        %v3006 = vmax.f32 %v3002, 0.0
        %v3007 = vmax.f32 %v3003, 0.0
        %v3008 = vmax.f32 %v3004, 0.0
        %v3009 = vmax.f32 %v3005, 0.0
        %v3010 = vrot.slane %v3006, 4
        %v3011 = vrot.slane %v3007, 4
        %v3012 = vrot.slane %v3008, 4
        %v3013 = vrot.slane %v3009, 4
        %v3014 = vsel %vm2252, %v3010, %v3012
        %v3015 = vsel %vm2252, %v3011, %v3013
        %v3016 = vsel %vm2252, %v3012, %v3010
        %v3017 = vsel %vm2252, %v3013, %v3011
        %v3018 = vmax.f32 %v3006, %v3014
        %v3019 = vmax.f32 %v3007, %v3015
        %v3020 = vmax.f32 %v3008, %v3016
        %v3021 = vmax.f32 %v3009, %v3017
        %3022 = vrot.lane.b32.xlu0 %v3018, 64
        %v3023 = vpop.permute.xlu0 %3022
        %3024 = vrot.lane.b32.xlu0 %v3020, 64
        %v3025 = vpop.permute.xlu0 %3024
        %3026 = vrot.lane.b32.xlu0 %v3019, 64
        %v3027 = vpop.permute.xlu0 %3026
        %3028 = vrot.lane.b32.xlu0 %v3021, 64
        %v3029 = vpop.permute.xlu0 %3028
        %vm3030 = vcmp.lt.s32.totalorder %v1434, 64
        %v3031 = vsel %vm3030, %v3023, %v3027
        %v3032 = vsel %vm3030, %v3025, %v3029
        %v3033 = vsel %vm3030, %v3027, %v3023
        %v3034 = vsel %vm3030, %v3029, %v3025
        %v3035 = vmax.f32 %v3018, %v3031
        %v3036 = vmax.f32 %v3019, %v3033
        %v3037 = vmax.f32 %v3020, %v3032
        %v3038 = vmax.f32 %v3021, %v3034
        %v3039 = vpack.c.bf16 %v3035, %v3035
        %v3040 = vpack.c.bf16 %v3036, %v3036
        %v3041 = vpack.c.bf16 %v3037, %v3037
        %v3042 = vpack.c.bf16 %v3038, %v3038
        %v3043 = vld [vmem:[%s27] sm:$0xf]
        %v3044 = vld [vmem:[%s27 + $0x4] sm:$0xf]
        %v3045 = vld [vmem:[%s27 + $0x8] sm:$0xf]
        %v3046 = vld [vmem:[%s27 + $0xc] sm:$0xf]
        %v3047 = vld [vmem:[%s27 + $0x10] sm:$0xf]
        %v3048 = vld [vmem:[%s27 + $0x14] sm:$0xf]
        %v3049 = vld [vmem:[%s27 + $0x18] sm:$0xf]
        %v3050 = vld [vmem:[%s27 + $0x1c] sm:$0xf]
        %v3051 = vld [vmem:[%s27 + $0x20] sm:$0xf]
        %v3052 = vld [vmem:[%s27 + $0x24] sm:$0xf]
        %v3053 = vld [vmem:[%s27 + $0x28] sm:$0xf]
        %v3054 = vld [vmem:[%s27 + $0x2c] sm:$0xf]
        %v3055 = vld [vmem:[%s27 + $0x30] sm:$0xf]
        %v3056 = vld [vmem:[%s27 + $0x34] sm:$0xf]
        %v3057 = vld [vmem:[%s27 + $0x38] sm:$0xf]
        %v3058 = vld [vmem:[%s27 + $0x3c] sm:$0xf]
        %v3059 = vld [vmem:[%s27 + $0x40] sm:$0xf]
        %v3060 = vld [vmem:[%s27 + $0x44] sm:$0xf]
        %v3061 = vld [vmem:[%s27 + $0x48] sm:$0xf]
        %v3062 = vld [vmem:[%s27 + $0x4c] sm:$0xf]
        %v3063 = vld [vmem:[%s27 + $0x50] sm:$0xf]
        %v3064 = vld [vmem:[%s27 + $0x54] sm:$0xf]
        %v3065 = vld [vmem:[%s27 + $0x58] sm:$0xf]
        %v3066 = vld [vmem:[%s27 + $0x5c] sm:$0xf]
        %v3067 = vld [vmem:[%s27 + $0x60] sm:$0xf]
        %v3068 = vld [vmem:[%s27 + $0x64] sm:$0xf]
        %v3069 = vld [vmem:[%s27 + $0x68] sm:$0xf]
        %v3070 = vld [vmem:[%s27 + $0x6c] sm:$0xf]
        %v3071 = vld [vmem:[%s27 + $0x70] sm:$0xf]
        %v3072 = vld [vmem:[%s27 + $0x74] sm:$0xf]
        %v3073 = vld [vmem:[%s27 + $0x78] sm:$0xf]
        %v3074 = vld [vmem:[%s27 + $0x7c] sm:$0xf]
        %v3075 = vld [vmem:[%s27 + $0x80] sm:$0xf]
        %v3076 = vld [vmem:[%s27 + $0x84] sm:$0xf]
        %v3077 = vld [vmem:[%s27 + $0x88] sm:$0xf]
        %v3078 = vld [vmem:[%s27 + $0x8c] sm:$0xf]
        %v3079 = vld [vmem:[%s27 + $0x90] sm:$0xf]
        %v3080 = vld [vmem:[%s27 + $0x94] sm:$0xf]
        %v3081 = vld [vmem:[%s27 + $0x98] sm:$0xf]
        %v3082 = vld [vmem:[%s27 + $0x9c] sm:$0xf]
        %v3083 = vld [vmem:[%s27 + $0xa0] sm:$0xf]
        %v3084 = vld [vmem:[%s27 + $0xa4] sm:$0xf]
        %v3085 = vld [vmem:[%s27 + $0xa8] sm:$0xf]
        %v3086 = vld [vmem:[%s27 + $0xac] sm:$0xf]
        %v3087 = vld [vmem:[%s27 + $0xb0] sm:$0xf]
        %v3088 = vld [vmem:[%s27 + $0xb4] sm:$0xf]
        %v3089 = vld [vmem:[%s27 + $0xb8] sm:$0xf]
        %v3090 = vld [vmem:[%s27 + $0xbc] sm:$0xf]
        %v3091 = vld [vmem:[%s27 + $0xc0] sm:$0xf]
        %v3092 = vld [vmem:[%s27 + $0xc4] sm:$0xf]
        %v3093 = vld [vmem:[%s27 + $0xc8] sm:$0xf]
        %v3094 = vld [vmem:[%s27 + $0xcc] sm:$0xf]
        %v3095 = vld [vmem:[%s27 + $0xd0] sm:$0xf]
        %v3096 = vld [vmem:[%s27 + $0xd4] sm:$0xf]
        %v3097 = vld [vmem:[%s27 + $0xd8] sm:$0xf]
        %v3098 = vld [vmem:[%s27 + $0xdc] sm:$0xf]
        %v3099 = vld [vmem:[%s27 + $0xe0] sm:$0xf]
        %v3100 = vld [vmem:[%s27 + $0xe4] sm:$0xf]
        %v3101 = vld [vmem:[%s27 + $0xe8] sm:$0xf]
        %v3102 = vld [vmem:[%s27 + $0xec] sm:$0xf]
        %v3103 = vld [vmem:[%s27 + $0xf0] sm:$0xf]
        %v3104 = vld [vmem:[%s27 + $0xf4] sm:$0xf]
        %v3105 = vld [vmem:[%s27 + $0xf8] sm:$0xf]
        %v3106 = vld [vmem:[%s27 + $0xfc] sm:$0xf]
        %v3107 = vld [vmem:[#allocation16] sm:$0x1]
        %v3172 = vunpack.c.l.b16 %v3043
        %v3173 = vunpack.c.l.b16 %v3044
        %v3174 = vunpack.c.l.b16 %v3045
        %v3175 = vunpack.c.l.b16 %v3046
        %v3176 = vunpack.c.l.b16 %v3047
        %v3177 = vunpack.c.l.b16 %v3048
        %v3178 = vunpack.c.l.b16 %v3049
        %v3179 = vunpack.c.l.b16 %v3050
        %v3180 = vunpack.c.l.b16 %v3051
        %v3181 = vunpack.c.l.b16 %v3052
        %v3182 = vunpack.c.l.b16 %v3053
        %v3183 = vunpack.c.l.b16 %v3054
        %v3184 = vunpack.c.l.b16 %v3055
        %v3185 = vunpack.c.l.b16 %v3056
        %v3186 = vunpack.c.l.b16 %v3057
        %v3187 = vunpack.c.l.b16 %v3058
        %v3188 = vunpack.c.l.b16 %v3059
        %v3189 = vunpack.c.l.b16 %v3060
        %v3190 = vunpack.c.l.b16 %v3061
        %v3191 = vunpack.c.l.b16 %v3062
        %v3192 = vunpack.c.l.b16 %v3063
        %v3193 = vunpack.c.l.b16 %v3064
        %v3194 = vunpack.c.l.b16 %v3065
        %v3195 = vunpack.c.l.b16 %v3066
        %v3196 = vunpack.c.l.b16 %v3067
        %v3197 = vunpack.c.l.b16 %v3068
        %v3198 = vunpack.c.l.b16 %v3069
        %v3199 = vunpack.c.l.b16 %v3070
        %v3200 = vunpack.c.l.b16 %v3071
        %v3201 = vunpack.c.l.b16 %v3072
        %v3202 = vunpack.c.l.b16 %v3073
        %v3203 = vunpack.c.l.b16 %v3074
        %v3204 = vunpack.c.l.b16 %v3075
        %v3205 = vunpack.c.l.b16 %v3076
        %v3206 = vunpack.c.l.b16 %v3077
        %v3207 = vunpack.c.l.b16 %v3078
        %v3208 = vunpack.c.l.b16 %v3079
        %v3209 = vunpack.c.l.b16 %v3080
        %v3210 = vunpack.c.l.b16 %v3081
        %v3211 = vunpack.c.l.b16 %v3082
        %v3212 = vunpack.c.l.b16 %v3083
        %v3213 = vunpack.c.l.b16 %v3084
        %v3214 = vunpack.c.l.b16 %v3085
        %v3215 = vunpack.c.l.b16 %v3086
        %v3216 = vunpack.c.l.b16 %v3087
        %v3217 = vunpack.c.l.b16 %v3088
        %v3218 = vunpack.c.l.b16 %v3089
        %v3219 = vunpack.c.l.b16 %v3090
        %v3220 = vunpack.c.l.b16 %v3091
        %v3221 = vunpack.c.l.b16 %v3092
        %v3222 = vunpack.c.l.b16 %v3093
        %v3223 = vunpack.c.l.b16 %v3094
        %v3224 = vunpack.c.l.b16 %v3095
        %v3225 = vunpack.c.l.b16 %v3096
        %v3226 = vunpack.c.l.b16 %v3097
        %v3227 = vunpack.c.l.b16 %v3098
        %v3228 = vunpack.c.l.b16 %v3099
        %v3229 = vunpack.c.l.b16 %v3100
        %v3230 = vunpack.c.l.b16 %v3101
        %v3231 = vunpack.c.l.b16 %v3102
        %v3232 = vunpack.c.l.b16 %v3103
        %v3233 = vunpack.c.l.b16 %v3104
        %v3234 = vunpack.c.l.b16 %v3105
        %v3235 = vunpack.c.l.b16 %v3106
        %v3236 = vpack.c.b16 %v3173, %v3172
        %v3237 = vpack.c.b16 %v3175, %v3174
        %v3238 = vpack.c.b16 %v3177, %v3176
        %v3239 = vpack.c.b16 %v3179, %v3178
        %v3240 = vpack.c.b16 %v3181, %v3180
        %v3241 = vpack.c.b16 %v3183, %v3182
        %v3242 = vpack.c.b16 %v3185, %v3184
        %v3243 = vpack.c.b16 %v3187, %v3186
        %v3244 = vpack.c.b16 %v3189, %v3188
        %v3245 = vpack.c.b16 %v3191, %v3190
        %v3246 = vpack.c.b16 %v3193, %v3192
        %v3247 = vpack.c.b16 %v3195, %v3194
        %v3248 = vpack.c.b16 %v3197, %v3196
        %v3249 = vpack.c.b16 %v3199, %v3198
        %v3250 = vpack.c.b16 %v3201, %v3200
        %v3251 = vpack.c.b16 %v3203, %v3202
        %v3252 = vpack.c.b16 %v3205, %v3204
        %v3253 = vpack.c.b16 %v3207, %v3206
        %v3254 = vpack.c.b16 %v3209, %v3208
        %v3255 = vpack.c.b16 %v3211, %v3210
        %v3256 = vpack.c.b16 %v3213, %v3212
        %v3257 = vpack.c.b16 %v3215, %v3214
        %v3258 = vpack.c.b16 %v3217, %v3216
        %v3259 = vpack.c.b16 %v3219, %v3218
        %v3260 = vpack.c.b16 %v3221, %v3220
        %v3261 = vpack.c.b16 %v3223, %v3222
        %v3262 = vpack.c.b16 %v3225, %v3224
        %v3263 = vpack.c.b16 %v3227, %v3226
        %v3264 = vpack.c.b16 %v3229, %v3228
        %v3265 = vpack.c.b16 %v3231, %v3230
        %v3266 = vpack.c.b16 %v3233, %v3232
        %v3267 = vpack.c.b16 %v3235, %v3234
        %3300 = vmatprep.subr.bf16.mxu0 0
        %3301 = vmatpush1.bf16.msra.mxu0 %v3236
        %3302 = vmatprep.subr.bf16.mxu0 0
        %3303 = vmatpush1.bf16.msra.mxu0 %v3237
        %3304 = vmatprep.subr.bf16.mxu0 0
        %3305 = vmatpush1.bf16.msra.mxu0 %v3238
        %3306 = vmatprep.subr.bf16.mxu0 0
        %3307 = vmatpush1.bf16.msra.mxu0 %v3239
        %3308 = vmatprep.subr.bf16.mxu0 0
        %3309 = vmatpush1.bf16.msra.mxu0 %v3240
        %3310 = vmatprep.subr.bf16.mxu0 0
        %3311 = vmatpush1.bf16.msra.mxu0 %v3241
        %3312 = vmatprep.subr.bf16.mxu0 0
        %3313 = vmatpush1.bf16.msra.mxu0 %v3242
        %3314 = vmatprep.subr.bf16.mxu0 0
        %3315 = vmatpush1.bf16.msra.mxu0 %v3243
        %3316 = vmatprep.subr.bf16.mxu0 0
        %3317 = vmatpush1.bf16.msra.mxu0 %v3244
        %3318 = vmatprep.subr.bf16.mxu0 0
        %3319 = vmatpush1.bf16.msra.mxu0 %v3245
        %3320 = vmatprep.subr.bf16.mxu0 0
        %3321 = vmatpush1.bf16.msra.mxu0 %v3246
        %3322 = vmatprep.subr.bf16.mxu0 0
        %3323 = vmatpush1.bf16.msra.mxu0 %v3247
        %3324 = vmatprep.subr.bf16.mxu0 0
        %3325 = vmatpush1.bf16.msra.mxu0 %v3248
        %3326 = vmatprep.subr.bf16.mxu0 0
        %3327 = vmatpush1.bf16.msra.mxu0 %v3249
        %3328 = vmatprep.subr.bf16.mxu0 0
        %3329 = vmatpush1.bf16.msra.mxu0 %v3250
        %3330 = vmatprep.subr.bf16.mxu0 0
        %3331 = vmatpush1.bf16.msra.mxu0 %v3251
        %3332 = vmatprep.mubr.bf16.mxu0 %v3040
        %3333 = vmatmul.mubr.bf16.gmra.mrb[0].mxu0 %v3039
        %v3334 = vpop.f32.mrb[0].mxu0
        %v3335 = vadd.f32 %v3107, %v3334
        %v3336 = vpop.f32.mrb[0].mxu0
        %v3337 = vpop.f32.mrb[0].mxu0
        %v3338 = vpop.f32.mrb[0].mxu0
        %3339 = vdwg.mxu0
        %3340 = vmatprep.subr.bf16.mxu0 0
        %3341 = vmatpush1.bf16.msra.mxu0 %v3252
        %3342 = vmatprep.subr.bf16.mxu0 0
        %3343 = vmatpush1.bf16.msra.mxu0 %v3253
        %3344 = vmatprep.subr.bf16.mxu0 0
        %3345 = vmatpush1.bf16.msra.mxu0 %v3254
        %3346 = vmatprep.subr.bf16.mxu0 0
        %3347 = vmatpush1.bf16.msra.mxu0 %v3255
        %3348 = vmatprep.subr.bf16.mxu0 0
        %3349 = vmatpush1.bf16.msra.mxu0 %v3256
        %3350 = vmatprep.subr.bf16.mxu0 0
        %3351 = vmatpush1.bf16.msra.mxu0 %v3257
        %3352 = vmatprep.subr.bf16.mxu0 0
        %3353 = vmatpush1.bf16.msra.mxu0 %v3258
        %3354 = vmatprep.subr.bf16.mxu0 0
        %3355 = vmatpush1.bf16.msra.mxu0 %v3259
        %3356 = vmatprep.subr.bf16.mxu0 0
        %3357 = vmatpush1.bf16.msra.mxu0 %v3260
        %3358 = vmatprep.subr.bf16.mxu0 0
        %3359 = vmatpush1.bf16.msra.mxu0 %v3261
        %3360 = vmatprep.subr.bf16.mxu0 0
        %3361 = vmatpush1.bf16.msra.mxu0 %v3262
        %3362 = vmatprep.subr.bf16.mxu0 0
        %3363 = vmatpush1.bf16.msra.mxu0 %v3263
        %3364 = vmatprep.subr.bf16.mxu0 0
        %3365 = vmatpush1.bf16.msra.mxu0 %v3264
        %3366 = vmatprep.subr.bf16.mxu0 0
        %3367 = vmatpush1.bf16.msra.mxu0 %v3265
        %3368 = vmatprep.subr.bf16.mxu0 0
        %3369 = vmatpush1.bf16.msra.mxu0 %v3266
        %3370 = vmatprep.subr.bf16.mxu0 0
        %3371 = vmatpush1.bf16.msra.mxu0 %v3267
        %3372 = vmatprep.mubr.bf16.mxu0 %v3042
        %3373 = vmatmul.mubr.bf16.gmra.mrb[0].mxu0 %v3041
        %v3374 = vpop.f32.mrb[0].mxu0
        %v3375 = vadd.f32 %v3335, %v3374
        %v3376 = vpop.f32.mrb[0].mxu0
        %v3377 = vpop.f32.mrb[0].mxu0
        %v3378 = vpop.f32.mrb[0].mxu0
        %3379 = vdwg.mxu0
        %v3380 = vpack.c.bf16 %v3375, %v3375
        %v3381 = vld [vmem:[#allocation18] sm:$0xff]
        %v3382 = vld [vmem:[#allocation18 + $0x8] sm:$0xff]
        %v3383 = vld [vmem:[#allocation18 + $0x10] sm:$0xff]
        %v3384 = vld [vmem:[#allocation18 + $0x18] sm:$0xff]
        %v3385 = vld [vmem:[#allocation19] sm:$0x3]
        %v3390 = vunpack.c.l.b16 %v3381
        %v3391 = vunpack.c.h.b16 %v3381
        %v3392 = vunpack.c.l.b16 %v3382
        %v3393 = vunpack.c.h.b16 %v3382
        %v3394 = vunpack.c.l.b16 %v3383
        %v3395 = vunpack.c.h.b16 %v3383
        %v3396 = vunpack.c.l.b16 %v3384
        %v3397 = vunpack.c.h.b16 %v3384
        %v3398 = vpack.c.b16 %v3392, %v3390
        %v3399 = vpack.c.b16 %v3393, %v3391
        %v3400 = vpack.c.b16 %v3396, %v3394
        %v3401 = vpack.c.b16 %v3397, %v3395
        %v3407 = vlaneseq
        %v3408 = vshrl.u32 %v3407, 7
        %v3409 = vsub.s32 0, %v3408
        %v3410 = vrot.slane %v3385, %v3409
        %v3411 = vlaneseq
        %v3412 = vshrl.u32 %v3411, 7
        %v3413 = vsub.s32 1, %v3412
        %v3414 = vrot.slane %v3385, %v3413
        %v3418 = vsel %vm1205, %v3380, 0
        %3420 = vmatprep.subr.bf16.mxu0 %v3399
        %3421 = vmatpush1.bf16.msra.mxu0 %v3398
        %3422 = vmatprep.subr.bf16.mxu0 %v3401
        %3423 = vmatpush1.bf16.msra.mxu0 %v3400
        %3424 = vmatprep.subr.bf16.mxu0 0
        %3425 = vmatpush1.bf16.msra.mxu0 0
        %3426 = vmatprep.subr.bf16.mxu0 0
        %3427 = vmatpush1.bf16.msra.mxu0 0
        %3428 = vmatprep.subr.bf16.mxu0 0
        %3429 = vmatpush1.bf16.msra.mxu0 0
        %3430 = vmatprep.subr.bf16.mxu0 0
        %3431 = vmatpush1.bf16.msra.mxu0 0
        %3432 = vmatprep.subr.bf16.mxu0 0
        %3433 = vmatpush1.bf16.msra.mxu0 0
        %3434 = vmatprep.subr.bf16.mxu0 0
        %3435 = vmatpush1.bf16.msra.mxu0 0
        %3436 = vmatprep.subr.bf16.mxu0 0
        %3437 = vmatpush1.bf16.msra.mxu0 0
        %3438 = vmatprep.subr.bf16.mxu0 0
        %3439 = vmatpush1.bf16.msra.mxu0 0
        %3440 = vmatprep.subr.bf16.mxu0 0
        %3441 = vmatpush1.bf16.msra.mxu0 0
        %3442 = vmatprep.subr.bf16.mxu0 0
        %3443 = vmatpush1.bf16.msra.mxu0 0
        %3444 = vmatprep.subr.bf16.mxu0 0
        %3445 = vmatpush1.bf16.msra.mxu0 0
        %3446 = vmatprep.subr.bf16.mxu0 0
        %3447 = vmatpush1.bf16.msra.mxu0 0
        %3448 = vmatprep.subr.bf16.mxu0 0
        %3449 = vmatpush1.bf16.msra.mxu0 0
        %3450 = vmatprep.subr.bf16.mxu0 0
        %3451 = vmatpush1.bf16.msra.mxu0 0
        %3452 = vmatprep.mubr.bf16.mxu0 0
        %3453 = vmatmul.mubr.bf16.gmra.mrb[0].mxu0 %v3418
        %v3454 = vpop.f32.mrb[0].mxu0
        %v3455 = vadd.f32 %v3410, %v3454
        %v3456 = vpop.f32.mrb[0].mxu0
        %v3457 = vadd.f32 %v3414, %v3456
        %v3458 = vpop.f32.mrb[0].mxu0
        %v3459 = vpop.f32.mrb[0].mxu0
        %3460 = vdwg.mxu0
        %vm3461 = vcmask 1040384
        %v3462 = vsel %vm3461, %v3455, 0.0
        %v3463 = vsel %vm3461, %v3457, 0.0
        %vm3464 = vcmp.lt.s32.totalorder %v1145, 8
        %vm3465 = vcmp.lt.s32.totalorder %v1146, 8
        %v3466 = vsel %vm3464, 1, 0
        %v3467 = vsel %vm3465, 1, 0
        %vm3468 = vcmp.eq.s32.totalorder %v3466, 1
        %vm3469 = vcmp.eq.s32.totalorder %v3467, 1
        %v3470 = vsel %vm3468, %v3463, 0.0
        %v3471 = vsel %vm3469, %v3462, 0.0
        %v3472 = vpack.c.bf16 %v3463, %v3462
        %v3473 = vld [vmem:[%s35] sm:$0xf]
        %v3474 = vld [vmem:[%s35 + $0x4] sm:$0xf]
        %v3475 = vld [vmem:[%s35 + $0x8] sm:$0xf]
        %v3476 = vld [vmem:[%s35 + $0xc] sm:$0xf]
        %v3477 = vld [vmem:[%s35 + $0x10] sm:$0xf]
        %v3478 = vld [vmem:[%s35 + $0x14] sm:$0xf]
        %v3479 = vld [vmem:[%s35 + $0x18] sm:$0xf]
        %v3480 = vld [vmem:[%s35 + $0x1c] sm:$0xf]
        %v3481 = vld [vmem:[%s35 + $0x20] sm:$0xf]
        %v3482 = vld [vmem:[%s35 + $0x24] sm:$0xf]
        %v3483 = vld [vmem:[%s35 + $0x28] sm:$0xf]
        %v3484 = vld [vmem:[%s35 + $0x2c] sm:$0xf]
        %v3485 = vld [vmem:[%s35 + $0x30] sm:$0xf]
        %v3486 = vld [vmem:[%s35 + $0x34] sm:$0xf]
        %v3487 = vld [vmem:[%s35 + $0x38] sm:$0xf]
        %v3488 = vld [vmem:[%s35 + $0x3c] sm:$0xf]
        %v3489 = vld [vmem:[%s41] sm:$0x1]
        %v3491 = vlaneseq
        %v3492 = vshrl.u32 %v3491, 7
        %v3493 = vsub.s32 0, %v3492
        %v3494 = vrot.slane %v3489, %v3493
        %v3512 = vunpack.c.l.b16 %v3473
        %v3513 = vunpack.c.l.b16 %v3474
        %v3514 = vunpack.c.l.b16 %v3475
        %v3515 = vunpack.c.l.b16 %v3476
        %v3516 = vunpack.c.l.b16 %v3477
        %v3517 = vunpack.c.l.b16 %v3478
        %v3518 = vunpack.c.l.b16 %v3479
        %v3519 = vunpack.c.l.b16 %v3480
        %v3520 = vunpack.c.l.b16 %v3481
        %v3521 = vunpack.c.l.b16 %v3482
        %v3522 = vunpack.c.l.b16 %v3483
        %v3523 = vunpack.c.l.b16 %v3484
        %v3524 = vunpack.c.l.b16 %v3485
        %v3525 = vunpack.c.l.b16 %v3486
        %v3526 = vunpack.c.l.b16 %v3487
        %v3527 = vunpack.c.l.b16 %v3488
        %v3528 = vpack.c.b16 %v3513, %v3512
        %v3529 = vpack.c.b16 %v3515, %v3514
        %v3530 = vpack.c.b16 %v3517, %v3516
        %v3531 = vpack.c.b16 %v3519, %v3518
        %v3532 = vpack.c.b16 %v3521, %v3520
        %v3533 = vpack.c.b16 %v3523, %v3522
        %v3534 = vpack.c.b16 %v3525, %v3524
        %v3535 = vpack.c.b16 %v3527, %v3526
        %3544 = vmatprep.subr.bf16.mxu0 0
        %3545 = vmatpush1.bf16.msra.mxu0 %v3528
        %3546 = vmatprep.subr.bf16.mxu0 0
        %3547 = vmatpush1.bf16.msra.mxu0 %v3529
        %3548 = vmatprep.subr.bf16.mxu0 0
        %3549 = vmatpush1.bf16.msra.mxu0 %v3530
        %3550 = vmatprep.subr.bf16.mxu0 0
        %3551 = vmatpush1.bf16.msra.mxu0 %v3531
        %3552 = vmatprep.subr.bf16.mxu0 0
        %3553 = vmatpush1.bf16.msra.mxu0 %v3532
        %3554 = vmatprep.subr.bf16.mxu0 0
        %3555 = vmatpush1.bf16.msra.mxu0 %v3533
        %3556 = vmatprep.subr.bf16.mxu0 0
        %3557 = vmatpush1.bf16.msra.mxu0 %v3534
        %3558 = vmatprep.subr.bf16.mxu0 0
        %3559 = vmatpush1.bf16.msra.mxu0 %v3535
        %3560 = vmatprep.subr.bf16.mxu0 0
        %3561 = vmatpush1.bf16.msra.mxu0 0
        %3562 = vmatprep.subr.bf16.mxu0 0
        %3563 = vmatpush1.bf16.msra.mxu0 0
        %3564 = vmatprep.subr.bf16.mxu0 0
        %3565 = vmatpush1.bf16.msra.mxu0 0
        %3566 = vmatprep.subr.bf16.mxu0 0
        %3567 = vmatpush1.bf16.msra.mxu0 0
        %3568 = vmatprep.subr.bf16.mxu0 0
        %3569 = vmatpush1.bf16.msra.mxu0 0
        %3570 = vmatprep.subr.bf16.mxu0 0
        %3571 = vmatpush1.bf16.msra.mxu0 0
        %3572 = vmatprep.subr.bf16.mxu0 0
        %3573 = vmatpush1.bf16.msra.mxu0 0
        %3574 = vmatprep.subr.bf16.mxu0 0
        %3575 = vmatpush1.bf16.msra.mxu0 0
        %3576 = vmatprep.mubr.bf16.mxu0 0
        %3577 = vmatmul.mubr.bf16.gmra.mrb[0].mxu0 %v3472
        %v3578 = vpop.f32.mrb[0].mxu0
        %v3579 = vadd.f32 %v3494, %v3578
        %v3580 = vpop.f32.mrb[0].mxu0
        %v3581 = vpop.f32.mrb[0].mxu0
        %v3582 = vadd.f32 %v3494, %v3581
        %v3583 = vpop.f32.mrb[0].mxu0
        %3584 = vdwg.mxu0
        %v3585 = vmax.f32 %v3579, 0.0
        %v3586 = vmax.f32 %v3582, 0.0
        %v3587 = vld [vmem:[#allocation21] sm:$0xf]
        %v3588 = vld [vmem:[#allocation21 + $0x4] sm:$0xf]
        %v3589 = vld [vmem:[#allocation21 + $0x8] sm:$0xf]
        %v3590 = vld [vmem:[#allocation21 + $0xc] sm:$0xf]
        %v3591 = vld [vmem:[#allocation21 + $0x10] sm:$0xf]
        %v3592 = vld [vmem:[#allocation21 + $0x14] sm:$0xf]
        %v3593 = vld [vmem:[#allocation21 + $0x18] sm:$0xf]
        %v3594 = vld [vmem:[#allocation21 + $0x1c] sm:$0xf]
        %v3595 = vld [vmem:[#allocation21 + $0x20] sm:$0xf]
        %v3596 = vld [vmem:[#allocation21 + $0x24] sm:$0xf]
        %v3597 = vld [vmem:[#allocation21 + $0x28] sm:$0xf]
        %v3598 = vld [vmem:[#allocation21 + $0x2c] sm:$0xf]
        %v3599 = vld [vmem:[#allocation21 + $0x30] sm:$0xf]
        %v3600 = vld [vmem:[#allocation21 + $0x34] sm:$0xf]
        %v3601 = vld [vmem:[#allocation21 + $0x38] sm:$0xf]
        %v3602 = vld [vmem:[#allocation21 + $0x3c] sm:$0xf]
        %v3603 = vpack.c.bf16 %v3471, %v3470
        %v3604 = vld [vmem:[#allocation22] sm:$0xf]
        %v3605 = vld [vmem:[#allocation22 + $0x4] sm:$0xf]
        %v3606 = vld [vmem:[#allocation22 + $0x8] sm:$0xf]
        %v3607 = vld [vmem:[#allocation22 + $0xc] sm:$0xf]
        %v3608 = vld [vmem:[#allocation22 + $0x10] sm:$0xf]
        %v3609 = vld [vmem:[#allocation22 + $0x14] sm:$0xf]
        %v3610 = vld [vmem:[#allocation22 + $0x18] sm:$0xf]
        %v3611 = vld [vmem:[#allocation22 + $0x1c] sm:$0xf]
        %v3612 = vld [vmem:[#allocation22 + $0x20] sm:$0xf]
        %v3613 = vld [vmem:[#allocation22 + $0x24] sm:$0xf]
        %v3614 = vld [vmem:[#allocation22 + $0x28] sm:$0xf]
        %v3615 = vld [vmem:[#allocation22 + $0x2c] sm:$0xf]
        %v3616 = vld [vmem:[#allocation22 + $0x30] sm:$0xf]
        %v3617 = vld [vmem:[#allocation22 + $0x34] sm:$0xf]
        %v3618 = vld [vmem:[#allocation22 + $0x38] sm:$0xf]
        %v3619 = vld [vmem:[#allocation22 + $0x3c] sm:$0xf]
        %v3636 = vunpack.c.l.b16 %v3604
        %v3637 = vunpack.c.l.b16 %v3605
        %v3638 = vunpack.c.l.b16 %v3606
        %v3639 = vunpack.c.l.b16 %v3607
        %v3640 = vunpack.c.l.b16 %v3608
        %v3641 = vunpack.c.l.b16 %v3609
        %v3642 = vunpack.c.l.b16 %v3610
        %v3643 = vunpack.c.l.b16 %v3611
        %v3644 = vunpack.c.l.b16 %v3612
        %v3645 = vunpack.c.l.b16 %v3613
        %v3646 = vunpack.c.l.b16 %v3614
        %v3647 = vunpack.c.l.b16 %v3615
        %v3648 = vunpack.c.l.b16 %v3616
        %v3649 = vunpack.c.l.b16 %v3617
        %v3650 = vunpack.c.l.b16 %v3618
        %v3651 = vunpack.c.l.b16 %v3619
        %v3652 = vpack.c.b16 %v3637, %v3636
        %v3653 = vpack.c.b16 %v3639, %v3638
        %v3654 = vpack.c.b16 %v3641, %v3640
        %v3655 = vpack.c.b16 %v3643, %v3642
        %v3656 = vpack.c.b16 %v3645, %v3644
        %v3657 = vpack.c.b16 %v3647, %v3646
        %v3658 = vpack.c.b16 %v3649, %v3648
        %v3659 = vpack.c.b16 %v3651, %v3650
        %3668 = vmatprep.subr.bf16.mxu0 0
        %3669 = vmatpush1.bf16.msra.mxu0 %v3652
        %3670 = vmatprep.subr.bf16.mxu0 0
        %3671 = vmatpush1.bf16.msra.mxu0 %v3653
        %3672 = vmatprep.subr.bf16.mxu0 0
        %3673 = vmatpush1.bf16.msra.mxu0 %v3654
        %3674 = vmatprep.subr.bf16.mxu0 0
        %3675 = vmatpush1.bf16.msra.mxu0 %v3655
        %3676 = vmatprep.subr.bf16.mxu0 0
        %3677 = vmatpush1.bf16.msra.mxu0 %v3656
        %3678 = vmatprep.subr.bf16.mxu0 0
        %3679 = vmatpush1.bf16.msra.mxu0 %v3657
        %3680 = vmatprep.subr.bf16.mxu0 0
        %3681 = vmatpush1.bf16.msra.mxu0 %v3658
        %3682 = vmatprep.subr.bf16.mxu0 0
        %3683 = vmatpush1.bf16.msra.mxu0 %v3659
        %3684 = vmatprep.subr.bf16.mxu0 0
        %3685 = vmatpush1.bf16.msra.mxu0 0
        %3686 = vmatprep.subr.bf16.mxu0 0
        %3687 = vmatpush1.bf16.msra.mxu0 0
        %3688 = vmatprep.subr.bf16.mxu0 0
        %3689 = vmatpush1.bf16.msra.mxu0 0
        %3690 = vmatprep.subr.bf16.mxu0 0
        %3691 = vmatpush1.bf16.msra.mxu0 0
        %3692 = vmatprep.subr.bf16.mxu0 0
        %3693 = vmatpush1.bf16.msra.mxu0 0
        %3694 = vmatprep.subr.bf16.mxu0 0
        %3695 = vmatpush1.bf16.msra.mxu0 0
        %3696 = vmatprep.subr.bf16.mxu0 0
        %3697 = vmatpush1.bf16.msra.mxu0 0
        %3698 = vmatprep.subr.bf16.mxu0 0
        %3699 = vmatpush1.bf16.msra.mxu0 0
        %3700 = vmatprep.mubr.bf16.mxu0 0
        %3701 = vmatmul.mubr.bf16.gmra.mrb[0].mxu0 %v3603
        %v3702 = vpop.f32.mrb[0].mxu0
        %v3703 = vadd.f32 0.0, %v3702
        %v3704 = vpop.f32.mrb[0].mxu0
        %v3705 = vpop.f32.mrb[0].mxu0
        %v3706 = vadd.f32 0.0, %v3705
        %v3707 = vpop.f32.mrb[0].mxu0
        %3708 = vdwg.mxu0
        %v3725 = vunpack.c.l.b16 %v3587
        %v3726 = vunpack.c.l.b16 %v3588
        %v3727 = vunpack.c.l.b16 %v3589
        %v3728 = vunpack.c.l.b16 %v3590
        %v3729 = vunpack.c.l.b16 %v3591
        %v3730 = vunpack.c.l.b16 %v3592
        %v3731 = vunpack.c.l.b16 %v3593
        %v3732 = vunpack.c.l.b16 %v3594
        %v3733 = vunpack.c.l.b16 %v3595
        %v3734 = vunpack.c.l.b16 %v3596
        %v3735 = vunpack.c.l.b16 %v3597
        %v3736 = vunpack.c.l.b16 %v3598
        %v3737 = vunpack.c.l.b16 %v3599
        %v3738 = vunpack.c.l.b16 %v3600
        %v3739 = vunpack.c.l.b16 %v3601
        %v3740 = vunpack.c.l.b16 %v3602
        %v3741 = vpack.c.b16 %v3726, %v3725
        %v3742 = vpack.c.b16 %v3728, %v3727
        %v3743 = vpack.c.b16 %v3730, %v3729
        %v3744 = vpack.c.b16 %v3732, %v3731
        %v3745 = vpack.c.b16 %v3734, %v3733
        %v3746 = vpack.c.b16 %v3736, %v3735
        %v3747 = vpack.c.b16 %v3738, %v3737
        %v3748 = vpack.c.b16 %v3740, %v3739
        %3757 = vmatprep.subr.bf16.mxu0 0
        %3758 = vmatpush1.bf16.msra.mxu0 %v3741
        %3759 = vmatprep.subr.bf16.mxu0 0
        %3760 = vmatpush1.bf16.msra.mxu0 %v3742
        %3761 = vmatprep.subr.bf16.mxu0 0
        %3762 = vmatpush1.bf16.msra.mxu0 %v3743
        %3763 = vmatprep.subr.bf16.mxu0 0
        %3764 = vmatpush1.bf16.msra.mxu0 %v3744
        %3765 = vmatprep.subr.bf16.mxu0 0
        %3766 = vmatpush1.bf16.msra.mxu0 %v3745
        %3767 = vmatprep.subr.bf16.mxu0 0
        %3768 = vmatpush1.bf16.msra.mxu0 %v3746
        %3769 = vmatprep.subr.bf16.mxu0 0
        %3770 = vmatpush1.bf16.msra.mxu0 %v3747
        %3771 = vmatprep.subr.bf16.mxu0 0
        %3772 = vmatpush1.bf16.msra.mxu0 %v3748
        %3773 = vmatprep.subr.bf16.mxu0 0
        %3774 = vmatpush1.bf16.msra.mxu0 0
        %3775 = vmatprep.subr.bf16.mxu0 0
        %3776 = vmatpush1.bf16.msra.mxu0 0
        %3777 = vmatprep.subr.bf16.mxu0 0
        %3778 = vmatpush1.bf16.msra.mxu0 0
        %3779 = vmatprep.subr.bf16.mxu0 0
        %3780 = vmatpush1.bf16.msra.mxu0 0
        %3781 = vmatprep.subr.bf16.mxu0 0
        %3782 = vmatpush1.bf16.msra.mxu0 0
        %3783 = vmatprep.subr.bf16.mxu0 0
        %3784 = vmatpush1.bf16.msra.mxu0 0
        %3785 = vmatprep.subr.bf16.mxu0 0
        %3786 = vmatpush1.bf16.msra.mxu0 0
        %3787 = vmatprep.subr.bf16.mxu0 0
        %3788 = vmatpush1.bf16.msra.mxu0 0
        %3789 = vmatprep.mubr.bf16.mxu0 0
        %3790 = vmatmul.mubr.bf16.gmra.mrb[0].mxu0 %v3472
        %v3791 = vpop.f32.mrb[0].mxu0
        %v3792 = vadd.f32 %v3703, %v3791
        %v3793 = vpop.f32.mrb[0].mxu0
        %v3794 = vpop.f32.mrb[0].mxu0
        %v3795 = vadd.f32 %v3706, %v3794
        %v3796 = vpop.f32.mrb[0].mxu0
        %3797 = vdwg.mxu0
        %v3798 = vadd.f32 %v3792, %v3494
        %v3799 = vadd.f32 %v3795, %v3494
        %v3800 = vmax.f32 %v3798, 0.0
        %v3801 = vmax.f32 %v3799, 0.0
        %vm3802 = vcmp.lt.s32.totalorder %v1145, 0
        %v3803 = vsub.s32 0, %v1145
        %v3804 = vsel %vm3802, %v3803, %v1145
        %v3805 = vshrl.u32 %v3804, 3
        %v3806 = vand.u32 %v3804, 7
        %v3807 = vsub.s32 0, %v3806
        %v3808 = vsel %vm3802, %v3807, %v3806
        %vm3809 = vcmp.lt.s32.totalorder %v1146, 0
        %v3810 = vsub.s32 0, %v1146
        %v3811 = vsel %vm3809, %v3810, %v1146
        %v3812 = vshrl.u32 %v3811, 3
        %v3813 = vand.u32 %v3811, 7
        %v3814 = vsub.s32 0, %v3813
        %v3815 = vsel %vm3809, %v3814, %v3813
        %vm3816 = vcmp.ne.s32.totalorder %v3808, 0
        %vm3817 = vcmp.ne.s32.totalorder %v3815, 0
        %vm3818 = vcmp.lt.s32.totalorder %v3808, 0
        %vm3819 = vcmp.lt.s32.totalorder %v3815, 0
        %vm3820 = vmand %vm3818, %vm3816
        %vm3821 = vmand %vm3819, %vm3817
        %v3822 = vadd.s32 %v3808, 8
        %v3823 = vadd.s32 %v3815, 8
        %v3824 = vsel %vm3820, %v3822, %v3808
        %v3825 = vsel %vm3821, %v3823, %v3815
        %vm3826 = vcmp.ge.s32.totalorder %v3824, 4
        %vm3827 = vcmp.ge.s32.totalorder %v3825, 4
        %v3828 = vrot.slane %v3800, 4
        %v3829 = vrot.slane %v3801, 4
        %v3830 = vsel %vm2252, %v3828, %v3829
        %v3831 = vsel %vm2252, %v3829, %v3828
        %v3832 = vsel %vm3826, 1, 0
        %v3833 = vsel %vm3827, 1, 0
        %vm3834 = vcmp.eq.s32.totalorder %v3832, 1
        %vm3835 = vcmp.eq.s32.totalorder %v3833, 1
        %v3836 = vsel %vm3834, %v3831, %v3585
        %v3837 = vsel %vm3835, %v3830, %v3586
        %v3838 = vrot.slane %v3836, 4
        %v3839 = vrot.slane %v3837, 4
        %v3840 = vsel %vm2252, %v3838, %v3839
        %v3841 = vsel %vm2252, %v3839, %v3838
        %v3842 = vsel %vm2269, %v3840, 0.0
        %v3843 = vsel %vm2270, %v3841, 0.0
        %v3844 = vpack.c.bf16 %v3837, %v3836
        %v3845 = vld [vmem:[#allocation24] sm:$0xf]
        %v3846 = vld [vmem:[#allocation24 + $0x4] sm:$0xf]
        %v3847 = vld [vmem:[#allocation24 + $0x8] sm:$0xf]
        %v3848 = vld [vmem:[#allocation24 + $0xc] sm:$0xf]
        %v3849 = vld [vmem:[#allocation24 + $0x10] sm:$0xf]
        %v3850 = vld [vmem:[#allocation24 + $0x14] sm:$0xf]
        %v3851 = vld [vmem:[#allocation24 + $0x18] sm:$0xf]
        %v3852 = vld [vmem:[#allocation24 + $0x1c] sm:$0xf]
        %v3853 = vld [vmem:[#allocation24 + $0x20] sm:$0xf]
        %v3854 = vld [vmem:[#allocation24 + $0x24] sm:$0xf]
        %v3855 = vld [vmem:[#allocation24 + $0x28] sm:$0xf]
        %v3856 = vld [vmem:[#allocation24 + $0x2c] sm:$0xf]
        %v3857 = vld [vmem:[#allocation24 + $0x30] sm:$0xf]
        %v3858 = vld [vmem:[#allocation24 + $0x34] sm:$0xf]
        %v3859 = vld [vmem:[#allocation24 + $0x38] sm:$0xf]
        %v3860 = vld [vmem:[#allocation24 + $0x3c] sm:$0xf]
        %v3861 = vld [vmem:[%s49] sm:$0x1]
        %v3863 = vlaneseq
        %v3864 = vshrl.u32 %v3863, 7
        %v3865 = vsub.s32 0, %v3864
        %v3866 = vrot.slane %v3861, %v3865
        %v3884 = vunpack.c.l.b16 %v3845
        %v3885 = vunpack.c.l.b16 %v3846
        %v3886 = vunpack.c.l.b16 %v3847
        %v3887 = vunpack.c.l.b16 %v3848
        %v3888 = vunpack.c.l.b16 %v3849
        %v3889 = vunpack.c.l.b16 %v3850
        %v3890 = vunpack.c.l.b16 %v3851
        %v3891 = vunpack.c.l.b16 %v3852
        %v3892 = vunpack.c.l.b16 %v3853
        %v3893 = vunpack.c.l.b16 %v3854
        %v3894 = vunpack.c.l.b16 %v3855
        %v3895 = vunpack.c.l.b16 %v3856
        %v3896 = vunpack.c.l.b16 %v3857
        %v3897 = vunpack.c.l.b16 %v3858
        %v3898 = vunpack.c.l.b16 %v3859
        %v3899 = vunpack.c.l.b16 %v3860
        %v3900 = vpack.c.b16 %v3885, %v3884
        %v3901 = vpack.c.b16 %v3887, %v3886
        %v3902 = vpack.c.b16 %v3889, %v3888
        %v3903 = vpack.c.b16 %v3891, %v3890
        %v3904 = vpack.c.b16 %v3893, %v3892
        %v3905 = vpack.c.b16 %v3895, %v3894
        %v3906 = vpack.c.b16 %v3897, %v3896
        %v3907 = vpack.c.b16 %v3899, %v3898
        %3916 = vmatprep.subr.bf16.mxu0 0
        %3917 = vmatpush1.bf16.msra.mxu0 %v3900
        %3918 = vmatprep.subr.bf16.mxu0 0
        %3919 = vmatpush1.bf16.msra.mxu0 %v3901
        %3920 = vmatprep.subr.bf16.mxu0 0
        %3921 = vmatpush1.bf16.msra.mxu0 %v3902
        %3922 = vmatprep.subr.bf16.mxu0 0
        %3923 = vmatpush1.bf16.msra.mxu0 %v3903
        %3924 = vmatprep.subr.bf16.mxu0 0
        %3925 = vmatpush1.bf16.msra.mxu0 %v3904
        %3926 = vmatprep.subr.bf16.mxu0 0
        %3927 = vmatpush1.bf16.msra.mxu0 %v3905
        %3928 = vmatprep.subr.bf16.mxu0 0
        %3929 = vmatpush1.bf16.msra.mxu0 %v3906
        %3930 = vmatprep.subr.bf16.mxu0 0
        %3931 = vmatpush1.bf16.msra.mxu0 %v3907
        %3932 = vmatprep.subr.bf16.mxu0 0
        %3933 = vmatpush1.bf16.msra.mxu0 0
        %3934 = vmatprep.subr.bf16.mxu0 0
        %3935 = vmatpush1.bf16.msra.mxu0 0
        %3936 = vmatprep.subr.bf16.mxu0 0
        %3937 = vmatpush1.bf16.msra.mxu0 0
        %3938 = vmatprep.subr.bf16.mxu0 0
        %3939 = vmatpush1.bf16.msra.mxu0 0
        %3940 = vmatprep.subr.bf16.mxu0 0
        %3941 = vmatpush1.bf16.msra.mxu0 0
        %3942 = vmatprep.subr.bf16.mxu0 0
        %3943 = vmatpush1.bf16.msra.mxu0 0
        %3944 = vmatprep.subr.bf16.mxu0 0
        %3945 = vmatpush1.bf16.msra.mxu0 0
        %3946 = vmatprep.subr.bf16.mxu0 0
        %3947 = vmatpush1.bf16.msra.mxu0 0
        %3948 = vmatprep.mubr.bf16.mxu0 0
        %3949 = vmatmul.mubr.bf16.gmra.mrb[0].mxu0 %v3844
        %v3950 = vpop.f32.mrb[0].mxu0
        %v3951 = vadd.f32 %v3866, %v3950
        %v3952 = vpop.f32.mrb[0].mxu0
        %v3953 = vpop.f32.mrb[0].mxu0
        %v3954 = vadd.f32 %v3866, %v3953
        %v3955 = vpop.f32.mrb[0].mxu0
        %3956 = vdwg.mxu0
        %v3957 = vmax.f32 %v3951, 0.0
        %v3958 = vmax.f32 %v3954, 0.0
        %v3959 = vld [vmem:[#allocation25] sm:$0xf]
        %v3960 = vld [vmem:[#allocation25 + $0x4] sm:$0xf]
        %v3961 = vld [vmem:[#allocation25 + $0x8] sm:$0xf]
        %v3962 = vld [vmem:[#allocation25 + $0xc] sm:$0xf]
        %v3963 = vld [vmem:[#allocation25 + $0x10] sm:$0xf]
        %v3964 = vld [vmem:[#allocation25 + $0x14] sm:$0xf]
        %v3965 = vld [vmem:[#allocation25 + $0x18] sm:$0xf]
        %v3966 = vld [vmem:[#allocation25 + $0x1c] sm:$0xf]
        %v3967 = vld [vmem:[#allocation25 + $0x20] sm:$0xf]
        %v3968 = vld [vmem:[#allocation25 + $0x24] sm:$0xf]
        %v3969 = vld [vmem:[#allocation25 + $0x28] sm:$0xf]
        %v3970 = vld [vmem:[#allocation25 + $0x2c] sm:$0xf]
        %v3971 = vld [vmem:[#allocation25 + $0x30] sm:$0xf]
        %v3972 = vld [vmem:[#allocation25 + $0x34] sm:$0xf]
        %v3973 = vld [vmem:[#allocation25 + $0x38] sm:$0xf]
        %v3974 = vld [vmem:[#allocation25 + $0x3c] sm:$0xf]
        %v3975 = vpack.c.bf16 %v3843, %v3842
        %v3976 = vld [vmem:[#allocation27] sm:$0xf]
        %v3977 = vld [vmem:[#allocation27 + $0x4] sm:$0xf]
        %v3978 = vld [vmem:[#allocation27 + $0x8] sm:$0xf]
        %v3979 = vld [vmem:[#allocation27 + $0xc] sm:$0xf]
        %v3980 = vld [vmem:[#allocation27 + $0x10] sm:$0xf]
        %v3981 = vld [vmem:[#allocation27 + $0x14] sm:$0xf]
        %v3982 = vld [vmem:[#allocation27 + $0x18] sm:$0xf]
        %v3983 = vld [vmem:[#allocation27 + $0x1c] sm:$0xf]
        %v3984 = vld [vmem:[#allocation27 + $0x20] sm:$0xf]
        %v3985 = vld [vmem:[#allocation27 + $0x24] sm:$0xf]
        %v3986 = vld [vmem:[#allocation27 + $0x28] sm:$0xf]
        %v3987 = vld [vmem:[#allocation27 + $0x2c] sm:$0xf]
        %v3988 = vld [vmem:[#allocation27 + $0x30] sm:$0xf]
        %v3989 = vld [vmem:[#allocation27 + $0x34] sm:$0xf]
        %v3990 = vld [vmem:[#allocation27 + $0x38] sm:$0xf]
        %v3991 = vld [vmem:[#allocation27 + $0x3c] sm:$0xf]
        %v4008 = vunpack.c.l.b16 %v3976
        %v4009 = vunpack.c.l.b16 %v3977
        %v4010 = vunpack.c.l.b16 %v3978
        %v4011 = vunpack.c.l.b16 %v3979
        %v4012 = vunpack.c.l.b16 %v3980
        %v4013 = vunpack.c.l.b16 %v3981
        %v4014 = vunpack.c.l.b16 %v3982
        %v4015 = vunpack.c.l.b16 %v3983
        %v4016 = vunpack.c.l.b16 %v3984
        %v4017 = vunpack.c.l.b16 %v3985
        %v4018 = vunpack.c.l.b16 %v3986
        %v4019 = vunpack.c.l.b16 %v3987
        %v4020 = vunpack.c.l.b16 %v3988
        %v4021 = vunpack.c.l.b16 %v3989
        %v4022 = vunpack.c.l.b16 %v3990
        %v4023 = vunpack.c.l.b16 %v3991
        %v4024 = vpack.c.b16 %v4009, %v4008
        %v4025 = vpack.c.b16 %v4011, %v4010
        %v4026 = vpack.c.b16 %v4013, %v4012
        %v4027 = vpack.c.b16 %v4015, %v4014
        %v4028 = vpack.c.b16 %v4017, %v4016
        %v4029 = vpack.c.b16 %v4019, %v4018
        %v4030 = vpack.c.b16 %v4021, %v4020
        %v4031 = vpack.c.b16 %v4023, %v4022
        %4040 = vmatprep.subr.bf16.mxu0 0
        %4041 = vmatpush1.bf16.msra.mxu0 %v4024
        %4042 = vmatprep.subr.bf16.mxu0 0
        %4043 = vmatpush1.bf16.msra.mxu0 %v4025
        %4044 = vmatprep.subr.bf16.mxu0 0
        %4045 = vmatpush1.bf16.msra.mxu0 %v4026
        %4046 = vmatprep.subr.bf16.mxu0 0
        %4047 = vmatpush1.bf16.msra.mxu0 %v4027
        %4048 = vmatprep.subr.bf16.mxu0 0
        %4049 = vmatpush1.bf16.msra.mxu0 %v4028
        %4050 = vmatprep.subr.bf16.mxu0 0
        %4051 = vmatpush1.bf16.msra.mxu0 %v4029
        %4052 = vmatprep.subr.bf16.mxu0 0
        %4053 = vmatpush1.bf16.msra.mxu0 %v4030
        %4054 = vmatprep.subr.bf16.mxu0 0
        %4055 = vmatpush1.bf16.msra.mxu0 %v4031
        %4056 = vmatprep.subr.bf16.mxu0 0
        %4057 = vmatpush1.bf16.msra.mxu0 0
        %4058 = vmatprep.subr.bf16.mxu0 0
        %4059 = vmatpush1.bf16.msra.mxu0 0
        %4060 = vmatprep.subr.bf16.mxu0 0
        %4061 = vmatpush1.bf16.msra.mxu0 0
        %4062 = vmatprep.subr.bf16.mxu0 0
        %4063 = vmatpush1.bf16.msra.mxu0 0
        %4064 = vmatprep.subr.bf16.mxu0 0
        %4065 = vmatpush1.bf16.msra.mxu0 0
        %4066 = vmatprep.subr.bf16.mxu0 0
        %4067 = vmatpush1.bf16.msra.mxu0 0
        %4068 = vmatprep.subr.bf16.mxu0 0
        %4069 = vmatpush1.bf16.msra.mxu0 0
        %4070 = vmatprep.subr.bf16.mxu0 0
        %4071 = vmatpush1.bf16.msra.mxu0 0
        %4072 = vmatprep.mubr.bf16.mxu0 0
        %4073 = vmatmul.mubr.bf16.gmra.mrb[0].mxu0 %v3975
        %v4074 = vpop.f32.mrb[0].mxu0
        %v4075 = vadd.f32 0.0, %v4074
        %v4076 = vpop.f32.mrb[0].mxu0
        %v4077 = vpop.f32.mrb[0].mxu0
        %v4078 = vadd.f32 0.0, %v4077
        %v4079 = vpop.f32.mrb[0].mxu0
        %4080 = vdwg.mxu0
        %v4097 = vunpack.c.l.b16 %v3959
        %v4098 = vunpack.c.l.b16 %v3960
        %v4099 = vunpack.c.l.b16 %v3961
        %v4100 = vunpack.c.l.b16 %v3962
        %v4101 = vunpack.c.l.b16 %v3963
        %v4102 = vunpack.c.l.b16 %v3964
        %v4103 = vunpack.c.l.b16 %v3965
        %v4104 = vunpack.c.l.b16 %v3966
        %v4105 = vunpack.c.l.b16 %v3967
        %v4106 = vunpack.c.l.b16 %v3968
        %v4107 = vunpack.c.l.b16 %v3969
        %v4108 = vunpack.c.l.b16 %v3970
        %v4109 = vunpack.c.l.b16 %v3971
        %v4110 = vunpack.c.l.b16 %v3972
        %v4111 = vunpack.c.l.b16 %v3973
        %v4112 = vunpack.c.l.b16 %v3974
        %v4113 = vpack.c.b16 %v4098, %v4097
        %v4114 = vpack.c.b16 %v4100, %v4099
        %v4115 = vpack.c.b16 %v4102, %v4101
        %v4116 = vpack.c.b16 %v4104, %v4103
        %v4117 = vpack.c.b16 %v4106, %v4105
        %v4118 = vpack.c.b16 %v4108, %v4107
        %v4119 = vpack.c.b16 %v4110, %v4109
        %v4120 = vpack.c.b16 %v4112, %v4111
        %4129 = vmatprep.subr.bf16.mxu0 0
        %4130 = vmatpush1.bf16.msra.mxu0 %v4113
        %4131 = vmatprep.subr.bf16.mxu0 0
        %4132 = vmatpush1.bf16.msra.mxu0 %v4114
        %4133 = vmatprep.subr.bf16.mxu0 0
        %4134 = vmatpush1.bf16.msra.mxu0 %v4115
        %4135 = vmatprep.subr.bf16.mxu0 0
        %4136 = vmatpush1.bf16.msra.mxu0 %v4116
        %4137 = vmatprep.subr.bf16.mxu0 0
        %4138 = vmatpush1.bf16.msra.mxu0 %v4117
        %4139 = vmatprep.subr.bf16.mxu0 0
        %4140 = vmatpush1.bf16.msra.mxu0 %v4118
        %4141 = vmatprep.subr.bf16.mxu0 0
        %4142 = vmatpush1.bf16.msra.mxu0 %v4119
        %4143 = vmatprep.subr.bf16.mxu0 0
        %4144 = vmatpush1.bf16.msra.mxu0 %v4120
        %4145 = vmatprep.subr.bf16.mxu0 0
        %4146 = vmatpush1.bf16.msra.mxu0 0
        %4147 = vmatprep.subr.bf16.mxu0 0
        %4148 = vmatpush1.bf16.msra.mxu0 0
        %4149 = vmatprep.subr.bf16.mxu0 0
        %4150 = vmatpush1.bf16.msra.mxu0 0
        %4151 = vmatprep.subr.bf16.mxu0 0
        %4152 = vmatpush1.bf16.msra.mxu0 0
        %4153 = vmatprep.subr.bf16.mxu0 0
        %4154 = vmatpush1.bf16.msra.mxu0 0
        %4155 = vmatprep.subr.bf16.mxu0 0
        %4156 = vmatpush1.bf16.msra.mxu0 0
        %4157 = vmatprep.subr.bf16.mxu0 0
        %4158 = vmatpush1.bf16.msra.mxu0 0
        %4159 = vmatprep.subr.bf16.mxu0 0
        %4160 = vmatpush1.bf16.msra.mxu0 0
        %4161 = vmatprep.mubr.bf16.mxu0 0
        %4162 = vmatmul.mubr.bf16.gmra.mrb[0].mxu0 %v3844
        %v4163 = vpop.f32.mrb[0].mxu0
        %v4164 = vadd.f32 %v4075, %v4163
        %v4165 = vpop.f32.mrb[0].mxu0
        %v4166 = vpop.f32.mrb[0].mxu0
        %v4167 = vadd.f32 %v4078, %v4166
        %v4168 = vpop.f32.mrb[0].mxu0
        %4169 = vdwg.mxu0
        %v4170 = vadd.f32 %v4164, %v3866
        %v4171 = vadd.f32 %v4167, %v3866
        %v4172 = vmax.f32 %v4170, 0.0
        %v4173 = vmax.f32 %v4171, 0.0
        %vm4174 = vcmp.lt.s32.totalorder %v1145, 0
        %v4175 = vsub.s32 0, %v1145
        %v4176 = vsel %vm4174, %v4175, %v1145
        %v4177 = vshrl.u32 %v4176, 2
        %v4178 = vand.u32 %v4176, 3
        %v4179 = vsub.s32 0, %v4178
        %v4180 = vsel %vm4174, %v4179, %v4178
        %vm4181 = vcmp.lt.s32.totalorder %v1146, 0
        %v4182 = vsub.s32 0, %v1146
        %v4183 = vsel %vm4181, %v4182, %v1146
        %v4184 = vshrl.u32 %v4183, 2
        %v4185 = vand.u32 %v4183, 3
        %v4186 = vsub.s32 0, %v4185
        %v4187 = vsel %vm4181, %v4186, %v4185
        %vm4188 = vcmp.ne.s32.totalorder %v4180, 0
        %vm4189 = vcmp.ne.s32.totalorder %v4187, 0
        %vm4190 = vcmp.lt.s32.totalorder %v4180, 0
        %vm4191 = vcmp.lt.s32.totalorder %v4187, 0
        %vm4192 = vmand %vm4190, %vm4188
        %vm4193 = vmand %vm4191, %vm4189
        %v4194 = vadd.s32 %v4180, 4
        %v4195 = vadd.s32 %v4187, 4
        %v4196 = vsel %vm4192, %v4194, %v4180
        %v4197 = vsel %vm4193, %v4195, %v4187
        %vm4198 = vcmp.ge.s32.totalorder %v4196, 2
        %vm4199 = vcmp.ge.s32.totalorder %v4197, 2
        %v4200 = vrot.slane %v4172, 6
        %v4201 = vrot.slane %v4173, 6
        %v4202 = vsel %vm1450, %v4200, %v4201
        %v4203 = vsel %vm1450, %v4201, %v4200
        %v4204 = vsel %vm4198, 1, 0
        %v4205 = vsel %vm4199, 1, 0
        %vm4206 = vcmp.eq.s32.totalorder %v4204, 1
        %vm4207 = vcmp.eq.s32.totalorder %v4205, 1
        %v4208 = vsel %vm4206, %v4203, %v3957
        %v4209 = vsel %vm4207, %v4202, %v3958
        %v4210 = vrot.slane %v4208, 2
        %v4211 = vrot.slane %v4209, 2
        %v4212 = vsel %vm1469, %v4210, %v4211
        %v4213 = vsel %vm1469, %v4211, %v4210
        %v4214 = vsel %vm1476, %v4212, 0.0
        %v4215 = vsel %vm1477, %v4213, 0.0
        %v4216 = vpack.c.bf16 %v4209, %v4208
        %v4217 = vld [vmem:[%s51] sm:$0xf]
        %v4218 = vld [vmem:[%s51 + $0x4] sm:$0xf]
        %v4219 = vld [vmem:[%s51 + $0x8] sm:$0xf]
        %v4220 = vld [vmem:[%s51 + $0xc] sm:$0xf]
        %v4221 = vld [vmem:[%s51 + $0x10] sm:$0xf]
        %v4222 = vld [vmem:[%s51 + $0x14] sm:$0xf]
        %v4223 = vld [vmem:[%s51 + $0x18] sm:$0xf]
        %v4224 = vld [vmem:[%s51 + $0x1c] sm:$0xf]
        %v4225 = vld [vmem:[%s51 + $0x20] sm:$0xf]
        %v4226 = vld [vmem:[%s51 + $0x24] sm:$0xf]
        %v4227 = vld [vmem:[%s51 + $0x28] sm:$0xf]
        %v4228 = vld [vmem:[%s51 + $0x2c] sm:$0xf]
        %v4229 = vld [vmem:[%s51 + $0x30] sm:$0xf]
        %v4230 = vld [vmem:[%s51 + $0x34] sm:$0xf]
        %v4231 = vld [vmem:[%s51 + $0x38] sm:$0xf]
        %v4232 = vld [vmem:[%s51 + $0x3c] sm:$0xf]
        %v4233 = vld [vmem:[%s57] sm:$0x1]
        %v4235 = vlaneseq
        %v4236 = vshrl.u32 %v4235, 7
        %v4237 = vsub.s32 0, %v4236
        %v4238 = vrot.slane %v4233, %v4237
        %v4256 = vunpack.c.l.b16 %v4217
        %v4257 = vunpack.c.l.b16 %v4218
        %v4258 = vunpack.c.l.b16 %v4219
        %v4259 = vunpack.c.l.b16 %v4220
        %v4260 = vunpack.c.l.b16 %v4221
        %v4261 = vunpack.c.l.b16 %v4222
        %v4262 = vunpack.c.l.b16 %v4223
        %v4263 = vunpack.c.l.b16 %v4224
        %v4264 = vunpack.c.l.b16 %v4225
        %v4265 = vunpack.c.l.b16 %v4226
        %v4266 = vunpack.c.l.b16 %v4227
        %v4267 = vunpack.c.l.b16 %v4228
        %v4268 = vunpack.c.l.b16 %v4229
        %v4269 = vunpack.c.l.b16 %v4230
        %v4270 = vunpack.c.l.b16 %v4231
        %v4271 = vunpack.c.l.b16 %v4232
        %v4272 = vpack.c.b16 %v4257, %v4256
        %v4273 = vpack.c.b16 %v4259, %v4258
        %v4274 = vpack.c.b16 %v4261, %v4260
        %v4275 = vpack.c.b16 %v4263, %v4262
        %v4276 = vpack.c.b16 %v4265, %v4264
        %v4277 = vpack.c.b16 %v4267, %v4266
        %v4278 = vpack.c.b16 %v4269, %v4268
        %v4279 = vpack.c.b16 %v4271, %v4270
        %4288 = vmatprep.subr.bf16.mxu0 0
        %4289 = vmatpush1.bf16.msra.mxu0 %v4272
        %4290 = vmatprep.subr.bf16.mxu0 0
        %4291 = vmatpush1.bf16.msra.mxu0 %v4273
        %4292 = vmatprep.subr.bf16.mxu0 0
        %4293 = vmatpush1.bf16.msra.mxu0 %v4274
        %4294 = vmatprep.subr.bf16.mxu0 0
        %4295 = vmatpush1.bf16.msra.mxu0 %v4275
        %4296 = vmatprep.subr.bf16.mxu0 0
        %4297 = vmatpush1.bf16.msra.mxu0 %v4276
        %4298 = vmatprep.subr.bf16.mxu0 0
        %4299 = vmatpush1.bf16.msra.mxu0 %v4277
        %4300 = vmatprep.subr.bf16.mxu0 0
        %4301 = vmatpush1.bf16.msra.mxu0 %v4278
        %4302 = vmatprep.subr.bf16.mxu0 0
        %4303 = vmatpush1.bf16.msra.mxu0 %v4279
        %4304 = vmatprep.subr.bf16.mxu0 0
        %4305 = vmatpush1.bf16.msra.mxu0 0
        %4306 = vmatprep.subr.bf16.mxu0 0
        %4307 = vmatpush1.bf16.msra.mxu0 0
        %4308 = vmatprep.subr.bf16.mxu0 0
        %4309 = vmatpush1.bf16.msra.mxu0 0
        %4310 = vmatprep.subr.bf16.mxu0 0
        %4311 = vmatpush1.bf16.msra.mxu0 0
        %4312 = vmatprep.subr.bf16.mxu0 0
        %4313 = vmatpush1.bf16.msra.mxu0 0
        %4314 = vmatprep.subr.bf16.mxu0 0
        %4315 = vmatpush1.bf16.msra.mxu0 0
        %4316 = vmatprep.subr.bf16.mxu0 0
        %4317 = vmatpush1.bf16.msra.mxu0 0
        %4318 = vmatprep.subr.bf16.mxu0 0
        %4319 = vmatpush1.bf16.msra.mxu0 0
        %4320 = vmatprep.mubr.bf16.mxu0 0
        %4321 = vmatmul.mubr.bf16.gmra.mrb[0].mxu0 %v4216
        %v4322 = vpop.f32.mrb[0].mxu0
        %v4323 = vadd.f32 %v4238, %v4322
        %v4324 = vpop.f32.mrb[0].mxu0
        %v4325 = vpop.f32.mrb[0].mxu0
        %v4326 = vadd.f32 %v4238, %v4325
        %v4327 = vpop.f32.mrb[0].mxu0
        %4328 = vdwg.mxu0
        %v4329 = vmax.f32 %v4323, 0.0
        %v4330 = vmax.f32 %v4326, 0.0
        %v4331 = vld [vmem:[%s53] sm:$0xf]
        %v4332 = vld [vmem:[%s53 + $0x4] sm:$0xf]
        %v4333 = vld [vmem:[%s53 + $0x8] sm:$0xf]
        %v4334 = vld [vmem:[%s53 + $0xc] sm:$0xf]
        %v4335 = vld [vmem:[%s53 + $0x10] sm:$0xf]
        %v4336 = vld [vmem:[%s53 + $0x14] sm:$0xf]
        %v4337 = vld [vmem:[%s53 + $0x18] sm:$0xf]
        %v4338 = vld [vmem:[%s53 + $0x1c] sm:$0xf]
        %v4339 = vld [vmem:[%s53 + $0x20] sm:$0xf]
        %v4340 = vld [vmem:[%s53 + $0x24] sm:$0xf]
        %v4341 = vld [vmem:[%s53 + $0x28] sm:$0xf]
        %v4342 = vld [vmem:[%s53 + $0x2c] sm:$0xf]
        %v4343 = vld [vmem:[%s53 + $0x30] sm:$0xf]
        %v4344 = vld [vmem:[%s53 + $0x34] sm:$0xf]
        %v4345 = vld [vmem:[%s53 + $0x38] sm:$0xf]
        %v4346 = vld [vmem:[%s53 + $0x3c] sm:$0xf]
        %v4347 = vpack.c.bf16 %v4215, %v4214
        %v4348 = vld [vmem:[%s55] sm:$0xf]
        %v4349 = vld [vmem:[%s55 + $0x4] sm:$0xf]
        %v4350 = vld [vmem:[%s55 + $0x8] sm:$0xf]
        %v4351 = vld [vmem:[%s55 + $0xc] sm:$0xf]
        %v4352 = vld [vmem:[%s55 + $0x10] sm:$0xf]
        %v4353 = vld [vmem:[%s55 + $0x14] sm:$0xf]
        %v4354 = vld [vmem:[%s55 + $0x18] sm:$0xf]
        %v4355 = vld [vmem:[%s55 + $0x1c] sm:$0xf]
        %v4356 = vld [vmem:[%s55 + $0x20] sm:$0xf]
        %v4357 = vld [vmem:[%s55 + $0x24] sm:$0xf]
        %v4358 = vld [vmem:[%s55 + $0x28] sm:$0xf]
        %v4359 = vld [vmem:[%s55 + $0x2c] sm:$0xf]
        %v4360 = vld [vmem:[%s55 + $0x30] sm:$0xf]
        %v4361 = vld [vmem:[%s55 + $0x34] sm:$0xf]
        %v4362 = vld [vmem:[%s55 + $0x38] sm:$0xf]
        %v4363 = vld [vmem:[%s55 + $0x3c] sm:$0xf]
        %v4380 = vunpack.c.l.b16 %v4348
        %v4381 = vunpack.c.l.b16 %v4349
        %v4382 = vunpack.c.l.b16 %v4350
        %v4383 = vunpack.c.l.b16 %v4351
        %v4384 = vunpack.c.l.b16 %v4352
        %v4385 = vunpack.c.l.b16 %v4353
        %v4386 = vunpack.c.l.b16 %v4354
        %v4387 = vunpack.c.l.b16 %v4355
        %v4388 = vunpack.c.l.b16 %v4356
        %v4389 = vunpack.c.l.b16 %v4357
        %v4390 = vunpack.c.l.b16 %v4358
        %v4391 = vunpack.c.l.b16 %v4359
        %v4392 = vunpack.c.l.b16 %v4360
        %v4393 = vunpack.c.l.b16 %v4361
        %v4394 = vunpack.c.l.b16 %v4362
        %v4395 = vunpack.c.l.b16 %v4363
        %v4396 = vpack.c.b16 %v4381, %v4380
        %v4397 = vpack.c.b16 %v4383, %v4382
        %v4398 = vpack.c.b16 %v4385, %v4384
        %v4399 = vpack.c.b16 %v4387, %v4386
        %v4400 = vpack.c.b16 %v4389, %v4388
        %v4401 = vpack.c.b16 %v4391, %v4390
        %v4402 = vpack.c.b16 %v4393, %v4392
        %v4403 = vpack.c.b16 %v4395, %v4394
        %4412 = vmatprep.subr.bf16.mxu0 0
        %4413 = vmatpush1.bf16.msra.mxu0 %v4396
        %4414 = vmatprep.subr.bf16.mxu0 0
        %4415 = vmatpush1.bf16.msra.mxu0 %v4397
        %4416 = vmatprep.subr.bf16.mxu0 0
        %4417 = vmatpush1.bf16.msra.mxu0 %v4398
        %4418 = vmatprep.subr.bf16.mxu0 0
        %4419 = vmatpush1.bf16.msra.mxu0 %v4399
        %4420 = vmatprep.subr.bf16.mxu0 0
        %4421 = vmatpush1.bf16.msra.mxu0 %v4400
        %4422 = vmatprep.subr.bf16.mxu0 0
        %4423 = vmatpush1.bf16.msra.mxu0 %v4401
        %4424 = vmatprep.subr.bf16.mxu0 0
        %4425 = vmatpush1.bf16.msra.mxu0 %v4402
        %4426 = vmatprep.subr.bf16.mxu0 0
        %4427 = vmatpush1.bf16.msra.mxu0 %v4403
        %4428 = vmatprep.subr.bf16.mxu0 0
        %4429 = vmatpush1.bf16.msra.mxu0 0
        %4430 = vmatprep.subr.bf16.mxu0 0
        %4431 = vmatpush1.bf16.msra.mxu0 0
        %4432 = vmatprep.subr.bf16.mxu0 0
        %4433 = vmatpush1.bf16.msra.mxu0 0
        %4434 = vmatprep.subr.bf16.mxu0 0
        %4435 = vmatpush1.bf16.msra.mxu0 0
        %4436 = vmatprep.subr.bf16.mxu0 0
        %4437 = vmatpush1.bf16.msra.mxu0 0
        %4438 = vmatprep.subr.bf16.mxu0 0
        %4439 = vmatpush1.bf16.msra.mxu0 0
        %4440 = vmatprep.subr.bf16.mxu0 0
        %4441 = vmatpush1.bf16.msra.mxu0 0
        %4442 = vmatprep.subr.bf16.mxu0 0
        %4443 = vmatpush1.bf16.msra.mxu0 0
        %4444 = vmatprep.mubr.bf16.mxu0 0
        %4445 = vmatmul.mubr.bf16.gmra.mrb[0].mxu0 %v4347
        %v4446 = vpop.f32.mrb[0].mxu0
        %v4447 = vadd.f32 0.0, %v4446
        %v4448 = vpop.f32.mrb[0].mxu0
        %v4449 = vpop.f32.mrb[0].mxu0
        %v4450 = vadd.f32 0.0, %v4449
        %v4451 = vpop.f32.mrb[0].mxu0
        %4452 = vdwg.mxu0
        %v4469 = vunpack.c.l.b16 %v4331
        %v4470 = vunpack.c.l.b16 %v4332
        %v4471 = vunpack.c.l.b16 %v4333
        %v4472 = vunpack.c.l.b16 %v4334
        %v4473 = vunpack.c.l.b16 %v4335
        %v4474 = vunpack.c.l.b16 %v4336
        %v4475 = vunpack.c.l.b16 %v4337
        %v4476 = vunpack.c.l.b16 %v4338
        %v4477 = vunpack.c.l.b16 %v4339
        %v4478 = vunpack.c.l.b16 %v4340
        %v4479 = vunpack.c.l.b16 %v4341
        %v4480 = vunpack.c.l.b16 %v4342
        %v4481 = vunpack.c.l.b16 %v4343
        %v4482 = vunpack.c.l.b16 %v4344
        %v4483 = vunpack.c.l.b16 %v4345
        %v4484 = vunpack.c.l.b16 %v4346
        %v4485 = vpack.c.b16 %v4470, %v4469
        %v4486 = vpack.c.b16 %v4472, %v4471
        %v4487 = vpack.c.b16 %v4474, %v4473
        %v4488 = vpack.c.b16 %v4476, %v4475
        %v4489 = vpack.c.b16 %v4478, %v4477
        %v4490 = vpack.c.b16 %v4480, %v4479
        %v4491 = vpack.c.b16 %v4482, %v4481
        %v4492 = vpack.c.b16 %v4484, %v4483
        %4501 = vmatprep.subr.bf16.mxu0 0
        %4502 = vmatpush1.bf16.msra.mxu0 %v4485
        %4503 = vmatprep.subr.bf16.mxu0 0
        %4504 = vmatpush1.bf16.msra.mxu0 %v4486
        %4505 = vmatprep.subr.bf16.mxu0 0
        %4506 = vmatpush1.bf16.msra.mxu0 %v4487
        %4507 = vmatprep.subr.bf16.mxu0 0
        %4508 = vmatpush1.bf16.msra.mxu0 %v4488
        %4509 = vmatprep.subr.bf16.mxu0 0
        %4510 = vmatpush1.bf16.msra.mxu0 %v4489
        %4511 = vmatprep.subr.bf16.mxu0 0
        %4512 = vmatpush1.bf16.msra.mxu0 %v4490
        %4513 = vmatprep.subr.bf16.mxu0 0
        %4514 = vmatpush1.bf16.msra.mxu0 %v4491
        %4515 = vmatprep.subr.bf16.mxu0 0
        %4516 = vmatpush1.bf16.msra.mxu0 %v4492
        %4517 = vmatprep.subr.bf16.mxu0 0
        %4518 = vmatpush1.bf16.msra.mxu0 0
        %4519 = vmatprep.subr.bf16.mxu0 0
        %4520 = vmatpush1.bf16.msra.mxu0 0
        %4521 = vmatprep.subr.bf16.mxu0 0
        %4522 = vmatpush1.bf16.msra.mxu0 0
        %4523 = vmatprep.subr.bf16.mxu0 0
        %4524 = vmatpush1.bf16.msra.mxu0 0
        %4525 = vmatprep.subr.bf16.mxu0 0
        %4526 = vmatpush1.bf16.msra.mxu0 0
        %4527 = vmatprep.subr.bf16.mxu0 0
        %4528 = vmatpush1.bf16.msra.mxu0 0
        %4529 = vmatprep.subr.bf16.mxu0 0
        %4530 = vmatpush1.bf16.msra.mxu0 0
        %4531 = vmatprep.subr.bf16.mxu0 0
        %4532 = vmatpush1.bf16.msra.mxu0 0
        %4533 = vmatprep.mubr.bf16.mxu0 0
        %4534 = vmatmul.mubr.bf16.gmra.mrb[0].mxu0 %v4216
        %v4535 = vpop.f32.mrb[0].mxu0
        %v4536 = vadd.f32 %v4447, %v4535
        %v4537 = vpop.f32.mrb[0].mxu0
        %v4538 = vpop.f32.mrb[0].mxu0
        %v4539 = vadd.f32 %v4450, %v4538
        %v4540 = vpop.f32.mrb[0].mxu0
        %4541 = vdwg.mxu0
        %v4542 = vadd.f32 %v4536, %v4238
        %v4543 = vadd.f32 %v4539, %v4238
        %v4544 = vmax.f32 %v4542, 0.0
        %v4545 = vmax.f32 %v4543, 0.0
        %vm4546 = vcmp.lt.s32.totalorder %v1145, 0
        %v4547 = vsub.s32 0, %v1145
        %v4548 = vsel %vm4546, %v4547, %v1145
        %v4549 = vshrl.u32 %v4548, 1
        %v4550 = vand.u32 %v4548, 1
        %v4551 = vsub.s32 0, %v4550
        %v4552 = vsel %vm4546, %v4551, %v4550
        %vm4553 = vcmp.lt.s32.totalorder %v1146, 0
        %v4554 = vsub.s32 0, %v1146
        %v4555 = vsel %vm4553, %v4554, %v1146
        %v4556 = vshrl.u32 %v4555, 1
        %v4557 = vand.u32 %v4555, 1
        %v4558 = vsub.s32 0, %v4557
        %v4559 = vsel %vm4553, %v4558, %v4557
        %vm4560 = vcmp.ne.s32.totalorder %v4552, 0
        %vm4561 = vcmp.ne.s32.totalorder %v4559, 0
        %vm4562 = vcmp.lt.s32.totalorder %v4552, 0
        %vm4563 = vcmp.lt.s32.totalorder %v4559, 0
        %vm4564 = vmand %vm4562, %vm4560
        %vm4565 = vmand %vm4563, %vm4561
        %v4566 = vadd.s32 %v4552, 2
        %v4567 = vadd.s32 %v4559, 2
        %v4568 = vsel %vm4564, %v4566, %v4552
        %v4569 = vsel %vm4565, %v4567, %v4559
        %vm4570 = vcmp.ge.s32.totalorder %v4568, 1
        %vm4571 = vcmp.ge.s32.totalorder %v4569, 1
        %v4572 = vrot.slane %v4544, 7
        %v4573 = vrot.slane %v4545, 7
        %v4574 = vsel %vm1153, %v4572, %v4573
        %v4575 = vsel %vm1153, %v4573, %v4572
        %v4576 = vsel %vm4570, 1, 0
        %v4577 = vsel %vm4571, 1, 0
        %vm4578 = vcmp.eq.s32.totalorder %v4576, 1
        %vm4579 = vcmp.eq.s32.totalorder %v4577, 1
        %v4580 = vsel %vm4578, %v4575, %v4329
        %v4581 = vsel %vm4579, %v4574, %v4330
        %4582 = vst.msk [vmem:[%s1141] sm:$0xff] %vm1205, %v4580
        %4583 = vst.msk [vmem:[%s1141 + $0x8] sm:$0xff] %vm1205, %v4581
        %s4584 = smul.u32 2, %s79
        %p4585 = scmp.lt.s32.totalorder %s4584, 3
        %s4586 = scalar_select %p4585, %s4584, 3
        %s4587 = smul.addr %s4586, 8
        %s4588 = scalar_lea.vmem %s59, %s4587
        // Predicated region
        $region205: #{autoencoder_forward.1} parent=135 // pred_check
          %p4589 = pneg %p711
        $region206: #{autoencoder_forward.1} parent=135 // pred_check_branch
          %4591 = sbr.rel (%p4589) target = $region208
        $region207: #{autoencoder_forward.1} parent=135 // pred_region
          %s4592 = smul.u32 2, %s79
        $region208: #{autoencoder_forward.1} parent=135 // pred_fallthru
          _
      $region136: #{autoencoder_forward.1} parent=5 // pred_fallthru
        _
      %p4593 = scmp.le.s32.totalorder 2, %s74
      // Predicated region
      $region209: #{autoencoder_forward.1} parent=5 // pred_check
        %p4594 = pneg %p4593
      $region210: #{autoencoder_forward.1} parent=5 // pred_check_branch
        %4596 = sbr.rel (%p4594) target = $region212
      $region211: #{autoencoder_forward.1} parent=5 // pred_region
        %s4597 = ssub.s32 %s74, 2
        // Predicated region
        $region213: #{autoencoder_forward.1} parent=211 // pred_check
          %p4598 = pneg %p717
        $region214: #{autoencoder_forward.1} parent=211 // pred_check_branch
          %4600 = sbr.rel (%p4598) target = $region216
        $region215: #{autoencoder_forward.1} parent=211 // pred_region
          %s4601 = smul.u32 2, %s80
          %p4602 = scmp.lt.s32.totalorder %s4601, 3
          %s4603 = scalar_select %p4602, %s4601, 3
          %s4604 = smul.addr %s4603, 8
          %s4605 = scalar_lea.vmem %s59, %s4604
        $region216: #{autoencoder_forward.1} parent=211 // pred_fallthru
          _
      $region212: #{autoencoder_forward.1} parent=5 // pred_fallthru
        _
    $region6: #{autoencoder_forward.1} parent=1 // loop_footer
      %s78 = sadd.s32 1, %s74
    $region7: #{autoencoder_forward.1} parent=1 // loop_footer_branch
      %73 = sbr.rel target = $region3
    $region8: #{autoencoder_forward.1} parent=1 // loop_exit
      _
    %4606 = vsyncpa [#allocation3], 1
    %s4607 = scalar_lea.sflag [#allocation3], 1
    %4608 = vsyncpa %s4607, 1
    %4609 = vsyncpa [#allocation5], 1
    %4610 = vsyncpa [#allocation8], 1
    %4611 = vsyncpa [#allocation11], 1
    %4612 = vsyncpa [#allocation14], 1
    %4613 = vsyncpa [#allocation17], 1
    %4614 = vsyncpa [#allocation20], 1
    %4615 = vsyncpa [#allocation23], 1
    %4616 = vsyncpa [#allocation26], 1

</llo_original>
